<compile_context>
chip_gen: v6e
topology: v6e:2x2x1
jax: 0.10.0
libtpu: 0.0.40
codegen_flags: <defaults>
</compile_context>

<pallas_src>
import numpy as np
import jax
import jax.numpy as jnp
from jax.experimental import pallas as pl
from jax.experimental.pallas import tpu as pltpu

WINDOW_SIZE = 11
HALF = WINDOW_SIZE // 2
SIGMA = 1.5
C1 = 0.01 ** 2
C2 = 0.03 ** 2
NUM_SCALES = 4


# ----------------------------------------------------------------------------
# Host-side constants: Gaussian taps, row band matrix, lane tap coefficients.
# ----------------------------------------------------------------------------
def gaussian_1d(window_size=WINDOW_SIZE, sigma=SIGMA):
    x = np.arange(window_size, dtype=np.float64)
    g = np.exp(-((x - window_size // 2) ** 2) / (2.0 * sigma ** 2))
    return (g / g.sum()).astype(np.float32)


def band_matrix(n, g):
    # B[i, p] = g[p - i + HALF]; left-multiplying an (n, W) map by B is the
    # zero-padded 1-D Gaussian filter along rows (symmetric window, so
    # correlation == convolution, matching F.conv2d in pytorch_ssim).
    half = len(g) // 2
    idx = np.arange(n)
    d = idx[None, :] - idx[:, None] + half
    valid = (d >= 0) & (d < len(g))
    return np.where(valid, g[np.clip(d, 0, len(g) - 1)], 0.0).astype(np.float32)


def lane_tap_coeffs(ws, n_img, g):
    # coeff[t, j] = g[t] if lane j's tap-source lane (j + t - HALF) lies inside
    # the same packed image of width ws, else 0.  Encodes both the Gaussian
    # weight and the per-image zero-padding boundary mask for the roll-based
    # lane filter (also masks the circular wrap of pltpu.roll).
    bw = ws * n_img
    half = len(g) // 2
    lane_in_img = np.arange(bw) % ws
    coeff = np.zeros((len(g), bw), np.float32)
    for t in range(len(g)):
        d = t - half
        valid = (lane_in_img + d >= 0) & (lane_in_img + d < ws)
        coeff[t] = np.where(valid, g[t], 0.0)
    return coeff


def block_diag(m, k):
    n = m.shape[0]
    out = np.zeros((k * n, k * n), np.float32)
    for i in range(k):
        out[i * n:(i + 1) * n, i * n:(i + 1) * n] = m
    return out


# ----------------------------------------------------------------------------
# Kernel helpers (all f32).
# ----------------------------------------------------------------------------
def _gaussian_filter(m, gh, lf_ref, bw, use_roll):
    """Zero-padded separable 11x11 Gaussian filter of one (hs, bw) f32 map."""
    # Row (sublane) direction: single (hs, hs) band matmul on the MXU, f32 acc.
    t = jnp.dot(gh, m, preferred_element_type=jnp.float32)
    if use_roll:
        # Lane direction: 11-tap shift-and-add (XLU roll + VPU FMA).
        acc = None
        for tap in range(WINDOW_SIZE):
            shift = (HALF - tap) % bw
            rolled = t if shift == 0 else pltpu.roll(t, shift, axis=1)
            term = lf_ref[tap:tap + 1, :] * rolled      # (1,bw) bcast over rows
            acc = term if acc is None else acc + term
        return acc
    # Tiny / unaligned lane widths: small dense block-diagonal band matmul.
    return jnp.dot(t, lf_ref[...], preferred_element_type=jnp.float32)


def _ssim_partial_sum(x, y, gh_ref, lf_ref, bw, use_roll):
    gh = gh_ref[...]                                    # hoisted (Hs, Hs) load
    mu1 = _gaussian_filter(x, gh, lf_ref, bw, use_roll)
    mu2 = _gaussian_filter(y, gh, lf_ref, bw, use_roll)
    ex2 = _gaussian_filter(x * x, gh, lf_ref, bw, use_roll)
    ey2 = _gaussian_filter(y * y, gh, lf_ref, bw, use_roll)
    exy = _gaussian_filter(x * y, gh, lf_ref, bw, use_roll)

    mu1mu2 = mu1 * mu2
    mu1sq = mu1 * mu1
    mu2sq = mu2 * mu2
    num = (2.0 * mu1mu2 + C1) * (2.0 * (exy - mu1mu2) + C2)
    den = (mu1sq + mu2sq + C1) * ((ex2 - mu1sq) + (ey2 - mu2sq) + C2)
    # EUP approx reciprocal + one f32 Newton step: ~f32 accuracy, divide off VPU.
    r = pl.reciprocal(den, approx=True)
    r = r * (2.0 - den * r)
    ssim_map = num * r
    part = jnp.sum(ssim_map, axis=-1, keepdims=True)    # (hs, 1)
    return jnp.sum(part, axis=0, keepdims=True)         # (1, 1)


def _make_kernel(scale_cfgs):
    def kernel(xy0, xy1, xy2, xy3,
               gh0, gh1, gh2, gh3,
               lf0, lf1, lf2, lf3, out_ref):
        xys = (xy0, xy1, xy2, xy3)
        ghs = (gh0, gh1, gh2, gh3)
        lfs = (lf0, lf1, lf2, lf3)

        def contrib(s):
            bw, use_roll, inv_count = scale_cfgs[s]
            ssum = _ssim_partial_sum(xys[s][0], xys[s][1],
                                     ghs[s], lfs[s], bw, use_roll)
            return ssum * inv_count                     # partial mean contrib

        # Fine scales: one lane-block of images per grid step.
        fine = contrib(0) + contrib(1)
        out_ref[0] = jnp.broadcast_to(fine, (8, 128))

        # Coarse scales (tiny pixel counts): full arrays, computed once only.
        @pl.when(pl.program_id(0) == 0)
        def _():
            coarse = contrib(2) + contrib(3)
            out_ref[0] = out_ref[0] + jnp.broadcast_to(coarse, (8, 128))

    return kernel


# ----------------------------------------------------------------------------
# XLA glue + wrapper.
# ----------------------------------------------------------------------------
def _pack_lane_major(pred, label):
    # (N, C, H, W) pred & label -> (2, H, N*C*W): images side by side in lanes.
    n, c, h, w = pred.shape
    nc = n * c
    x = pred.reshape(nc, h, w).transpose(1, 0, 2).reshape(h, nc * w)
    y = label.reshape(nc, h, w).transpose(1, 0, 2).reshape(h, nc * w)
    return jnp.stack([x, y], axis=0).astype(jnp.float32)


def _pool_lane_major(xy):
    # 2x2/stride-2 max pool applied directly in the packed layout (per-image
    # widths stay contiguous because W is even at every level).
    t, h, bw = xy.shape
    z = xy.reshape(t, h // 2, 2, bw // 2, 2)
    return z.max(axis=(2, 4))


def _pick_images_per_block(nc, w0):
    # Smallest image-group B dividing N*C with B*W0 % 256 == 0, so the two
    # BLOCKED fine scales keep lane widths that are multiples of 128
    # (scale 0: B*W0, scale 1: B*W0/2).  Smallest B -> most grid blocks ->
    # best megacore sharding & DMA/compute overlap.  Coarse scales are
    # unblocked (full arrays under program_id==0), so they add no constraint.
    for b in range(1, nc + 1):
        if nc % b == 0 and (b * w0) % 256 == 0:
            return b
    return nc


def mssim_loss_pallas(prediction, label):
    n, c, h, w = prediction.shape
    nc = n * c
    assert h % 8 == 0 and w % 8 == 0, "mSSIM needs three 2x2 max-pool levels"

    g = gaussian_1d()
    b_img = _pick_images_per_block(nc, w)
    num_blocks = nc // b_img

    # Pack once at full resolution, then pool the pyramid in packed layout.
    xys = [_pack_lane_major(prediction, label)]
    for _ in range(NUM_SCALES - 1):
        xys.append(_pool_lane_major(xys[-1]))

    xy_specs, gh_arrays, gh_specs, lf_arrays, lf_specs = [], [], [], [], []
    scale_cfgs = []
    block_bytes = 0
    for s in range(NUM_SCALES):
        hs, ws = h >> s, w >> s
        n_img = b_img if s < 2 else nc
        bw = n_img * ws
        use_roll = (bw % 128 == 0)
        scale_cfgs.append((bw, use_roll, 1.0 / float(nc * hs * ws)))

        if s < 2:
            xy_specs.append(pl.BlockSpec((2, hs, bw), lambda i: (0, 0, i)))
        else:
            xy_specs.append(pl.BlockSpec((2, hs, bw), lambda i: (0, 0, 0)))

        gh_arrays.append(jnp.asarray(band_matrix(hs, g)))
        gh_specs.append(pl.BlockSpec((hs, hs), lambda i: (0, 0)))

        if use_roll:
            lf = lane_tap_coeffs(ws, n_img, g)          # (11, bw) f32
        else:
            lf = block_diag(band_matrix(ws, g).T, n_img)  # tiny (bw, bw) f32
        lf_arrays.append(jnp.asarray(lf))
        lf_specs.append(pl.BlockSpec(lf.shape, lambda i: (0, 0)))

        block_bytes += 4 * (2 * hs * bw + hs * hs + int(lf.size))

    block_bytes += 4 * 8 * 128
    # Double-buffered inputs + headroom for in-kernel intermediates.
    vmem_limit = int(min(64 * 1024 * 1024, 2 * block_bytes + 24 * 1024 * 1024))

    out = pl.pallas_call(
        _make_kernel(tuple(scale_cfgs)),
        out_shape=jax.ShapeDtypeStruct((num_blocks, 8, 128), jnp.float32),
        grid_spec=pltpu.PrefetchScalarGridSpec(
            num_scalar_prefetch=0,
            grid=(num_blocks,),
            in_specs=xy_specs + gh_specs + lf_specs,
            out_specs=pl.BlockSpec((1, 8, 128), lambda i: (i, 0, 0)),
        ),
        compiler_params=pltpu.CompilerParams(
            # Independent per-block partial outputs -> megacore shardable.
            dimension_semantics=("parallel",),
            vmem_limit_bytes=vmem_limit,
        ),
    )(*xys, *gh_arrays, *lf_arrays)

    # loss = sum_s (1 - mean_s);  out[i, 0, 0] holds per-block mean contributions.
    return float(NUM_SCALES) - jnp.sum(out[:, 0, 0])


mssim_loss = jax.jit(mssim_loss_pallas)


# ----------------------------------------------------------------------------
# Pure-JAX reference (XLA grouped conv, f32) for the correctness check.
# ----------------------------------------------------------------------------
def _max_pool_2x2_nchw(z):
    n, c, h, w = z.shape
    return z.reshape(n, c, h // 2, 2, w // 2, 2).max(axis=(3, 5))


def _ssim_loss_ref(pred, label):
    n, c, h, w = pred.shape
    g = gaussian_1d()
    w2d = np.outer(g, g).astype(np.float32)
    kern = jnp.asarray(np.tile(w2d[None, None], (c, 1, 1, 1)))  # (C,1,11,11)

    def filt(z):
        return jax.lax.conv_general_dilated(
            z, kern, window_strides=(1, 1), padding=[(5, 5), (5, 5)],
            feature_group_count=c,
            dimension_numbers=("NCHW", "OIHW", "NCHW"),
            precision=jax.lax.Precision.HIGHEST)

    mu1, mu2 = filt(pred), filt(label)
    mu1_sq, mu2_sq, mu1_mu2 = mu1 * mu1, mu2 * mu2, mu1 * mu2
    sigma1_sq = filt(pred * pred) - mu1_sq
    sigma2_sq = filt(label * label) - mu2_sq
    sigma12 = filt(pred * label) - mu1_mu2
    ssim_map = ((2 * mu1_mu2 + C1) * (2 * sigma12 + C2)) / (
        (mu1_sq + mu2_sq + C1) * (sigma1_sq + sigma2_sq + C2))
    return 1.0 - jnp.mean(ssim_map)


def _mssim_loss_ref(prediction, label):
    total = _ssim_loss_ref(prediction, label)
    p, l = prediction, label
    for _ in range(NUM_SCALES - 1):
        p, l = _max_pool_2x2_nchw(p), _max_pool_2x2_nchw(l)
        total = total + _ssim_loss_ref(p, l)
    return total


if __name__ == "__main__":
    key = jax.random.PRNGKey(0)
    k1, k2 = jax.random.split(key)
    prediction = jax.random.uniform(k1, (2, 4, 16, 16), dtype=jnp.float32)
    label = jax.random.uniform(k2, (2, 4, 16, 16), dtype=jnp.float32)

    out = jax.block_until_ready(mssim_loss(prediction, label))
    ref = jax.block_until_ready(_mssim_loss_ref(prediction, label))
    np.testing.assert_allclose(np.asarray(out), np.asarray(ref),
                               rtol=2e-3, atol=2e-3)
    print("KERNEL_OK")
</pallas_src>

<mosaic_0001>
module attributes {stable_mosaic.version = 11 : i64} {
  func.func @kernel(%arg0: i32, %arg1: memref<2x16x128xf32, #tpu.memory_space<vmem>>, %arg2: memref<2x8x64xf32, #tpu.memory_space<vmem>>, %arg3: memref<2x4x32xf32, #tpu.memory_space<vmem>>, %arg4: memref<2x2x16xf32, #tpu.memory_space<vmem>>, %arg5: memref<16x16xf32, #tpu.memory_space<vmem>>, %arg6: memref<8x8xf32, #tpu.memory_space<vmem>>, %arg7: memref<4x4xf32, #tpu.memory_space<vmem>>, %arg8: memref<2x2xf32, #tpu.memory_space<vmem>>, %arg9: memref<11x128xf32, #tpu.memory_space<vmem>>, %arg10: memref<64x64xf32, #tpu.memory_space<vmem>>, %arg11: memref<32x32xf32, #tpu.memory_space<vmem>>, %arg12: memref<16x16xf32, #tpu.memory_space<vmem>>, %arg13: memref<1x8x128xf32, #tpu.memory_space<vmem>>) attributes {dimension_semantics = [#tpu.dimension_semantics<parallel>], iteration_bounds = array<i64: 1>, scalar_prefetch = 0 : i64, scratch_operands = 0 : i64, tpu.core_type = #tpu.core_type<tc>, window_params = [{transform_indices = @transform_0, window_bounds = array<i64: 2, 16, 128>}, {transform_indices = @transform_1, window_bounds = array<i64: 2, 8, 64>}, {pipeline_mode = #tpu.pipeline_mode<synchronous>, transform_indices = @transform_2, window_bounds = array<i64: 2, 4, 32>}, {pipeline_mode = #tpu.pipeline_mode<synchronous>, transform_indices = @transform_3, window_bounds = array<i64: 2, 2, 16>}, {pipeline_mode = #tpu.pipeline_mode<synchronous>, transform_indices = @transform_4, window_bounds = array<i64: 16, 16>}, {pipeline_mode = #tpu.pipeline_mode<synchronous>, transform_indices = @transform_5, window_bounds = array<i64: 8, 8>}, {pipeline_mode = #tpu.pipeline_mode<synchronous>, transform_indices = @transform_6, window_bounds = array<i64: 4, 4>}, {pipeline_mode = #tpu.pipeline_mode<synchronous>, transform_indices = @transform_7, window_bounds = array<i64: 2, 2>}, {pipeline_mode = #tpu.pipeline_mode<synchronous>, transform_indices = @transform_8, window_bounds = array<i64: 11, 128>}, {pipeline_mode = #tpu.pipeline_mode<synchronous>, transform_indices = @transform_9, window_bounds = array<i64: 64, 64>}, {pipeline_mode = #tpu.pipeline_mode<synchronous>, transform_indices = @transform_10, window_bounds = array<i64: 32, 32>}, {pipeline_mode = #tpu.pipeline_mode<synchronous>, transform_indices = @transform_11, window_bounds = array<i64: 16, 16>}, {transform_indices = @transform_12, window_bounds = array<i64: 1, 8, 128>}]} {
    %c0 = arith.constant 0 : index
    %c0_0 = arith.constant 0 : index
    %c0_1 = arith.constant 0 : index
    %0 = vector.load %arg1[%c0, %c0_0, %c0_1] : memref<2x16x128xf32, #tpu.memory_space<vmem>>, vector<1x16x128xf32>
    %1 = vector.shape_cast %0 : vector<1x16x128xf32> to vector<16x128xf32>
    %c1 = arith.constant 1 : index
    %c0_2 = arith.constant 0 : index
    %c0_3 = arith.constant 0 : index
    %2 = vector.load %arg1[%c1, %c0_2, %c0_3] : memref<2x16x128xf32, #tpu.memory_space<vmem>>, vector<1x16x128xf32>
    %3 = vector.shape_cast %2 : vector<1x16x128xf32> to vector<16x128xf32>
    %c0_4 = arith.constant 0 : index
    %c0_5 = arith.constant 0 : index
    %4 = vector.load %arg5[%c0_4, %c0_5] : memref<16x16xf32, #tpu.memory_space<vmem>>, vector<16x16xf32>
    %cst = arith.constant dense<0.000000e+00> : vector<16x128xf32>
    %5 = tpu.matmul %4, %1, %cst {dimension_numbers = #tpu.dot_dimension_numbers<[1], [0], [0], [1], [0, 0, 1, 1], [], []>} : vector<16x16xf32>, vector<16x128xf32>, vector<16x128xf32> -> vector<16x128xf32>
    %c5_i32 = arith.constant 5 : i32
    %6 = tpu.dynamic_rotate %5 by %c5_i32 dim 1 : vector<16x128xf32>, i32 -> vector<16x128xf32>
    %c0_6 = arith.constant 0 : index
    %c0_7 = arith.constant 0 : index
    %7 = vector.load %arg9[%c0_6, %c0_7] : memref<11x128xf32, #tpu.memory_space<vmem>>, vector<1x128xf32>
    %8 = vector.broadcast %7 : vector<1x128xf32> to vector<16x128xf32>
    %9 = arith.mulf %8, %6 : vector<16x128xf32>
    %c4_i32 = arith.constant 4 : i32
    %10 = tpu.dynamic_rotate %5 by %c4_i32 dim 1 : vector<16x128xf32>, i32 -> vector<16x128xf32>
    %c1_8 = arith.constant 1 : index
    %c0_9 = arith.constant 0 : index
    %11 = vector.load %arg9[%c1_8, %c0_9] : memref<11x128xf32, #tpu.memory_space<vmem>>, vector<1x128xf32>
    %12 = vector.broadcast %11 : vector<1x128xf32> to vector<16x128xf32>
    %13 = arith.mulf %12, %10 : vector<16x128xf32>
    %14 = arith.addf %9, %13 : vector<16x128xf32>
    %c3_i32 = arith.constant 3 : i32
    %15 = tpu.dynamic_rotate %5 by %c3_i32 dim 1 : vector<16x128xf32>, i32 -> vector<16x128xf32>
    %c2 = arith.constant 2 : index
    %c0_10 = arith.constant 0 : index
    %16 = vector.load %arg9[%c2, %c0_10] : memref<11x128xf32, #tpu.memory_space<vmem>>, vector<1x128xf32>
    %17 = vector.broadcast %16 : vector<1x128xf32> to vector<16x128xf32>
    %18 = arith.mulf %17, %15 : vector<16x128xf32>
    %19 = arith.addf %14, %18 : vector<16x128xf32>
    %c2_i32 = arith.constant 2 : i32
    %20 = tpu.dynamic_rotate %5 by %c2_i32 dim 1 : vector<16x128xf32>, i32 -> vector<16x128xf32>
    %c3 = arith.constant 3 : index
    %c0_11 = arith.constant 0 : index
    %21 = vector.load %arg9[%c3, %c0_11] : memref<11x128xf32, #tpu.memory_space<vmem>>, vector<1x128xf32>
    %22 = vector.broadcast %21 : vector<1x128xf32> to vector<16x128xf32>
    %23 = arith.mulf %22, %20 : vector<16x128xf32>
    %24 = arith.addf %19, %23 : vector<16x128xf32>
    %c1_i32 = arith.constant 1 : i32
    %25 = tpu.dynamic_rotate %5 by %c1_i32 dim 1 : vector<16x128xf32>, i32 -> vector<16x128xf32>
    %c4 = arith.constant 4 : index
    %c0_12 = arith.constant 0 : index
    %26 = vector.load %arg9[%c4, %c0_12] : memref<11x128xf32, #tpu.memory_space<vmem>>, vector<1x128xf32>
    %27 = vector.broadcast %26 : vector<1x128xf32> to vector<16x128xf32>
    %28 = arith.mulf %27, %25 : vector<16x128xf32>
    %29 = arith.addf %24, %28 : vector<16x128xf32>
    %c5 = arith.constant 5 : index
    %c0_13 = arith.constant 0 : index
    %30 = vector.load %arg9[%c5, %c0_13] : memref<11x128xf32, #tpu.memory_space<vmem>>, vector<1x128xf32>
    %31 = vector.broadcast %30 : vector<1x128xf32> to vector<16x128xf32>
    %32 = arith.mulf %31, %5 : vector<16x128xf32>
    %33 = arith.addf %29, %32 : vector<16x128xf32>
    %c127_i32 = arith.constant 127 : i32
    %34 = tpu.dynamic_rotate %5 by %c127_i32 dim 1 : vector<16x128xf32>, i32 -> vector<16x128xf32>
    %c6 = arith.constant 6 : index
    %c0_14 = arith.constant 0 : index
    %35 = vector.load %arg9[%c6, %c0_14] : memref<11x128xf32, #tpu.memory_space<vmem>>, vector<1x128xf32>
    %36 = vector.broadcast %35 : vector<1x128xf32> to vector<16x128xf32>
    %37 = arith.mulf %36, %34 : vector<16x128xf32>
    %38 = arith.addf %33, %37 : vector<16x128xf32>
    %c126_i32 = arith.constant 126 : i32
    %39 = tpu.dynamic_rotate %5 by %c126_i32 dim 1 : vector<16x128xf32>, i32 -> vector<16x128xf32>
    %c7 = arith.constant 7 : index
    %c0_15 = arith.constant 0 : index
    %40 = vector.load %arg9[%c7, %c0_15] : memref<11x128xf32, #tpu.memory_space<vmem>>, vector<1x128xf32>
    %41 = vector.broadcast %40 : vector<1x128xf32> to vector<16x128xf32>
    %42 = arith.mulf %41, %39 : vector<16x128xf32>
    %43 = arith.addf %38, %42 : vector<16x128xf32>
    %c125_i32 = arith.constant 125 : i32
    %44 = tpu.dynamic_rotate %5 by %c125_i32 dim 1 : vector<16x128xf32>, i32 -> vector<16x128xf32>
    %c8 = arith.constant 8 : index
    %c0_16 = arith.constant 0 : index
    %45 = vector.load %arg9[%c8, %c0_16] : memref<11x128xf32, #tpu.memory_space<vmem>>, vector<1x128xf32>
    %46 = vector.broadcast %45 : vector<1x128xf32> to vector<16x128xf32>
    %47 = arith.mulf %46, %44 : vector<16x128xf32>
    %48 = arith.addf %43, %47 : vector<16x128xf32>
    %c124_i32 = arith.constant 124 : i32
    %49 = tpu.dynamic_rotate %5 by %c124_i32 dim 1 : vector<16x128xf32>, i32 -> vector<16x128xf32>
    %c9 = arith.constant 9 : index
    %c0_17 = arith.constant 0 : index
    %50 = vector.load %arg9[%c9, %c0_17] : memref<11x128xf32, #tpu.memory_space<vmem>>, vector<1x128xf32>
    %51 = vector.broadcast %50 : vector<1x128xf32> to vector<16x128xf32>
    %52 = arith.mulf %51, %49 : vector<16x128xf32>
    %53 = arith.addf %48, %52 : vector<16x128xf32>
    %c123_i32 = arith.constant 123 : i32
    %54 = tpu.dynamic_rotate %5 by %c123_i32 dim 1 : vector<16x128xf32>, i32 -> vector<16x128xf32>
    %c10 = arith.constant 10 : index
    %c0_18 = arith.constant 0 : index
    %55 = vector.load %arg9[%c10, %c0_18] : memref<11x128xf32, #tpu.memory_space<vmem>>, vector<1x128xf32>
    %56 = vector.broadcast %55 : vector<1x128xf32> to vector<16x128xf32>
    %57 = arith.mulf %56, %54 : vector<16x128xf32>
    %58 = arith.addf %53, %57 : vector<16x128xf32>
    %cst_19 = arith.constant dense<0.000000e+00> : vector<16x128xf32>
    %59 = tpu.matmul %4, %3, %cst_19 {dimension_numbers = #tpu.dot_dimension_numbers<[1], [0], [0], [1], [0, 0, 1, 1], [], []>} : vector<16x16xf32>, vector<16x128xf32>, vector<16x128xf32> -> vector<16x128xf32>
    %c5_i32_20 = arith.constant 5 : i32
    %60 = tpu.dynamic_rotate %59 by %c5_i32_20 dim 1 : vector<16x128xf32>, i32 -> vector<16x128xf32>
    %c0_21 = arith.constant 0 : index
    %c0_22 = arith.constant 0 : index
    %61 = vector.load %arg9[%c0_21, %c0_22] : memref<11x128xf32, #tpu.memory_space<vmem>>, vector<1x128xf32>
    %62 = vector.broadcast %61 : vector<1x128xf32> to vector<16x128xf32>
    %63 = arith.mulf %62, %60 : vector<16x128xf32>
    %c4_i32_23 = arith.constant 4 : i32
    %64 = tpu.dynamic_rotate %59 by %c4_i32_23 dim 1 : vector<16x128xf32>, i32 -> vector<16x128xf32>
    %c1_24 = arith.constant 1 : index
    %c0_25 = arith.constant 0 : index
    %65 = vector.load %arg9[%c1_24, %c0_25] : memref<11x128xf32, #tpu.memory_space<vmem>>, vector<1x128xf32>
    %66 = vector.broadcast %65 : vector<1x128xf32> to vector<16x128xf32>
    %67 = arith.mulf %66, %64 : vector<16x128xf32>
    %68 = arith.addf %63, %67 : vector<16x128xf32>
    %c3_i32_26 = arith.constant 3 : i32
    %69 = tpu.dynamic_rotate %59 by %c3_i32_26 dim 1 : vector<16x128xf32>, i32 -> vector<16x128xf32>
    %c2_27 = arith.constant 2 : index
    %c0_28 = arith.constant 0 : index
    %70 = vector.load %arg9[%c2_27, %c0_28] : memref<11x128xf32, #tpu.memory_space<vmem>>, vector<1x128xf32>
    %71 = vector.broadcast %70 : vector<1x128xf32> to vector<16x128xf32>
    %72 = arith.mulf %71, %69 : vector<16x128xf32>
    %73 = arith.addf %68, %72 : vector<16x128xf32>
    %c2_i32_29 = arith.constant 2 : i32
    %74 = tpu.dynamic_rotate %59 by %c2_i32_29 dim 1 : vector<16x128xf32>, i32 -> vector<16x128xf32>
    %c3_30 = arith.constant 3 : index
    %c0_31 = arith.constant 0 : index
    %75 = vector.load %arg9[%c3_30, %c0_31] : memref<11x128xf32, #tpu.memory_space<vmem>>, vector<1x128xf32>
    %76 = vector.broadcast %75 : vector<1x128xf32> to vector<16x128xf32>
    %77 = arith.mulf %76, %74 : vector<16x128xf32>
    %78 = arith.addf %73, %77 : vector<16x128xf32>
    %c1_i32_32 = arith.constant 1 : i32
    %79 = tpu.dynamic_rotate %59 by %c1_i32_32 dim 1 : vector<16x128xf32>, i32 -> vector<16x128xf32>
    %c4_33 = arith.constant 4 : index
    %c0_34 = arith.constant 0 : index
    %80 = vector.load %arg9[%c4_33, %c0_34] : memref<11x128xf32, #tpu.memory_space<vmem>>, vector<1x128xf32>
    %81 = vector.broadcast %80 : vector<1x128xf32> to vector<16x128xf32>
    %82 = arith.mulf %81, %79 : vector<16x128xf32>
    %83 = arith.addf %78, %82 : vector<16x128xf32>
    %c5_35 = arith.constant 5 : index
    %c0_36 = arith.constant 0 : index
    %84 = vector.load %arg9[%c5_35, %c0_36] : memref<11x128xf32, #tpu.memory_space<vmem>>, vector<1x128xf32>
    %85 = vector.broadcast %84 : vector<1x128xf32> to vector<16x128xf32>
    %86 = arith.mulf %85, %59 : vector<16x128xf32>
    %87 = arith.addf %83, %86 : vector<16x128xf32>
    %c127_i32_37 = arith.constant 127 : i32
    %88 = tpu.dynamic_rotate %59 by %c127_i32_37 dim 1 : vector<16x128xf32>, i32 -> vector<16x128xf32>
    %c6_38 = arith.constant 6 : index
    %c0_39 = arith.constant 0 : index
    %89 = vector.load %arg9[%c6_38, %c0_39] : memref<11x128xf32, #tpu.memory_space<vmem>>, vector<1x128xf32>
    %90 = vector.broadcast %89 : vector<1x128xf32> to vector<16x128xf32>
    %91 = arith.mulf %90, %88 : vector<16x128xf32>
    %92 = arith.addf %87, %91 : vector<16x128xf32>
    %c126_i32_40 = arith.constant 126 : i32
    %93 = tpu.dynamic_rotate %59 by %c126_i32_40 dim 1 : vector<16x128xf32>, i32 -> vector<16x128xf32>
    %c7_41 = arith.constant 7 : index
    %c0_42 = arith.constant 0 : index
    %94 = vector.load %arg9[%c7_41, %c0_42] : memref<11x128xf32, #tpu.memory_space<vmem>>, vector<1x128xf32>
    %95 = vector.broadcast %94 : vector<1x128xf32> to vector<16x128xf32>
    %96 = arith.mulf %95, %93 : vector<16x128xf32>
    %97 = arith.addf %92, %96 : vector<16x128xf32>
    %c125_i32_43 = arith.constant 125 : i32
    %98 = tpu.dynamic_rotate %59 by %c125_i32_43 dim 1 : vector<16x128xf32>, i32 -> vector<16x128xf32>
    %c8_44 = arith.constant 8 : index
    %c0_45 = arith.constant 0 : index
    %99 = vector.load %arg9[%c8_44, %c0_45] : memref<11x128xf32, #tpu.memory_space<vmem>>, vector<1x128xf32>
    %100 = vector.broadcast %99 : vector<1x128xf32> to vector<16x128xf32>
    %101 = arith.mulf %100, %98 : vector<16x128xf32>
    %102 = arith.addf %97, %101 : vector<16x128xf32>
    %c124_i32_46 = arith.constant 124 : i32
    %103 = tpu.dynamic_rotate %59 by %c124_i32_46 dim 1 : vector<16x128xf32>, i32 -> vector<16x128xf32>
    %c9_47 = arith.constant 9 : index
    %c0_48 = arith.constant 0 : index
    %104 = vector.load %arg9[%c9_47, %c0_48] : memref<11x128xf32, #tpu.memory_space<vmem>>, vector<1x128xf32>
    %105 = vector.broadcast %104 : vector<1x128xf32> to vector<16x128xf32>
    %106 = arith.mulf %105, %103 : vector<16x128xf32>
    %107 = arith.addf %102, %106 : vector<16x128xf32>
    %c123_i32_49 = arith.constant 123 : i32
    %108 = tpu.dynamic_rotate %59 by %c123_i32_49 dim 1 : vector<16x128xf32>, i32 -> vector<16x128xf32>
    %c10_50 = arith.constant 10 : index
    %c0_51 = arith.constant 0 : index
    %109 = vector.load %arg9[%c10_50, %c0_51] : memref<11x128xf32, #tpu.memory_space<vmem>>, vector<1x128xf32>
    %110 = vector.broadcast %109 : vector<1x128xf32> to vector<16x128xf32>
    %111 = arith.mulf %110, %108 : vector<16x128xf32>
    %112 = arith.addf %107, %111 : vector<16x128xf32>
    %113 = arith.mulf %1, %1 : vector<16x128xf32>
    %cst_52 = arith.constant dense<0.000000e+00> : vector<16x128xf32>
    %114 = tpu.matmul %4, %113, %cst_52 {dimension_numbers = #tpu.dot_dimension_numbers<[1], [0], [0], [1], [0, 0, 1, 1], [], []>} : vector<16x16xf32>, vector<16x128xf32>, vector<16x128xf32> -> vector<16x128xf32>
    %c5_i32_53 = arith.constant 5 : i32
    %115 = tpu.dynamic_rotate %114 by %c5_i32_53 dim 1 : vector<16x128xf32>, i32 -> vector<16x128xf32>
    %c0_54 = arith.constant 0 : index
    %c0_55 = arith.constant 0 : index
    %116 = vector.load %arg9[%c0_54, %c0_55] : memref<11x128xf32, #tpu.memory_space<vmem>>, vector<1x128xf32>
    %117 = vector.broadcast %116 : vector<1x128xf32> to vector<16x128xf32>
    %118 = arith.mulf %117, %115 : vector<16x128xf32>
    %c4_i32_56 = arith.constant 4 : i32
    %119 = tpu.dynamic_rotate %114 by %c4_i32_56 dim 1 : vector<16x128xf32>, i32 -> vector<16x128xf32>
    %c1_57 = arith.constant 1 : index
    %c0_58 = arith.constant 0 : index
    %120 = vector.load %arg9[%c1_57, %c0_58] : memref<11x128xf32, #tpu.memory_space<vmem>>, vector<1x128xf32>
    %121 = vector.broadcast %120 : vector<1x128xf32> to vector<16x128xf32>
    %122 = arith.mulf %121, %119 : vector<16x128xf32>
    %123 = arith.addf %118, %122 : vector<16x128xf32>
    %c3_i32_59 = arith.constant 3 : i32
    %124 = tpu.dynamic_rotate %114 by %c3_i32_59 dim 1 : vector<16x128xf32>, i32 -> vector<16x128xf32>
    %c2_60 = arith.constant 2 : index
    %c0_61 = arith.constant 0 : index
    %125 = vector.load %arg9[%c2_60, %c0_61] : memref<11x128xf32, #tpu.memory_space<vmem>>, vector<1x128xf32>
    %126 = vector.broadcast %125 : vector<1x128xf32> to vector<16x128xf32>
    %127 = arith.mulf %126, %124 : vector<16x128xf32>
    %128 = arith.addf %123, %127 : vector<16x128xf32>
    %c2_i32_62 = arith.constant 2 : i32
    %129 = tpu.dynamic_rotate %114 by %c2_i32_62 dim 1 : vector<16x128xf32>, i32 -> vector<16x128xf32>
    %c3_63 = arith.constant 3 : index
    %c0_64 = arith.constant 0 : index
    %130 = vector.load %arg9[%c3_63, %c0_64] : memref<11x128xf32, #tpu.memory_space<vmem>>, vector<1x128xf32>
    %131 = vector.broadcast %130 : vector<1x128xf32> to vector<16x128xf32>
    %132 = arith.mulf %131, %129 : vector<16x128xf32>
    %133 = arith.addf %128, %132 : vector<16x128xf32>
    %c1_i32_65 = arith.constant 1 : i32
    %134 = tpu.dynamic_rotate %114 by %c1_i32_65 dim 1 : vector<16x128xf32>, i32 -> vector<16x128xf32>
    %c4_66 = arith.constant 4 : index
    %c0_67 = arith.constant 0 : index
    %135 = vector.load %arg9[%c4_66, %c0_67] : memref<11x128xf32, #tpu.memory_space<vmem>>, vector<1x128xf32>
    %136 = vector.broadcast %135 : vector<1x128xf32> to vector<16x128xf32>
    %137 = arith.mulf %136, %134 : vector<16x128xf32>
    %138 = arith.addf %133, %137 : vector<16x128xf32>
    %c5_68 = arith.constant 5 : index
    %c0_69 = arith.constant 0 : index
    %139 = vector.load %arg9[%c5_68, %c0_69] : memref<11x128xf32, #tpu.memory_space<vmem>>, vector<1x128xf32>
    %140 = vector.broadcast %139 : vector<1x128xf32> to vector<16x128xf32>
    %141 = arith.mulf %140, %114 : vector<16x128xf32>
    %142 = arith.addf %138, %141 : vector<16x128xf32>
    %c127_i32_70 = arith.constant 127 : i32
    %143 = tpu.dynamic_rotate %114 by %c127_i32_70 dim 1 : vector<16x128xf32>, i32 -> vector<16x128xf32>
    %c6_71 = arith.constant 6 : index
    %c0_72 = arith.constant 0 : index
    %144 = vector.load %arg9[%c6_71, %c0_72] : memref<11x128xf32, #tpu.memory_space<vmem>>, vector<1x128xf32>
    %145 = vector.broadcast %144 : vector<1x128xf32> to vector<16x128xf32>
    %146 = arith.mulf %145, %143 : vector<16x128xf32>
    %147 = arith.addf %142, %146 : vector<16x128xf32>
    %c126_i32_73 = arith.constant 126 : i32
    %148 = tpu.dynamic_rotate %114 by %c126_i32_73 dim 1 : vector<16x128xf32>, i32 -> vector<16x128xf32>
    %c7_74 = arith.constant 7 : index
    %c0_75 = arith.constant 0 : index
    %149 = vector.load %arg9[%c7_74, %c0_75] : memref<11x128xf32, #tpu.memory_space<vmem>>, vector<1x128xf32>
    %150 = vector.broadcast %149 : vector<1x128xf32> to vector<16x128xf32>
    %151 = arith.mulf %150, %148 : vector<16x128xf32>
    %152 = arith.addf %147, %151 : vector<16x128xf32>
    %c125_i32_76 = arith.constant 125 : i32
    %153 = tpu.dynamic_rotate %114 by %c125_i32_76 dim 1 : vector<16x128xf32>, i32 -> vector<16x128xf32>
    %c8_77 = arith.constant 8 : index
    %c0_78 = arith.constant 0 : index
    %154 = vector.load %arg9[%c8_77, %c0_78] : memref<11x128xf32, #tpu.memory_space<vmem>>, vector<1x128xf32>
    %155 = vector.broadcast %154 : vector<1x128xf32> to vector<16x128xf32>
    %156 = arith.mulf %155, %153 : vector<16x128xf32>
    %157 = arith.addf %152, %156 : vector<16x128xf32>
    %c124_i32_79 = arith.constant 124 : i32
    %158 = tpu.dynamic_rotate %114 by %c124_i32_79 dim 1 : vector<16x128xf32>, i32 -> vector<16x128xf32>
    %c9_80 = arith.constant 9 : index
    %c0_81 = arith.constant 0 : index
    %159 = vector.load %arg9[%c9_80, %c0_81] : memref<11x128xf32, #tpu.memory_space<vmem>>, vector<1x128xf32>
    %160 = vector.broadcast %159 : vector<1x128xf32> to vector<16x128xf32>
    %161 = arith.mulf %160, %158 : vector<16x128xf32>
    %162 = arith.addf %157, %161 : vector<16x128xf32>
    %c123_i32_82 = arith.constant 123 : i32
    %163 = tpu.dynamic_rotate %114 by %c123_i32_82 dim 1 : vector<16x128xf32>, i32 -> vector<16x128xf32>
    %c10_83 = arith.constant 10 : index
    %c0_84 = arith.constant 0 : index
    %164 = vector.load %arg9[%c10_83, %c0_84] : memref<11x128xf32, #tpu.memory_space<vmem>>, vector<1x128xf32>
    %165 = vector.broadcast %164 : vector<1x128xf32> to vector<16x128xf32>
    %166 = arith.mulf %165, %163 : vector<16x128xf32>
    %167 = arith.addf %162, %166 : vector<16x128xf32>
    %168 = arith.mulf %3, %3 : vector<16x128xf32>
    %cst_85 = arith.constant dense<0.000000e+00> : vector<16x128xf32>
    %169 = tpu.matmul %4, %168, %cst_85 {dimension_numbers = #tpu.dot_dimension_numbers<[1], [0], [0], [1], [0, 0, 1, 1], [], []>} : vector<16x16xf32>, vector<16x128xf32>, vector<16x128xf32> -> vector<16x128xf32>
    %c5_i32_86 = arith.constant 5 : i32
    %170 = tpu.dynamic_rotate %169 by %c5_i32_86 dim 1 : vector<16x128xf32>, i32 -> vector<16x128xf32>
    %c0_87 = arith.constant 0 : index
    %c0_88 = arith.constant 0 : index
    %171 = vector.load %arg9[%c0_87, %c0_88] : memref<11x128xf32, #tpu.memory_space<vmem>>, vector<1x128xf32>
    %172 = vector.broadcast %171 : vector<1x128xf32> to vector<16x128xf32>
    %173 = arith.mulf %172, %170 : vector<16x128xf32>
    %c4_i32_89 = arith.constant 4 : i32
    %174 = tpu.dynamic_rotate %169 by %c4_i32_89 dim 1 : vector<16x128xf32>, i32 -> vector<16x128xf32>
    %c1_90 = arith.constant 1 : index
    %c0_91 = arith.constant 0 : index
    %175 = vector.load %arg9[%c1_90, %c0_91] : memref<11x128xf32, #tpu.memory_space<vmem>>, vector<1x128xf32>
    %176 = vector.broadcast %175 : vector<1x128xf32> to vector<16x128xf32>
    %177 = arith.mulf %176, %174 : vector<16x128xf32>
    %178 = arith.addf %173, %177 : vector<16x128xf32>
    %c3_i32_92 = arith.constant 3 : i32
    %179 = tpu.dynamic_rotate %169 by %c3_i32_92 dim 1 : vector<16x128xf32>, i32 -> vector<16x128xf32>
    %c2_93 = arith.constant 2 : index
    %c0_94 = arith.constant 0 : index
    %180 = vector.load %arg9[%c2_93, %c0_94] : memref<11x128xf32, #tpu.memory_space<vmem>>, vector<1x128xf32>
    %181 = vector.broadcast %180 : vector<1x128xf32> to vector<16x128xf32>
    %182 = arith.mulf %181, %179 : vector<16x128xf32>
    %183 = arith.addf %178, %182 : vector<16x128xf32>
    %c2_i32_95 = arith.constant 2 : i32
    %184 = tpu.dynamic_rotate %169 by %c2_i32_95 dim 1 : vector<16x128xf32>, i32 -> vector<16x128xf32>
    %c3_96 = arith.constant 3 : index
    %c0_97 = arith.constant 0 : index
    %185 = vector.load %arg9[%c3_96, %c0_97] : memref<11x128xf32, #tpu.memory_space<vmem>>, vector<1x128xf32>
    %186 = vector.broadcast %185 : vector<1x128xf32> to vector<16x128xf32>
    %187 = arith.mulf %186, %184 : vector<16x128xf32>
    %188 = arith.addf %183, %187 : vector<16x128xf32>
    %c1_i32_98 = arith.constant 1 : i32
    %189 = tpu.dynamic_rotate %169 by %c1_i32_98 dim 1 : vector<16x128xf32>, i32 -> vector<16x128xf32>
    %c4_99 = arith.constant 4 : index
    %c0_100 = arith.constant 0 : index
    %190 = vector.load %arg9[%c4_99, %c0_100] : memref<11x128xf32, #tpu.memory_space<vmem>>, vector<1x128xf32>
    %191 = vector.broadcast %190 : vector<1x128xf32> to vector<16x128xf32>
    %192 = arith.mulf %191, %189 : vector<16x128xf32>
    %193 = arith.addf %188, %192 : vector<16x128xf32>
    %c5_101 = arith.constant 5 : index
    %c0_102 = arith.constant 0 : index
    %194 = vector.load %arg9[%c5_101, %c0_102] : memref<11x128xf32, #tpu.memory_space<vmem>>, vector<1x128xf32>
    %195 = vector.broadcast %194 : vector<1x128xf32> to vector<16x128xf32>
    %196 = arith.mulf %195, %169 : vector<16x128xf32>
    %197 = arith.addf %193, %196 : vector<16x128xf32>
    %c127_i32_103 = arith.constant 127 : i32
    %198 = tpu.dynamic_rotate %169 by %c127_i32_103 dim 1 : vector<16x128xf32>, i32 -> vector<16x128xf32>
    %c6_104 = arith.constant 6 : index
    %c0_105 = arith.constant 0 : index
    %199 = vector.load %arg9[%c6_104, %c0_105] : memref<11x128xf32, #tpu.memory_space<vmem>>, vector<1x128xf32>
    %200 = vector.broadcast %199 : vector<1x128xf32> to vector<16x128xf32>
    %201 = arith.mulf %200, %198 : vector<16x128xf32>
    %202 = arith.addf %197, %201 : vector<16x128xf32>
    %c126_i32_106 = arith.constant 126 : i32
    %203 = tpu.dynamic_rotate %169 by %c126_i32_106 dim 1 : vector<16x128xf32>, i32 -> vector<16x128xf32>
    %c7_107 = arith.constant 7 : index
    %c0_108 = arith.constant 0 : index
    %204 = vector.load %arg9[%c7_107, %c0_108] : memref<11x128xf32, #tpu.memory_space<vmem>>, vector<1x128xf32>
    %205 = vector.broadcast %204 : vector<1x128xf32> to vector<16x128xf32>
    %206 = arith.mulf %205, %203 : vector<16x128xf32>
    %207 = arith.addf %202, %206 : vector<16x128xf32>
    %c125_i32_109 = arith.constant 125 : i32
    %208 = tpu.dynamic_rotate %169 by %c125_i32_109 dim 1 : vector<16x128xf32>, i32 -> vector<16x128xf32>
    %c8_110 = arith.constant 8 : index
    %c0_111 = arith.constant 0 : index
    %209 = vector.load %arg9[%c8_110, %c0_111] : memref<11x128xf32, #tpu.memory_space<vmem>>, vector<1x128xf32>
    %210 = vector.broadcast %209 : vector<1x128xf32> to vector<16x128xf32>
    %211 = arith.mulf %210, %208 : vector<16x128xf32>
    %212 = arith.addf %207, %211 : vector<16x128xf32>
    %c124_i32_112 = arith.constant 124 : i32
    %213 = tpu.dynamic_rotate %169 by %c124_i32_112 dim 1 : vector<16x128xf32>, i32 -> vector<16x128xf32>
    %c9_113 = arith.constant 9 : index
    %c0_114 = arith.constant 0 : index
    %214 = vector.load %arg9[%c9_113, %c0_114] : memref<11x128xf32, #tpu.memory_space<vmem>>, vector<1x128xf32>
    %215 = vector.broadcast %214 : vector<1x128xf32> to vector<16x128xf32>
    %216 = arith.mulf %215, %213 : vector<16x128xf32>
    %217 = arith.addf %212, %216 : vector<16x128xf32>
    %c123_i32_115 = arith.constant 123 : i32
    %218 = tpu.dynamic_rotate %169 by %c123_i32_115 dim 1 : vector<16x128xf32>, i32 -> vector<16x128xf32>
    %c10_116 = arith.constant 10 : index
    %c0_117 = arith.constant 0 : index
    %219 = vector.load %arg9[%c10_116, %c0_117] : memref<11x128xf32, #tpu.memory_space<vmem>>, vector<1x128xf32>
    %220 = vector.broadcast %219 : vector<1x128xf32> to vector<16x128xf32>
    %221 = arith.mulf %220, %218 : vector<16x128xf32>
    %222 = arith.addf %217, %221 : vector<16x128xf32>
    %223 = arith.mulf %1, %3 : vector<16x128xf32>
    %cst_118 = arith.constant dense<0.000000e+00> : vector<16x128xf32>
    %224 = tpu.matmul %4, %223, %cst_118 {dimension_numbers = #tpu.dot_dimension_numbers<[1], [0], [0], [1], [0, 0, 1, 1], [], []>} : vector<16x16xf32>, vector<16x128xf32>, vector<16x128xf32> -> vector<16x128xf32>
    %c5_i32_119 = arith.constant 5 : i32
    %225 = tpu.dynamic_rotate %224 by %c5_i32_119 dim 1 : vector<16x128xf32>, i32 -> vector<16x128xf32>
    %c0_120 = arith.constant 0 : index
    %c0_121 = arith.constant 0 : index
    %226 = vector.load %arg9[%c0_120, %c0_121] : memref<11x128xf32, #tpu.memory_space<vmem>>, vector<1x128xf32>
    %227 = vector.broadcast %226 : vector<1x128xf32> to vector<16x128xf32>
    %228 = arith.mulf %227, %225 : vector<16x128xf32>
    %c4_i32_122 = arith.constant 4 : i32
    %229 = tpu.dynamic_rotate %224 by %c4_i32_122 dim 1 : vector<16x128xf32>, i32 -> vector<16x128xf32>
    %c1_123 = arith.constant 1 : index
    %c0_124 = arith.constant 0 : index
    %230 = vector.load %arg9[%c1_123, %c0_124] : memref<11x128xf32, #tpu.memory_space<vmem>>, vector<1x128xf32>
    %231 = vector.broadcast %230 : vector<1x128xf32> to vector<16x128xf32>
    %232 = arith.mulf %231, %229 : vector<16x128xf32>
    %233 = arith.addf %228, %232 : vector<16x128xf32>
    %c3_i32_125 = arith.constant 3 : i32
    %234 = tpu.dynamic_rotate %224 by %c3_i32_125 dim 1 : vector<16x128xf32>, i32 -> vector<16x128xf32>
    %c2_126 = arith.constant 2 : index
    %c0_127 = arith.constant 0 : index
    %235 = vector.load %arg9[%c2_126, %c0_127] : memref<11x128xf32, #tpu.memory_space<vmem>>, vector<1x128xf32>
    %236 = vector.broadcast %235 : vector<1x128xf32> to vector<16x128xf32>
    %237 = arith.mulf %236, %234 : vector<16x128xf32>
    %238 = arith.addf %233, %237 : vector<16x128xf32>
    %c2_i32_128 = arith.constant 2 : i32
    %239 = tpu.dynamic_rotate %224 by %c2_i32_128 dim 1 : vector<16x128xf32>, i32 -> vector<16x128xf32>
    %c3_129 = arith.constant 3 : index
    %c0_130 = arith.constant 0 : index
    %240 = vector.load %arg9[%c3_129, %c0_130] : memref<11x128xf32, #tpu.memory_space<vmem>>, vector<1x128xf32>
    %241 = vector.broadcast %240 : vector<1x128xf32> to vector<16x128xf32>
    %242 = arith.mulf %241, %239 : vector<16x128xf32>
    %243 = arith.addf %238, %242 : vector<16x128xf32>
    %c1_i32_131 = arith.constant 1 : i32
    %244 = tpu.dynamic_rotate %224 by %c1_i32_131 dim 1 : vector<16x128xf32>, i32 -> vector<16x128xf32>
    %c4_132 = arith.constant 4 : index
    %c0_133 = arith.constant 0 : index
    %245 = vector.load %arg9[%c4_132, %c0_133] : memref<11x128xf32, #tpu.memory_space<vmem>>, vector<1x128xf32>
    %246 = vector.broadcast %245 : vector<1x128xf32> to vector<16x128xf32>
    %247 = arith.mulf %246, %244 : vector<16x128xf32>
    %248 = arith.addf %243, %247 : vector<16x128xf32>
    %c5_134 = arith.constant 5 : index
    %c0_135 = arith.constant 0 : index
    %249 = vector.load %arg9[%c5_134, %c0_135] : memref<11x128xf32, #tpu.memory_space<vmem>>, vector<1x128xf32>
    %250 = vector.broadcast %249 : vector<1x128xf32> to vector<16x128xf32>
    %251 = arith.mulf %250, %224 : vector<16x128xf32>
    %252 = arith.addf %248, %251 : vector<16x128xf32>
    %c127_i32_136 = arith.constant 127 : i32
    %253 = tpu.dynamic_rotate %224 by %c127_i32_136 dim 1 : vector<16x128xf32>, i32 -> vector<16x128xf32>
    %c6_137 = arith.constant 6 : index
    %c0_138 = arith.constant 0 : index
    %254 = vector.load %arg9[%c6_137, %c0_138] : memref<11x128xf32, #tpu.memory_space<vmem>>, vector<1x128xf32>
    %255 = vector.broadcast %254 : vector<1x128xf32> to vector<16x128xf32>
    %256 = arith.mulf %255, %253 : vector<16x128xf32>
    %257 = arith.addf %252, %256 : vector<16x128xf32>
    %c126_i32_139 = arith.constant 126 : i32
    %258 = tpu.dynamic_rotate %224 by %c126_i32_139 dim 1 : vector<16x128xf32>, i32 -> vector<16x128xf32>
    %c7_140 = arith.constant 7 : index
    %c0_141 = arith.constant 0 : index
    %259 = vector.load %arg9[%c7_140, %c0_141] : memref<11x128xf32, #tpu.memory_space<vmem>>, vector<1x128xf32>
    %260 = vector.broadcast %259 : vector<1x128xf32> to vector<16x128xf32>
    %261 = arith.mulf %260, %258 : vector<16x128xf32>
    %262 = arith.addf %257, %261 : vector<16x128xf32>
    %c125_i32_142 = arith.constant 125 : i32
    %263 = tpu.dynamic_rotate %224 by %c125_i32_142 dim 1 : vector<16x128xf32>, i32 -> vector<16x128xf32>
    %c8_143 = arith.constant 8 : index
    %c0_144 = arith.constant 0 : index
    %264 = vector.load %arg9[%c8_143, %c0_144] : memref<11x128xf32, #tpu.memory_space<vmem>>, vector<1x128xf32>
    %265 = vector.broadcast %264 : vector<1x128xf32> to vector<16x128xf32>
    %266 = arith.mulf %265, %263 : vector<16x128xf32>
    %267 = arith.addf %262, %266 : vector<16x128xf32>
    %c124_i32_145 = arith.constant 124 : i32
    %268 = tpu.dynamic_rotate %224 by %c124_i32_145 dim 1 : vector<16x128xf32>, i32 -> vector<16x128xf32>
    %c9_146 = arith.constant 9 : index
    %c0_147 = arith.constant 0 : index
    %269 = vector.load %arg9[%c9_146, %c0_147] : memref<11x128xf32, #tpu.memory_space<vmem>>, vector<1x128xf32>
    %270 = vector.broadcast %269 : vector<1x128xf32> to vector<16x128xf32>
    %271 = arith.mulf %270, %268 : vector<16x128xf32>
    %272 = arith.addf %267, %271 : vector<16x128xf32>
    %c123_i32_148 = arith.constant 123 : i32
    %273 = tpu.dynamic_rotate %224 by %c123_i32_148 dim 1 : vector<16x128xf32>, i32 -> vector<16x128xf32>
    %c10_149 = arith.constant 10 : index
    %c0_150 = arith.constant 0 : index
    %274 = vector.load %arg9[%c10_149, %c0_150] : memref<11x128xf32, #tpu.memory_space<vmem>>, vector<1x128xf32>
    %275 = vector.broadcast %274 : vector<1x128xf32> to vector<16x128xf32>
    %276 = arith.mulf %275, %273 : vector<16x128xf32>
    %277 = arith.addf %272, %276 : vector<16x128xf32>
    %278 = arith.mulf %58, %112 : vector<16x128xf32>
    %279 = arith.mulf %58, %58 : vector<16x128xf32>
    %280 = arith.mulf %112, %112 : vector<16x128xf32>
    %cst_151 = arith.constant 2.000000e+00 : f32
    %281 = vector.broadcast %cst_151 : f32 to vector<16x128xf32>
    %282 = arith.mulf %281, %278 : vector<16x128xf32>
    %cst_152 = arith.constant 9.99999974E-5 : f32
    %283 = vector.broadcast %cst_152 : f32 to vector<16x128xf32>
    %284 = arith.addf %282, %283 : vector<16x128xf32>
    %285 = arith.subf %277, %278 : vector<16x128xf32>
    %cst_153 = arith.constant 2.000000e+00 : f32
    %286 = vector.broadcast %cst_153 : f32 to vector<16x128xf32>
    %287 = arith.mulf %286, %285 : vector<16x128xf32>
    %cst_154 = arith.constant 8.99999984E-4 : f32
    %288 = vector.broadcast %cst_154 : f32 to vector<16x128xf32>
    %289 = arith.addf %287, %288 : vector<16x128xf32>
    %290 = arith.mulf %284, %289 : vector<16x128xf32>
    %291 = arith.addf %279, %280 : vector<16x128xf32>
    %cst_155 = arith.constant 9.99999974E-5 : f32
    %292 = vector.broadcast %cst_155 : f32 to vector<16x128xf32>
    %293 = arith.addf %291, %292 : vector<16x128xf32>
    %294 = arith.subf %167, %279 : vector<16x128xf32>
    %295 = arith.subf %222, %280 : vector<16x128xf32>
    %296 = arith.addf %294, %295 : vector<16x128xf32>
    %cst_156 = arith.constant 8.99999984E-4 : f32
    %297 = vector.broadcast %cst_156 : f32 to vector<16x128xf32>
    %298 = arith.addf %296, %297 : vector<16x128xf32>
    %299 = arith.mulf %293, %298 : vector<16x128xf32>
    %300 = tpu.reciprocal %299 {approx = true} : vector<16x128xf32> -> vector<16x128xf32>
    %301 = arith.mulf %299, %300 : vector<16x128xf32>
    %cst_157 = arith.constant 2.000000e+00 : f32
    %302 = vector.broadcast %cst_157 : f32 to vector<16x128xf32>
    %303 = arith.subf %302, %301 : vector<16x128xf32>
    %304 = arith.mulf %300, %303 : vector<16x128xf32>
    %305 = arith.mulf %290, %304 : vector<16x128xf32>
    %cst_158 = arith.constant dense<0.000000e+00> : vector<16xf32>
    %306 = vector.multi_reduction <add>, %305, %cst_158 [1] : vector<16x128xf32> to vector<16xf32>
    %307 = vector.shape_cast %306 : vector<16xf32> to vector<16x1xf32>
    %cst_159 = arith.constant dense<0.000000e+00> : vector<1xf32>
    %308 = vector.multi_reduction <add>, %307, %cst_159 [0] : vector<16x1xf32> to vector<1xf32>
    %309 = vector.shape_cast %308 : vector<1xf32> to vector<1x1xf32>
    %cst_160 = arith.constant 4.8828125E-4 : f32
    %310 = vector.broadcast %cst_160 : f32 to vector<1x1xf32>
    %311 = arith.mulf %309, %310 : vector<1x1xf32>
    %c0_161 = arith.constant 0 : index
    %c0_162 = arith.constant 0 : index
    %c0_163 = arith.constant 0 : index
    %312 = vector.load %arg2[%c0_161, %c0_162, %c0_163] : memref<2x8x64xf32, #tpu.memory_space<vmem>>, vector<1x8x64xf32>
    %313 = vector.shape_cast %312 : vector<1x8x64xf32> to vector<8x64xf32>
    %c1_164 = arith.constant 1 : index
    %c0_165 = arith.constant 0 : index
    %c0_166 = arith.constant 0 : index
    %314 = vector.load %arg2[%c1_164, %c0_165, %c0_166] : memref<2x8x64xf32, #tpu.memory_space<vmem>>, vector<1x8x64xf32>
    %315 = vector.shape_cast %314 : vector<1x8x64xf32> to vector<8x64xf32>
    %c0_167 = arith.constant 0 : index
    %c0_168 = arith.constant 0 : index
    %316 = vector.load %arg6[%c0_167, %c0_168] : memref<8x8xf32, #tpu.memory_space<vmem>>, vector<8x8xf32>
    %cst_169 = arith.constant dense<0.000000e+00> : vector<8x64xf32>
    %317 = tpu.matmul %316, %313, %cst_169 {dimension_numbers = #tpu.dot_dimension_numbers<[1], [0], [0], [1], [0, 0, 1, 1], [], []>} : vector<8x8xf32>, vector<8x64xf32>, vector<8x64xf32> -> vector<8x64xf32>
    %c0_170 = arith.constant 0 : index
    %c0_171 = arith.constant 0 : index
    %318 = vector.load %arg10[%c0_170, %c0_171] : memref<64x64xf32, #tpu.memory_space<vmem>>, vector<64x64xf32>
    %cst_172 = arith.constant dense<0.000000e+00> : vector<8x64xf32>
    %319 = tpu.matmul %317, %318, %cst_172 {dimension_numbers = #tpu.dot_dimension_numbers<[1], [0], [0], [1], [0, 0, 1, 1], [], []>} : vector<8x64xf32>, vector<64x64xf32>, vector<8x64xf32> -> vector<8x64xf32>
    %cst_173 = arith.constant dense<0.000000e+00> : vector<8x64xf32>
    %320 = tpu.matmul %316, %315, %cst_173 {dimension_numbers = #tpu.dot_dimension_numbers<[1], [0], [0], [1], [0, 0, 1, 1], [], []>} : vector<8x8xf32>, vector<8x64xf32>, vector<8x64xf32> -> vector<8x64xf32>
    %c0_174 = arith.constant 0 : index
    %c0_175 = arith.constant 0 : index
    %321 = vector.load %arg10[%c0_174, %c0_175] : memref<64x64xf32, #tpu.memory_space<vmem>>, vector<64x64xf32>
    %cst_176 = arith.constant dense<0.000000e+00> : vector<8x64xf32>
    %322 = tpu.matmul %320, %321, %cst_176 {dimension_numbers = #tpu.dot_dimension_numbers<[1], [0], [0], [1], [0, 0, 1, 1], [], []>} : vector<8x64xf32>, vector<64x64xf32>, vector<8x64xf32> -> vector<8x64xf32>
    %323 = arith.mulf %313, %313 : vector<8x64xf32>
    %cst_177 = arith.constant dense<0.000000e+00> : vector<8x64xf32>
    %324 = tpu.matmul %316, %323, %cst_177 {dimension_numbers = #tpu.dot_dimension_numbers<[1], [0], [0], [1], [0, 0, 1, 1], [], []>} : vector<8x8xf32>, vector<8x64xf32>, vector<8x64xf32> -> vector<8x64xf32>
    %c0_178 = arith.constant 0 : index
    %c0_179 = arith.constant 0 : index
    %325 = vector.load %arg10[%c0_178, %c0_179] : memref<64x64xf32, #tpu.memory_space<vmem>>, vector<64x64xf32>
    %cst_180 = arith.constant dense<0.000000e+00> : vector<8x64xf32>
    %326 = tpu.matmul %324, %325, %cst_180 {dimension_numbers = #tpu.dot_dimension_numbers<[1], [0], [0], [1], [0, 0, 1, 1], [], []>} : vector<8x64xf32>, vector<64x64xf32>, vector<8x64xf32> -> vector<8x64xf32>
    %327 = arith.mulf %315, %315 : vector<8x64xf32>
    %cst_181 = arith.constant dense<0.000000e+00> : vector<8x64xf32>
    %328 = tpu.matmul %316, %327, %cst_181 {dimension_numbers = #tpu.dot_dimension_numbers<[1], [0], [0], [1], [0, 0, 1, 1], [], []>} : vector<8x8xf32>, vector<8x64xf32>, vector<8x64xf32> -> vector<8x64xf32>
    %c0_182 = arith.constant 0 : index
    %c0_183 = arith.constant 0 : index
    %329 = vector.load %arg10[%c0_182, %c0_183] : memref<64x64xf32, #tpu.memory_space<vmem>>, vector<64x64xf32>
    %cst_184 = arith.constant dense<0.000000e+00> : vector<8x64xf32>
    %330 = tpu.matmul %328, %329, %cst_184 {dimension_numbers = #tpu.dot_dimension_numbers<[1], [0], [0], [1], [0, 0, 1, 1], [], []>} : vector<8x64xf32>, vector<64x64xf32>, vector<8x64xf32> -> vector<8x64xf32>
    %331 = arith.mulf %313, %315 : vector<8x64xf32>
    %cst_185 = arith.constant dense<0.000000e+00> : vector<8x64xf32>
    %332 = tpu.matmul %316, %331, %cst_185 {dimension_numbers = #tpu.dot_dimension_numbers<[1], [0], [0], [1], [0, 0, 1, 1], [], []>} : vector<8x8xf32>, vector<8x64xf32>, vector<8x64xf32> -> vector<8x64xf32>
    %c0_186 = arith.constant 0 : index
    %c0_187 = arith.constant 0 : index
    %333 = vector.load %arg10[%c0_186, %c0_187] : memref<64x64xf32, #tpu.memory_space<vmem>>, vector<64x64xf32>
    %cst_188 = arith.constant dense<0.000000e+00> : vector<8x64xf32>
    %334 = tpu.matmul %332, %333, %cst_188 {dimension_numbers = #tpu.dot_dimension_numbers<[1], [0], [0], [1], [0, 0, 1, 1], [], []>} : vector<8x64xf32>, vector<64x64xf32>, vector<8x64xf32> -> vector<8x64xf32>
    %335 = arith.mulf %319, %322 : vector<8x64xf32>
    %336 = arith.mulf %319, %319 : vector<8x64xf32>
    %337 = arith.mulf %322, %322 : vector<8x64xf32>
    %cst_189 = arith.constant 2.000000e+00 : f32
    %338 = vector.broadcast %cst_189 : f32 to vector<8x64xf32>
    %339 = arith.mulf %338, %335 : vector<8x64xf32>
    %cst_190 = arith.constant 9.99999974E-5 : f32
    %340 = vector.broadcast %cst_190 : f32 to vector<8x64xf32>
    %341 = arith.addf %339, %340 : vector<8x64xf32>
    %342 = arith.subf %334, %335 : vector<8x64xf32>
    %cst_191 = arith.constant 2.000000e+00 : f32
    %343 = vector.broadcast %cst_191 : f32 to vector<8x64xf32>
    %344 = arith.mulf %343, %342 : vector<8x64xf32>
    %cst_192 = arith.constant 8.99999984E-4 : f32
    %345 = vector.broadcast %cst_192 : f32 to vector<8x64xf32>
    %346 = arith.addf %344, %345 : vector<8x64xf32>
    %347 = arith.mulf %341, %346 : vector<8x64xf32>
    %348 = arith.addf %336, %337 : vector<8x64xf32>
    %cst_193 = arith.constant 9.99999974E-5 : f32
    %349 = vector.broadcast %cst_193 : f32 to vector<8x64xf32>
    %350 = arith.addf %348, %349 : vector<8x64xf32>
    %351 = arith.subf %326, %336 : vector<8x64xf32>
    %352 = arith.subf %330, %337 : vector<8x64xf32>
    %353 = arith.addf %351, %352 : vector<8x64xf32>
    %cst_194 = arith.constant 8.99999984E-4 : f32
    %354 = vector.broadcast %cst_194 : f32 to vector<8x64xf32>
    %355 = arith.addf %353, %354 : vector<8x64xf32>
    %356 = arith.mulf %350, %355 : vector<8x64xf32>
    %357 = tpu.reciprocal %356 {approx = true} : vector<8x64xf32> -> vector<8x64xf32>
    %358 = arith.mulf %356, %357 : vector<8x64xf32>
    %cst_195 = arith.constant 2.000000e+00 : f32
    %359 = vector.broadcast %cst_195 : f32 to vector<8x64xf32>
    %360 = arith.subf %359, %358 : vector<8x64xf32>
    %361 = arith.mulf %357, %360 : vector<8x64xf32>
    %362 = arith.mulf %347, %361 : vector<8x64xf32>
    %cst_196 = arith.constant dense<0.000000e+00> : vector<8xf32>
    %363 = vector.multi_reduction <add>, %362, %cst_196 [1] : vector<8x64xf32> to vector<8xf32>
    %364 = vector.shape_cast %363 : vector<8xf32> to vector<8x1xf32>
    %cst_197 = arith.constant dense<0.000000e+00> : vector<1xf32>
    %365 = vector.multi_reduction <add>, %364, %cst_197 [0] : vector<8x1xf32> to vector<1xf32>
    %366 = vector.shape_cast %365 : vector<1xf32> to vector<1x1xf32>
    %cst_198 = arith.constant 0.001953125 : f32
    %367 = vector.broadcast %cst_198 : f32 to vector<1x1xf32>
    %368 = arith.mulf %366, %367 : vector<1x1xf32>
    %369 = arith.addf %311, %368 : vector<1x1xf32>
    %370 = vector.shape_cast %369 : vector<1x1xf32> to vector<1x1xf32>
    %371 = vector.broadcast %370 : vector<1x1xf32> to vector<8x128xf32>
    %c0_199 = arith.constant 0 : index
    %c0_200 = arith.constant 0 : index
    %c0_201 = arith.constant 0 : index
    %372 = vector.load %arg13[%c0_199, %c0_200, %c0_201] : memref<1x8x128xf32, #tpu.memory_space<vmem>>, vector<1x8x128xf32>
    %373 = vector.shape_cast %372 : vector<1x8x128xf32> to vector<8x128xf32>
    %374 = vector.shape_cast %371 : vector<8x128xf32> to vector<1x8x128xf32>
    tpu.vector_store %arg13[%c0_199, %c0_200, %c0_201], %374 {strides = array<i32>} : memref<1x8x128xf32, #tpu.memory_space<vmem>>, vector<1x8x128xf32>,
    %c0_i32 = arith.constant 0 : i32
    %375 = arith.cmpi eq, %arg0, %c0_i32 : i32
    %376 = arith.extui %375 : i1 to i32
    %c0_i32_202 = arith.constant 0 : i32
    %377 = arith.cmpi ne, %376, %c0_i32_202 : i32
    scf.if %377 {
      %c0_203 = arith.constant 0 : index
      %c0_204 = arith.constant 0 : index
      %c0_205 = arith.constant 0 : index
      %378 = vector.load %arg3[%c0_203, %c0_204, %c0_205] : memref<2x4x32xf32, #tpu.memory_space<vmem>>, vector<1x4x32xf32>
      %379 = vector.shape_cast %378 : vector<1x4x32xf32> to vector<4x32xf32>
      %c1_206 = arith.constant 1 : index
      %c0_207 = arith.constant 0 : index
      %c0_208 = arith.constant 0 : index
      %380 = vector.load %arg3[%c1_206, %c0_207, %c0_208] : memref<2x4x32xf32, #tpu.memory_space<vmem>>, vector<1x4x32xf32>
      %381 = vector.shape_cast %380 : vector<1x4x32xf32> to vector<4x32xf32>
      %c0_209 = arith.constant 0 : index
      %c0_210 = arith.constant 0 : index
      %382 = vector.load %arg7[%c0_209, %c0_210] : memref<4x4xf32, #tpu.memory_space<vmem>>, vector<4x4xf32>
      %cst_211 = arith.constant dense<0.000000e+00> : vector<4x32xf32>
      %383 = tpu.matmul %382, %379, %cst_211 {dimension_numbers = #tpu.dot_dimension_numbers<[1], [0], [0], [1], [0, 0, 1, 1], [], []>} : vector<4x4xf32>, vector<4x32xf32>, vector<4x32xf32> -> vector<4x32xf32>
      %c0_212 = arith.constant 0 : index
      %c0_213 = arith.constant 0 : index
      %384 = vector.load %arg11[%c0_212, %c0_213] : memref<32x32xf32, #tpu.memory_space<vmem>>, vector<32x32xf32>
      %cst_214 = arith.constant dense<0.000000e+00> : vector<4x32xf32>
      %385 = tpu.matmul %383, %384, %cst_214 {dimension_numbers = #tpu.dot_dimension_numbers<[1], [0], [0], [1], [0, 0, 1, 1], [], []>} : vector<4x32xf32>, vector<32x32xf32>, vector<4x32xf32> -> vector<4x32xf32>
      %cst_215 = arith.constant dense<0.000000e+00> : vector<4x32xf32>
      %386 = tpu.matmul %382, %381, %cst_215 {dimension_numbers = #tpu.dot_dimension_numbers<[1], [0], [0], [1], [0, 0, 1, 1], [], []>} : vector<4x4xf32>, vector<4x32xf32>, vector<4x32xf32> -> vector<4x32xf32>
      %c0_216 = arith.constant 0 : index
      %c0_217 = arith.constant 0 : index
      %387 = vector.load %arg11[%c0_216, %c0_217] : memref<32x32xf32, #tpu.memory_space<vmem>>, vector<32x32xf32>
      %cst_218 = arith.constant dense<0.000000e+00> : vector<4x32xf32>
      %388 = tpu.matmul %386, %387, %cst_218 {dimension_numbers = #tpu.dot_dimension_numbers<[1], [0], [0], [1], [0, 0, 1, 1], [], []>} : vector<4x32xf32>, vector<32x32xf32>, vector<4x32xf32> -> vector<4x32xf32>
      %389 = arith.mulf %379, %379 : vector<4x32xf32>
      %cst_219 = arith.constant dense<0.000000e+00> : vector<4x32xf32>
      %390 = tpu.matmul %382, %389, %cst_219 {dimension_numbers = #tpu.dot_dimension_numbers<[1], [0], [0], [1], [0, 0, 1, 1], [], []>} : vector<4x4xf32>, vector<4x32xf32>, vector<4x32xf32> -> vector<4x32xf32>
      %c0_220 = arith.constant 0 : index
      %c0_221 = arith.constant 0 : index
      %391 = vector.load %arg11[%c0_220, %c0_221] : memref<32x32xf32, #tpu.memory_space<vmem>>, vector<32x32xf32>
      %cst_222 = arith.constant dense<0.000000e+00> : vector<4x32xf32>
      %392 = tpu.matmul %390, %391, %cst_222 {dimension_numbers = #tpu.dot_dimension_numbers<[1], [0], [0], [1], [0, 0, 1, 1], [], []>} : vector<4x32xf32>, vector<32x32xf32>, vector<4x32xf32> -> vector<4x32xf32>
      %393 = arith.mulf %381, %381 : vector<4x32xf32>
      %cst_223 = arith.constant dense<0.000000e+00> : vector<4x32xf32>
      %394 = tpu.matmul %382, %393, %cst_223 {dimension_numbers = #tpu.dot_dimension_numbers<[1], [0], [0], [1], [0, 0, 1, 1], [], []>} : vector<4x4xf32>, vector<4x32xf32>, vector<4x32xf32> -> vector<4x32xf32>
      %c0_224 = arith.constant 0 : index
      %c0_225 = arith.constant 0 : index
      %395 = vector.load %arg11[%c0_224, %c0_225] : memref<32x32xf32, #tpu.memory_space<vmem>>, vector<32x32xf32>
      %cst_226 = arith.constant dense<0.000000e+00> : vector<4x32xf32>
      %396 = tpu.matmul %394, %395, %cst_226 {dimension_numbers = #tpu.dot_dimension_numbers<[1], [0], [0], [1], [0, 0, 1, 1], [], []>} : vector<4x32xf32>, vector<32x32xf32>, vector<4x32xf32> -> vector<4x32xf32>
      %397 = arith.mulf %379, %381 : vector<4x32xf32>
      %cst_227 = arith.constant dense<0.000000e+00> : vector<4x32xf32>
      %398 = tpu.matmul %382, %397, %cst_227 {dimension_numbers = #tpu.dot_dimension_numbers<[1], [0], [0], [1], [0, 0, 1, 1], [], []>} : vector<4x4xf32>, vector<4x32xf32>, vector<4x32xf32> -> vector<4x32xf32>
      %c0_228 = arith.constant 0 : index
      %c0_229 = arith.constant 0 : index
      %399 = vector.load %arg11[%c0_228, %c0_229] : memref<32x32xf32, #tpu.memory_space<vmem>>, vector<32x32xf32>
      %cst_230 = arith.constant dense<0.000000e+00> : vector<4x32xf32>
      %400 = tpu.matmul %398, %399, %cst_230 {dimension_numbers = #tpu.dot_dimension_numbers<[1], [0], [0], [1], [0, 0, 1, 1], [], []>} : vector<4x32xf32>, vector<32x32xf32>, vector<4x32xf32> -> vector<4x32xf32>
      %401 = arith.mulf %385, %388 : vector<4x32xf32>
      %402 = arith.mulf %385, %385 : vector<4x32xf32>
      %403 = arith.mulf %388, %388 : vector<4x32xf32>
      %cst_231 = arith.constant 2.000000e+00 : f32
      %404 = vector.broadcast %cst_231 : f32 to vector<4x32xf32>
      %405 = arith.mulf %404, %401 : vector<4x32xf32>
      %cst_232 = arith.constant 9.99999974E-5 : f32
      %406 = vector.broadcast %cst_232 : f32 to vector<4x32xf32>
      %407 = arith.addf %405, %406 : vector<4x32xf32>
      %408 = arith.subf %400, %401 : vector<4x32xf32>
      %cst_233 = arith.constant 2.000000e+00 : f32
      %409 = vector.broadcast %cst_233 : f32 to vector<4x32xf32>
      %410 = arith.mulf %409, %408 : vector<4x32xf32>
      %cst_234 = arith.constant 8.99999984E-4 : f32
      %411 = vector.broadcast %cst_234 : f32 to vector<4x32xf32>
      %412 = arith.addf %410, %411 : vector<4x32xf32>
      %413 = arith.mulf %407, %412 : vector<4x32xf32>
      %414 = arith.addf %402, %403 : vector<4x32xf32>
      %cst_235 = arith.constant 9.99999974E-5 : f32
      %415 = vector.broadcast %cst_235 : f32 to vector<4x32xf32>
      %416 = arith.addf %414, %415 : vector<4x32xf32>
      %417 = arith.subf %392, %402 : vector<4x32xf32>
      %418 = arith.subf %396, %403 : vector<4x32xf32>
      %419 = arith.addf %417, %418 : vector<4x32xf32>
      %cst_236 = arith.constant 8.99999984E-4 : f32
      %420 = vector.broadcast %cst_236 : f32 to vector<4x32xf32>
      %421 = arith.addf %419, %420 : vector<4x32xf32>
      %422 = arith.mulf %416, %421 : vector<4x32xf32>
      %423 = tpu.reciprocal %422 {approx = true} : vector<4x32xf32> -> vector<4x32xf32>
      %424 = arith.mulf %422, %423 : vector<4x32xf32>
      %cst_237 = arith.constant 2.000000e+00 : f32
      %425 = vector.broadcast %cst_237 : f32 to vector<4x32xf32>
      %426 = arith.subf %425, %424 : vector<4x32xf32>
      %427 = arith.mulf %423, %426 : vector<4x32xf32>
      %428 = arith.mulf %413, %427 : vector<4x32xf32>
      %cst_238 = arith.constant dense<0.000000e+00> : vector<4xf32>
      %429 = vector.multi_reduction <add>, %428, %cst_238 [1] : vector<4x32xf32> to vector<4xf32>
      %430 = vector.shape_cast %429 : vector<4xf32> to vector<4x1xf32>
      %cst_239 = arith.constant dense<0.000000e+00> : vector<1xf32>
      %431 = vector.multi_reduction <add>, %430, %cst_239 [0] : vector<4x1xf32> to vector<1xf32>
      %432 = vector.shape_cast %431 : vector<1xf32> to vector<1x1xf32>
      %cst_240 = arith.constant 7.812500e-03 : f32
      %433 = vector.broadcast %cst_240 : f32 to vector<1x1xf32>
      %434 = arith.mulf %432, %433 : vector<1x1xf32>
      %c0_241 = arith.constant 0 : index
      %c0_242 = arith.constant 0 : index
      %c0_243 = arith.constant 0 : index
      %435 = vector.load %arg4[%c0_241, %c0_242, %c0_243] : memref<2x2x16xf32, #tpu.memory_space<vmem>>, vector<1x2x16xf32>
      %436 = vector.shape_cast %435 : vector<1x2x16xf32> to vector<2x16xf32>
      %c1_244 = arith.constant 1 : index
      %c0_245 = arith.constant 0 : index
      %c0_246 = arith.constant 0 : index
      %437 = vector.load %arg4[%c1_244, %c0_245, %c0_246] : memref<2x2x16xf32, #tpu.memory_space<vmem>>, vector<1x2x16xf32>
      %438 = vector.shape_cast %437 : vector<1x2x16xf32> to vector<2x16xf32>
      %c0_247 = arith.constant 0 : index
      %c0_248 = arith.constant 0 : index
      %439 = vector.load %arg8[%c0_247, %c0_248] : memref<2x2xf32, #tpu.memory_space<vmem>>, vector<2x2xf32>
      %cst_249 = arith.constant dense<0.000000e+00> : vector<2x16xf32>
      %440 = tpu.matmul %439, %436, %cst_249 {dimension_numbers = #tpu.dot_dimension_numbers<[1], [0], [0], [1], [0, 0, 1, 1], [], []>} : vector<2x2xf32>, vector<2x16xf32>, vector<2x16xf32> -> vector<2x16xf32>
      %c0_250 = arith.constant 0 : index
      %c0_251 = arith.constant 0 : index
      %441 = vector.load %arg12[%c0_250, %c0_251] : memref<16x16xf32, #tpu.memory_space<vmem>>, vector<16x16xf32>
      %cst_252 = arith.constant dense<0.000000e+00> : vector<2x16xf32>
      %442 = tpu.matmul %440, %441, %cst_252 {dimension_numbers = #tpu.dot_dimension_numbers<[1], [0], [0], [1], [0, 0, 1, 1], [], []>} : vector<2x16xf32>, vector<16x16xf32>, vector<2x16xf32> -> vector<2x16xf32>
      %cst_253 = arith.constant dense<0.000000e+00> : vector<2x16xf32>
      %443 = tpu.matmul %439, %438, %cst_253 {dimension_numbers = #tpu.dot_dimension_numbers<[1], [0], [0], [1], [0, 0, 1, 1], [], []>} : vector<2x2xf32>, vector<2x16xf32>, vector<2x16xf32> -> vector<2x16xf32>
      %c0_254 = arith.constant 0 : index
      %c0_255 = arith.constant 0 : index
      %444 = vector.load %arg12[%c0_254, %c0_255] : memref<16x16xf32, #tpu.memory_space<vmem>>, vector<16x16xf32>
      %cst_256 = arith.constant dense<0.000000e+00> : vector<2x16xf32>
      %445 = tpu.matmul %443, %444, %cst_256 {dimension_numbers = #tpu.dot_dimension_numbers<[1], [0], [0], [1], [0, 0, 1, 1], [], []>} : vector<2x16xf32>, vector<16x16xf32>, vector<2x16xf32> -> vector<2x16xf32>
      %446 = arith.mulf %436, %436 : vector<2x16xf32>
      %cst_257 = arith.constant dense<0.000000e+00> : vector<2x16xf32>
      %447 = tpu.matmul %439, %446, %cst_257 {dimension_numbers = #tpu.dot_dimension_numbers<[1], [0], [0], [1], [0, 0, 1, 1], [], []>} : vector<2x2xf32>, vector<2x16xf32>, vector<2x16xf32> -> vector<2x16xf32>
      %c0_258 = arith.constant 0 : index
      %c0_259 = arith.constant 0 : index
      %448 = vector.load %arg12[%c0_258, %c0_259] : memref<16x16xf32, #tpu.memory_space<vmem>>, vector<16x16xf32>
      %cst_260 = arith.constant dense<0.000000e+00> : vector<2x16xf32>
      %449 = tpu.matmul %447, %448, %cst_260 {dimension_numbers = #tpu.dot_dimension_numbers<[1], [0], [0], [1], [0, 0, 1, 1], [], []>} : vector<2x16xf32>, vector<16x16xf32>, vector<2x16xf32> -> vector<2x16xf32>
      %450 = arith.mulf %438, %438 : vector<2x16xf32>
      %cst_261 = arith.constant dense<0.000000e+00> : vector<2x16xf32>
      %451 = tpu.matmul %439, %450, %cst_261 {dimension_numbers = #tpu.dot_dimension_numbers<[1], [0], [0], [1], [0, 0, 1, 1], [], []>} : vector<2x2xf32>, vector<2x16xf32>, vector<2x16xf32> -> vector<2x16xf32>
      %c0_262 = arith.constant 0 : index
      %c0_263 = arith.constant 0 : index
      %452 = vector.load %arg12[%c0_262, %c0_263] : memref<16x16xf32, #tpu.memory_space<vmem>>, vector<16x16xf32>
      %cst_264 = arith.constant dense<0.000000e+00> : vector<2x16xf32>
      %453 = tpu.matmul %451, %452, %cst_264 {dimension_numbers = #tpu.dot_dimension_numbers<[1], [0], [0], [1], [0, 0, 1, 1], [], []>} : vector<2x16xf32>, vector<16x16xf32>, vector<2x16xf32> -> vector<2x16xf32>
      %454 = arith.mulf %436, %438 : vector<2x16xf32>
      %cst_265 = arith.constant dense<0.000000e+00> : vector<2x16xf32>
      %455 = tpu.matmul %439, %454, %cst_265 {dimension_numbers = #tpu.dot_dimension_numbers<[1], [0], [0], [1], [0, 0, 1, 1], [], []>} : vector<2x2xf32>, vector<2x16xf32>, vector<2x16xf32> -> vector<2x16xf32>
      %c0_266 = arith.constant 0 : index
      %c0_267 = arith.constant 0 : index
      %456 = vector.load %arg12[%c0_266, %c0_267] : memref<16x16xf32, #tpu.memory_space<vmem>>, vector<16x16xf32>
      %cst_268 = arith.constant dense<0.000000e+00> : vector<2x16xf32>
      %457 = tpu.matmul %455, %456, %cst_268 {dimension_numbers = #tpu.dot_dimension_numbers<[1], [0], [0], [1], [0, 0, 1, 1], [], []>} : vector<2x16xf32>, vector<16x16xf32>, vector<2x16xf32> -> vector<2x16xf32>
      %458 = arith.mulf %442, %445 : vector<2x16xf32>
      %459 = arith.mulf %442, %442 : vector<2x16xf32>
      %460 = arith.mulf %445, %445 : vector<2x16xf32>
      %cst_269 = arith.constant 2.000000e+00 : f32
      %461 = vector.broadcast %cst_269 : f32 to vector<2x16xf32>
      %462 = arith.mulf %461, %458 : vector<2x16xf32>
      %cst_270 = arith.constant 9.99999974E-5 : f32
      %463 = vector.broadcast %cst_270 : f32 to vector<2x16xf32>
      %464 = arith.addf %462, %463 : vector<2x16xf32>
      %465 = arith.subf %457, %458 : vector<2x16xf32>
      %cst_271 = arith.constant 2.000000e+00 : f32
      %466 = vector.broadcast %cst_271 : f32 to vector<2x16xf32>
      %467 = arith.mulf %466, %465 : vector<2x16xf32>
      %cst_272 = arith.constant 8.99999984E-4 : f32
      %468 = vector.broadcast %cst_272 : f32 to vector<2x16xf32>
      %469 = arith.addf %467, %468 : vector<2x16xf32>
      %470 = arith.mulf %464, %469 : vector<2x16xf32>
      %471 = arith.addf %459, %460 : vector<2x16xf32>
      %cst_273 = arith.constant 9.99999974E-5 : f32
      %472 = vector.broadcast %cst_273 : f32 to vector<2x16xf32>
      %473 = arith.addf %471, %472 : vector<2x16xf32>
      %474 = arith.subf %449, %459 : vector<2x16xf32>
      %475 = arith.subf %453, %460 : vector<2x16xf32>
      %476 = arith.addf %474, %475 : vector<2x16xf32>
      %cst_274 = arith.constant 8.99999984E-4 : f32
      %477 = vector.broadcast %cst_274 : f32 to vector<2x16xf32>
      %478 = arith.addf %476, %477 : vector<2x16xf32>
      %479 = arith.mulf %473, %478 : vector<2x16xf32>
      %480 = tpu.reciprocal %479 {approx = true} : vector<2x16xf32> -> vector<2x16xf32>
      %481 = arith.mulf %479, %480 : vector<2x16xf32>
      %cst_275 = arith.constant 2.000000e+00 : f32
      %482 = vector.broadcast %cst_275 : f32 to vector<2x16xf32>
      %483 = arith.subf %482, %481 : vector<2x16xf32>
      %484 = arith.mulf %480, %483 : vector<2x16xf32>
      %485 = arith.mulf %470, %484 : vector<2x16xf32>
      %cst_276 = arith.constant dense<0.000000e+00> : vector<2xf32>
      %486 = vector.multi_reduction <add>, %485, %cst_276 [1] : vector<2x16xf32> to vector<2xf32>
      %487 = vector.shape_cast %486 : vector<2xf32> to vector<2x1xf32>
      %cst_277 = arith.constant dense<0.000000e+00> : vector<1xf32>
      %488 = vector.multi_reduction <add>, %487, %cst_277 [0] : vector<2x1xf32> to vector<1xf32>
      %489 = vector.shape_cast %488 : vector<1xf32> to vector<1x1xf32>
      %cst_278 = arith.constant 3.125000e-02 : f32
      %490 = vector.broadcast %cst_278 : f32 to vector<1x1xf32>
      %491 = arith.mulf %489, %490 : vector<1x1xf32>
      %492 = arith.addf %434, %491 : vector<1x1xf32>
      %c0_279 = arith.constant 0 : index
      %c0_280 = arith.constant 0 : index
      %c0_281 = arith.constant 0 : index
      %493 = vector.load %arg13[%c0_279, %c0_280, %c0_281] : memref<1x8x128xf32, #tpu.memory_space<vmem>>, vector<1x8x128xf32>
      %494 = vector.shape_cast %493 : vector<1x8x128xf32> to vector<8x128xf32>
      %495 = vector.shape_cast %492 : vector<1x1xf32> to vector<1x1xf32>
      %496 = vector.broadcast %495 : vector<1x1xf32> to vector<8x128xf32>
      %497 = arith.addf %494, %496 : vector<8x128xf32>
      %c0_282 = arith.constant 0 : index
      %c0_283 = arith.constant 0 : index
      %c0_284 = arith.constant 0 : index
      %498 = vector.load %arg13[%c0_282, %c0_283, %c0_284] : memref<1x8x128xf32, #tpu.memory_space<vmem>>, vector<1x8x128xf32>
      %499 = vector.shape_cast %498 : vector<1x8x128xf32> to vector<8x128xf32>
      %500 = vector.shape_cast %497 : vector<8x128xf32> to vector<1x8x128xf32>
      tpu.vector_store %arg13[%c0_282, %c0_283, %c0_284], %500 {strides = array<i32>} : memref<1x8x128xf32, #tpu.memory_space<vmem>>, vector<1x8x128xf32>,
    } else {
    }
    return
  }
  func.func @transform_0(%arg0: i32) -> (i32, i32, i32) {
    %c0_i32 = arith.constant 0 : i32
    %c0_i32_0 = arith.constant 0 : i32
    %c0_i32_1 = arith.constant 0 : i32
    return %c0_i32, %c0_i32_0, %arg0 : i32, i32, i32
  }
  func.func @transform_1(%arg0: i32) -> (i32, i32, i32) {
    %c0_i32 = arith.constant 0 : i32
    %c0_i32_0 = arith.constant 0 : i32
    %c0_i32_1 = arith.constant 0 : i32
    return %c0_i32, %c0_i32_0, %arg0 : i32, i32, i32
  }
  func.func @transform_2(%arg0: i32) -> (i32, i32, i32) {
    %c0_i32 = arith.constant 0 : i32
    %c0_i32_0 = arith.constant 0 : i32
    %c0_i32_1 = arith.constant 0 : i32
    %c0_i32_2 = arith.constant 0 : i32
    return %c0_i32, %c0_i32_0, %c0_i32_1 : i32, i32, i32
  }
  func.func @transform_3(%arg0: i32) -> (i32, i32, i32) {
    %c0_i32 = arith.constant 0 : i32
    %c0_i32_0 = arith.constant 0 : i32
    %c0_i32_1 = arith.constant 0 : i32
    %c0_i32_2 = arith.constant 0 : i32
    return %c0_i32, %c0_i32_0, %c0_i32_1 : i32, i32, i32
  }
  func.func @transform_4(%arg0: i32) -> (i32, i32) {
    %c0_i32 = arith.constant 0 : i32
    %c0_i32_0 = arith.constant 0 : i32
    %c0_i32_1 = arith.constant 0 : i32
    return %c0_i32, %c0_i32_0 : i32, i32
  }
  func.func @transform_5(%arg0: i32) -> (i32, i32) {
    %c0_i32 = arith.constant 0 : i32
    %c0_i32_0 = arith.constant 0 : i32
    %c0_i32_1 = arith.constant 0 : i32
    return %c0_i32, %c0_i32_0 : i32, i32
  }
  func.func @transform_6(%arg0: i32) -> (i32, i32) {
    %c0_i32 = arith.constant 0 : i32
    %c0_i32_0 = arith.constant 0 : i32
    %c0_i32_1 = arith.constant 0 : i32
    return %c0_i32, %c0_i32_0 : i32, i32
  }
  func.func @transform_7(%arg0: i32) -> (i32, i32) {
    %c0_i32 = arith.constant 0 : i32
    %c0_i32_0 = arith.constant 0 : i32
    %c0_i32_1 = arith.constant 0 : i32
    return %c0_i32, %c0_i32_0 : i32, i32
  }
  func.func @transform_8(%arg0: i32) -> (i32, i32) {
    %c0_i32 = arith.constant 0 : i32
    %c0_i32_0 = arith.constant 0 : i32
    %c0_i32_1 = arith.constant 0 : i32
    return %c0_i32, %c0_i32_0 : i32, i32
  }
  func.func @transform_9(%arg0: i32) -> (i32, i32) {
    %c0_i32 = arith.constant 0 : i32
    %c0_i32_0 = arith.constant 0 : i32
    %c0_i32_1 = arith.constant 0 : i32
    return %c0_i32, %c0_i32_0 : i32, i32
  }
  func.func @transform_10(%arg0: i32) -> (i32, i32) {
    %c0_i32 = arith.constant 0 : i32
    %c0_i32_0 = arith.constant 0 : i32
    %c0_i32_1 = arith.constant 0 : i32
    return %c0_i32, %c0_i32_0 : i32, i32
  }
  func.func @transform_11(%arg0: i32) -> (i32, i32) {
    %c0_i32 = arith.constant 0 : i32
    %c0_i32_0 = arith.constant 0 : i32
    %c0_i32_1 = arith.constant 0 : i32
    return %c0_i32, %c0_i32_0 : i32, i32
  }
  func.func @transform_12(%arg0: i32) -> (i32, i32, i32) {
    %c0_i32 = arith.constant 0 : i32
    %c0_i32_0 = arith.constant 0 : i32
    %c0_i32_1 = arith.constant 0 : i32
    return %arg0, %c0_i32, %c0_i32_0 : i32, i32, i32
  }
}

</mosaic_0001>

<llo_original>
// kernel: mssim_loss_pallas.1
$region0: #{mssim_loss_pallas.1}
  #allocation0 [shape = 'u32[]', space=smem, size = 0x4, offset = 0x4, fixed_abs, tag = 'smem constant byte address 0x4 - core index']
  #allocation1 [shape = 'u32[144,128]{1,0:T(1,128)}', space=vmem, size = 0x12000, scoped, tag = 'internal scratch']
  %s0 = inlined_call_operand.vmem [shape: f32[2,16,128], index: 0, kind: input, shape index: {}]
  %s1 = inlined_call_operand.vmem [shape: f32[2,8,64], index: 1, kind: input, shape index: {}]
  %s2 = inlined_call_operand.vmem [shape: f32[2,4,32], index: 2, kind: input, shape index: {}]
  %s3 = inlined_call_operand.vmem [shape: f32[2,2,16], index: 3, kind: input, shape index: {}]
  %s4 = inlined_call_operand.vmem [shape: f32[16,16], index: 4, kind: input, shape index: {}]
  %s5 = inlined_call_operand.vmem [shape: f32[8,8], index: 5, kind: input, shape index: {}]
  %s6 = inlined_call_operand.vmem [shape: f32[4,4], index: 6, kind: input, shape index: {}]
  %s7 = inlined_call_operand.vmem [shape: f32[2,2], index: 7, kind: input, shape index: {}]
  %s8 = inlined_call_operand.vmem [shape: f32[11,128], index: 8, kind: input, shape index: {}]
  %s9 = inlined_call_operand.vmem [shape: f32[64,64], index: 9, kind: input, shape index: {}]
  %s10 = inlined_call_operand.vmem [shape: f32[32,32], index: 10, kind: input, shape index: {}]
  %s11 = inlined_call_operand.vmem [shape: f32[16,16], index: 11, kind: input, shape index: {}]
  %s12 = inlined_call_operand.vmem [shape: f32[1,8,128], index: 12, kind: output, shape index: {}]
  %s13 = sld [smem:[#allocation0]]
  $region62: #{mssim_loss_pallas.1} parent=0
    _
  %s15 = ssub.s32 1, %s13
  %s16 = scalar_select 0, %s15, %s13
  // Predicated region
  $region2: #{mssim_loss_pallas.1} parent=0 // pred_check
    _
  $region3: #{mssim_loss_pallas.1} parent=0 // pred_check_branch
    %18 = sbr.rel (0) target = $region5
  $region4: #{mssim_loss_pallas.1} parent=0 // pred_region
    _
  $region5: #{mssim_loss_pallas.1} parent=0 // pred_fallthru
    _
  // Predicated region
  $region6: #{mssim_loss_pallas.1} parent=0 // pred_check
    _
  $region7: #{mssim_loss_pallas.1} parent=0 // pred_check_branch
    %20 = sbr.rel (0) target = $region9
  $region8: #{mssim_loss_pallas.1} parent=0 // pred_region
    _
  $region9: #{mssim_loss_pallas.1} parent=0 // pred_fallthru
    _
  // Predicated region
  $region10: #{mssim_loss_pallas.1} parent=0 // pred_check
    _
  $region11: #{mssim_loss_pallas.1} parent=0 // pred_check_branch
    %22 = sbr.rel (0) target = $region13
  $region12: #{mssim_loss_pallas.1} parent=0 // pred_region
    _
  $region13: #{mssim_loss_pallas.1} parent=0 // pred_fallthru
    _
  // Predicated region
  $region14: #{mssim_loss_pallas.1} parent=0 // pred_check
    _
  $region15: #{mssim_loss_pallas.1} parent=0 // pred_check_branch
    %24 = sbr.rel (0) target = $region17
  $region16: #{mssim_loss_pallas.1} parent=0 // pred_region
    _
  $region17: #{mssim_loss_pallas.1} parent=0 // pred_fallthru
    _
  // Predicated region
  $region18: #{mssim_loss_pallas.1} parent=0 // pred_check
    _
  $region19: #{mssim_loss_pallas.1} parent=0 // pred_check_branch
    %26 = sbr.rel (0) target = $region21
  $region20: #{mssim_loss_pallas.1} parent=0 // pred_region
    _
  $region21: #{mssim_loss_pallas.1} parent=0 // pred_fallthru
    _
  // Predicated region
  $region22: #{mssim_loss_pallas.1} parent=0 // pred_check
    _
  $region23: #{mssim_loss_pallas.1} parent=0 // pred_check_branch
    %28 = sbr.rel (0) target = $region25
  $region24: #{mssim_loss_pallas.1} parent=0 // pred_region
    _
  $region25: #{mssim_loss_pallas.1} parent=0 // pred_fallthru
    _
  // Predicated region
  $region26: #{mssim_loss_pallas.1} parent=0 // pred_check
    _
  $region27: #{mssim_loss_pallas.1} parent=0 // pred_check_branch
    %30 = sbr.rel (0) target = $region29
  $region28: #{mssim_loss_pallas.1} parent=0 // pred_region
    _
  $region29: #{mssim_loss_pallas.1} parent=0 // pred_fallthru
    _
  // Predicated region
  $region30: #{mssim_loss_pallas.1} parent=0 // pred_check
    _
  $region31: #{mssim_loss_pallas.1} parent=0 // pred_check_branch
    %32 = sbr.rel (0) target = $region33
  $region32: #{mssim_loss_pallas.1} parent=0 // pred_region
    _
  $region33: #{mssim_loss_pallas.1} parent=0 // pred_fallthru
    _
  // Predicated region
  $region34: #{mssim_loss_pallas.1} parent=0 // pred_check
    _
  $region35: #{mssim_loss_pallas.1} parent=0 // pred_check_branch
    %34 = sbr.rel (0) target = $region37
  $region36: #{mssim_loss_pallas.1} parent=0 // pred_region
    _
  $region37: #{mssim_loss_pallas.1} parent=0 // pred_fallthru
    _
  // Predicated region
  $region38: #{mssim_loss_pallas.1} parent=0 // pred_check
    _
  $region39: #{mssim_loss_pallas.1} parent=0 // pred_check_branch
    %36 = sbr.rel (0) target = $region41
  $region40: #{mssim_loss_pallas.1} parent=0 // pred_region
    _
  $region41: #{mssim_loss_pallas.1} parent=0 // pred_fallthru
    _
  // Predicated region
  $region42: #{mssim_loss_pallas.1} parent=0 // pred_check
    _
  $region43: #{mssim_loss_pallas.1} parent=0 // pred_check_branch
    %38 = sbr.rel (0) target = $region45
  $region44: #{mssim_loss_pallas.1} parent=0 // pred_region
    _
  $region45: #{mssim_loss_pallas.1} parent=0 // pred_fallthru
    _
  // Predicated region
  $region46: #{mssim_loss_pallas.1} parent=0 // pred_check
    _
  $region47: #{mssim_loss_pallas.1} parent=0 // pred_check_branch
    %40 = sbr.rel (0) target = $region49
  $region48: #{mssim_loss_pallas.1} parent=0 // pred_region
    _
  $region49: #{mssim_loss_pallas.1} parent=0 // pred_fallthru
    _
  %v41 = vld [vmem:[%s0] sm:$0xff]
  %v42 = vld [vmem:[%s0 + $0x8] sm:$0xff]
  %s43 = scalar_lea.vmem %s0, 16
  %v44 = vld [vmem:[%s43] sm:$0xff]
  %v45 = vld [vmem:[%s43 + $0x8] sm:$0xff]
  %v46 = vld [vmem:[%s4] sm:$0xff]
  %v47 = vld [vmem:[%s4 + $0x8] sm:$0xff]
  %vm48 = vcmask 130048
  %v50 = vsel %vm48, %v46, 0
  %v53 = vsel %vm48, %v47, 0
  %55 = vmatprep.subr.mxu0 0.0
  %56 = vmatpush1.msra.mxu0 0.0
  %57 = vmatprep.subr.mxu0 0.0
  %58 = vmatpush1.msra.mxu0 0.0
  %59 = vmatprep.subr.mxu0 0.0
  %60 = vmatpush1.msra.mxu0 0.0
  %61 = vmatprep.subr.mxu0 0.0
  %62 = vmatpush1.msra.mxu0 0.0
  %63 = vmatprep.subr.mxu0 0.0
  %64 = vmatpush1.msra.mxu0 0.0
  %65 = vmatprep.subr.mxu0 0.0
  %66 = vmatpush1.msra.mxu0 0.0
  %67 = vmatprep.subr.mxu0 0.0
  %68 = vmatpush1.msra.mxu0 0.0
  %69 = vmatprep.subr.mxu0 0.0
  %70 = vmatpush1.msra.mxu0 0.0
  %71 = vmatprep.subr.mxu0 0.0
  %72 = vmatpush1.msra.mxu0 0.0
  %73 = vmatprep.subr.mxu0 0.0
  %74 = vmatpush1.msra.mxu0 0.0
  %75 = vmatprep.subr.mxu0 0.0
  %76 = vmatpush1.msra.mxu0 0.0
  %77 = vmatprep.subr.mxu0 0.0
  %78 = vmatpush1.msra.mxu0 0.0
  %79 = vmatprep.subr.mxu0 0.0
  %80 = vmatpush1.msra.mxu0 0.0
  %81 = vmatprep.subr.mxu0 0.0
  %82 = vmatpush1.msra.mxu0 0.0
  %83 = vmatprep.subr.mxu0 0.0
  %84 = vmatpush1.msra.mxu0 %v42
  %85 = vmatprep.subr.mxu0 0.0
  %86 = vmatpush1.msra.mxu0 %v41
  %87 = vmatprep.subr.mxu0 0.0
  %88 = vmatpush2.msra.mxu0 0.0
  %89 = vmatprep.subr.mxu0 0.0
  %90 = vmatpush2.msra.mxu0 0.0
  %91 = vmatprep.subr.mxu0 0.0
  %92 = vmatpush2.msra.mxu0 0.0
  %93 = vmatprep.subr.mxu0 0.0
  %94 = vmatpush2.msra.mxu0 0.0
  %95 = vmatprep.subr.mxu0 0.0
  %96 = vmatpush2.msra.mxu0 0.0
  %97 = vmatprep.subr.mxu0 0.0
  %98 = vmatpush2.msra.mxu0 0.0
  %99 = vmatprep.subr.mxu0 0.0
  %100 = vmatpush2.msra.mxu0 0.0
  %101 = vmatprep.subr.mxu0 0.0
  %102 = vmatpush2.msra.mxu0 0.0
  %103 = vmatprep.subr.mxu0 0.0
  %104 = vmatpush2.msra.mxu0 0.0
  %105 = vmatprep.subr.mxu0 0.0
  %106 = vmatpush2.msra.mxu0 0.0
  %107 = vmatprep.subr.mxu0 0.0
  %108 = vmatpush2.msra.mxu0 0.0
  %109 = vmatprep.subr.mxu0 0.0
  %110 = vmatpush2.msra.mxu0 0.0
  %111 = vmatprep.subr.mxu0 0.0
  %112 = vmatpush2.msra.mxu0 0.0
  %113 = vmatprep.subr.mxu0 0.0
  %114 = vmatpush2.msra.mxu0 0.0
  %115 = vmatprep.subr.mxu0 0.0
  %116 = vmatpush2.msra.mxu0 0.0
  %117 = vmatprep.subr.mxu0 0.0
  %118 = vmatpush2.msra.mxu0 0.0
  %119 = vmatprep.mubr.f32.mxu0 0.0
  %120 = vmatmul.mubr.f32.gmra.mxu0 %v50
  %v121 = vpop.f32.mrf.mxu0
  %v122 = vadd.f32 0.0, %v121
  %v123 = vpop.f32.mrf.mxu0
  %124 = vmatprep.mubr.f32.mxu0 0.0
  %125 = vmatmul.mubr.f32.gmra.mxu0 %v53
  %v126 = vpop.f32.mrf.mxu0
  %v127 = vadd.f32 0.0, %v126
  %v128 = vpop.f32.mrf.mxu0
  %129 = vdwg.mxu0
  %130 = vrot.lane.b32.xlu0 %v122, 5
  %v131 = vpop.permute.xlu0 %130
  %132 = vrot.lane.b32.xlu0 %v127, 5
  %v133 = vpop.permute.xlu0 %132
  %v134 = vld [vmem:[%s8] sm:$0x1]
  %v135 = vlaneseq
  %v136 = vshrl.u32 %v135, 7
  %v137 = vsub.s32 0, %v136
  %v138 = vrot.slane %v134, %v137
  %v139 = vmul.f32 %v138, %v131
  %v140 = vmul.f32 %v138, %v133
  %141 = vrot.lane.b32.xlu0 %v122, 4
  %v142 = vpop.permute.xlu0 %141
  %143 = vrot.lane.b32.xlu0 %v127, 4
  %v144 = vpop.permute.xlu0 %143
  %v145 = vld [vmem:[%s8 + $0x1] sm:$0x1]
  %v146 = vlaneseq
  %v147 = vshrl.u32 %v146, 7
  %v148 = vsub.s32 0, %v147
  %v149 = vrot.slane %v145, %v148
  %v150 = vmul.f32 %v149, %v142
  %v151 = vmul.f32 %v149, %v144
  %v152 = vadd.f32 %v139, %v150
  %v153 = vadd.f32 %v140, %v151
  %154 = vrot.lane.b32.xlu0 %v122, 3
  %v155 = vpop.permute.xlu0 %154
  %156 = vrot.lane.b32.xlu0 %v127, 3
  %v157 = vpop.permute.xlu0 %156
  %v158 = vld [vmem:[%s8 + $0x2] sm:$0x1]
  %v159 = vlaneseq
  %v160 = vshrl.u32 %v159, 7
  %v161 = vsub.s32 0, %v160
  %v162 = vrot.slane %v158, %v161
  %v163 = vmul.f32 %v162, %v155
  %v164 = vmul.f32 %v162, %v157
  %v165 = vadd.f32 %v152, %v163
  %v166 = vadd.f32 %v153, %v164
  %167 = vrot.lane.b32.xlu0 %v122, 2
  %v168 = vpop.permute.xlu0 %167
  %169 = vrot.lane.b32.xlu0 %v127, 2
  %v170 = vpop.permute.xlu0 %169
  %v171 = vld [vmem:[%s8 + $0x3] sm:$0x1]
  %v172 = vlaneseq
  %v173 = vshrl.u32 %v172, 7
  %v174 = vsub.s32 0, %v173
  %v175 = vrot.slane %v171, %v174
  %v176 = vmul.f32 %v175, %v168
  %v177 = vmul.f32 %v175, %v170
  %v178 = vadd.f32 %v165, %v176
  %v179 = vadd.f32 %v166, %v177
  %180 = vrot.lane.b32.xlu0 %v122, 1
  %v181 = vpop.permute.xlu0 %180
  %182 = vrot.lane.b32.xlu0 %v127, 1
  %v183 = vpop.permute.xlu0 %182
  %v184 = vld [vmem:[%s8 + $0x4] sm:$0x1]
  %v185 = vlaneseq
  %v186 = vshrl.u32 %v185, 7
  %v187 = vsub.s32 0, %v186
  %v188 = vrot.slane %v184, %v187
  %v189 = vmul.f32 %v188, %v181
  %v190 = vmul.f32 %v188, %v183
  %v191 = vadd.f32 %v178, %v189
  %v192 = vadd.f32 %v179, %v190
  %v193 = vld [vmem:[%s8 + $0x5] sm:$0x1]
  %v194 = vlaneseq
  %v195 = vshrl.u32 %v194, 7
  %v196 = vsub.s32 0, %v195
  %v197 = vrot.slane %v193, %v196
  %v198 = vmul.f32 %v197, %v122
  %v199 = vmul.f32 %v197, %v127
  %v200 = vadd.f32 %v191, %v198
  %v201 = vadd.f32 %v192, %v199
  %202 = vrot.lane.b32.xlu0 %v122, 127
  %v203 = vpop.permute.xlu0 %202
  %204 = vrot.lane.b32.xlu0 %v127, 127
  %v205 = vpop.permute.xlu0 %204
  %v206 = vld [vmem:[%s8 + $0x6] sm:$0x1]
  %v207 = vlaneseq
  %v208 = vshrl.u32 %v207, 7
  %v209 = vsub.s32 0, %v208
  %v210 = vrot.slane %v206, %v209
  %v211 = vmul.f32 %v210, %v203
  %v212 = vmul.f32 %v210, %v205
  %v213 = vadd.f32 %v200, %v211
  %v214 = vadd.f32 %v201, %v212
  %215 = vrot.lane.b32.xlu0 %v122, 126
  %v216 = vpop.permute.xlu0 %215
  %217 = vrot.lane.b32.xlu0 %v127, 126
  %v218 = vpop.permute.xlu0 %217
  %v219 = vld [vmem:[%s8 + $0x7] sm:$0x1]
  %v220 = vlaneseq
  %v221 = vshrl.u32 %v220, 7
  %v222 = vsub.s32 0, %v221
  %v223 = vrot.slane %v219, %v222
  %v224 = vmul.f32 %v223, %v216
  %v225 = vmul.f32 %v223, %v218
  %v226 = vadd.f32 %v213, %v224
  %v227 = vadd.f32 %v214, %v225
  %228 = vrot.lane.b32.xlu0 %v122, 125
  %v229 = vpop.permute.xlu0 %228
  %230 = vrot.lane.b32.xlu0 %v127, 125
  %v231 = vpop.permute.xlu0 %230
  %v232 = vld [vmem:[%s8 + $0x8] sm:$0x1]
  %v233 = vlaneseq
  %v234 = vshrl.u32 %v233, 7
  %v235 = vsub.s32 0, %v234
  %v236 = vrot.slane %v232, %v235
  %v237 = vmul.f32 %v236, %v229
  %v238 = vmul.f32 %v236, %v231
  %v239 = vadd.f32 %v226, %v237
  %v240 = vadd.f32 %v227, %v238
  %241 = vrot.lane.b32.xlu0 %v122, 124
  %v242 = vpop.permute.xlu0 %241
  %243 = vrot.lane.b32.xlu0 %v127, 124
  %v244 = vpop.permute.xlu0 %243
  %v245 = vld [vmem:[%s8 + $0x9] sm:$0x1]
  %v246 = vlaneseq
  %v247 = vshrl.u32 %v246, 7
  %v248 = vsub.s32 0, %v247
  %v249 = vrot.slane %v245, %v248
  %v250 = vmul.f32 %v249, %v242
  %v251 = vmul.f32 %v249, %v244
  %v252 = vadd.f32 %v239, %v250
  %v253 = vadd.f32 %v240, %v251
  %254 = vrot.lane.b32.xlu0 %v122, 123
  %v255 = vpop.permute.xlu0 %254
  %256 = vrot.lane.b32.xlu0 %v127, 123
  %v257 = vpop.permute.xlu0 %256
  %v258 = vld [vmem:[%s8 + $0xa] sm:$0x1]
  %v259 = vlaneseq
  %v260 = vshrl.u32 %v259, 7
  %v261 = vsub.s32 0, %v260
  %v262 = vrot.slane %v258, %v261
  %v263 = vmul.f32 %v262, %v255
  %v264 = vmul.f32 %v262, %v257
  %v265 = vadd.f32 %v252, %v263
  %v266 = vadd.f32 %v253, %v264
  %267 = vmatprep.subr.mxu0 0.0
  %268 = vmatpush1.msra.mxu0 0.0
  %269 = vmatprep.subr.mxu0 0.0
  %270 = vmatpush1.msra.mxu0 0.0
  %271 = vmatprep.subr.mxu0 0.0
  %272 = vmatpush1.msra.mxu0 0.0
  %273 = vmatprep.subr.mxu0 0.0
  %274 = vmatpush1.msra.mxu0 0.0
  %275 = vmatprep.subr.mxu0 0.0
  %276 = vmatpush1.msra.mxu0 0.0
  %277 = vmatprep.subr.mxu0 0.0
  %278 = vmatpush1.msra.mxu0 0.0
  %279 = vmatprep.subr.mxu0 0.0
  %280 = vmatpush1.msra.mxu0 0.0
  %281 = vmatprep.subr.mxu0 0.0
  %282 = vmatpush1.msra.mxu0 0.0
  %283 = vmatprep.subr.mxu0 0.0
  %284 = vmatpush1.msra.mxu0 0.0
  %285 = vmatprep.subr.mxu0 0.0
  %286 = vmatpush1.msra.mxu0 0.0
  %287 = vmatprep.subr.mxu0 0.0
  %288 = vmatpush1.msra.mxu0 0.0
  %289 = vmatprep.subr.mxu0 0.0
  %290 = vmatpush1.msra.mxu0 0.0
  %291 = vmatprep.subr.mxu0 0.0
  %292 = vmatpush1.msra.mxu0 0.0
  %293 = vmatprep.subr.mxu0 0.0
  %294 = vmatpush1.msra.mxu0 0.0
  %295 = vmatprep.subr.mxu0 0.0
  %296 = vmatpush1.msra.mxu0 %v45
  %297 = vmatprep.subr.mxu0 0.0
  %298 = vmatpush1.msra.mxu0 %v44
  %299 = vmatprep.subr.mxu0 0.0
  %300 = vmatpush2.msra.mxu0 0.0
  %301 = vmatprep.subr.mxu0 0.0
  %302 = vmatpush2.msra.mxu0 0.0
  %303 = vmatprep.subr.mxu0 0.0
  %304 = vmatpush2.msra.mxu0 0.0
  %305 = vmatprep.subr.mxu0 0.0
  %306 = vmatpush2.msra.mxu0 0.0
  %307 = vmatprep.subr.mxu0 0.0
  %308 = vmatpush2.msra.mxu0 0.0
  %309 = vmatprep.subr.mxu0 0.0
  %310 = vmatpush2.msra.mxu0 0.0
  %311 = vmatprep.subr.mxu0 0.0
  %312 = vmatpush2.msra.mxu0 0.0
  %313 = vmatprep.subr.mxu0 0.0
  %314 = vmatpush2.msra.mxu0 0.0
  %315 = vmatprep.subr.mxu0 0.0
  %316 = vmatpush2.msra.mxu0 0.0
  %317 = vmatprep.subr.mxu0 0.0
  %318 = vmatpush2.msra.mxu0 0.0
  %319 = vmatprep.subr.mxu0 0.0
  %320 = vmatpush2.msra.mxu0 0.0
  %321 = vmatprep.subr.mxu0 0.0
  %322 = vmatpush2.msra.mxu0 0.0
  %323 = vmatprep.subr.mxu0 0.0
  %324 = vmatpush2.msra.mxu0 0.0
  %325 = vmatprep.subr.mxu0 0.0
  %326 = vmatpush2.msra.mxu0 0.0
  %327 = vmatprep.subr.mxu0 0.0
  %328 = vmatpush2.msra.mxu0 0.0
  %329 = vmatprep.subr.mxu0 0.0
  %330 = vmatpush2.msra.mxu0 0.0
  %331 = vmatprep.mubr.f32.mxu0 0.0
  %332 = vmatmul.mubr.f32.gmra.mxu0 %v50
  %v333 = vpop.f32.mrf.mxu0
  %v334 = vadd.f32 0.0, %v333
  %v335 = vpop.f32.mrf.mxu0
  %336 = vmatprep.mubr.f32.mxu0 0.0
  %337 = vmatmul.mubr.f32.gmra.mxu0 %v53
  %v338 = vpop.f32.mrf.mxu0
  %v339 = vadd.f32 0.0, %v338
  %v340 = vpop.f32.mrf.mxu0
  %341 = vdwg.mxu0
  %342 = vrot.lane.b32.xlu0 %v334, 5
  %v343 = vpop.permute.xlu0 %342
  %344 = vrot.lane.b32.xlu0 %v339, 5
  %v345 = vpop.permute.xlu0 %344
  %v346 = vmul.f32 %v138, %v343
  %v347 = vmul.f32 %v138, %v345
  %348 = vrot.lane.b32.xlu0 %v334, 4
  %v349 = vpop.permute.xlu0 %348
  %350 = vrot.lane.b32.xlu0 %v339, 4
  %v351 = vpop.permute.xlu0 %350
  %v352 = vmul.f32 %v149, %v349
  %v353 = vmul.f32 %v149, %v351
  %v354 = vadd.f32 %v346, %v352
  %v355 = vadd.f32 %v347, %v353
  %356 = vrot.lane.b32.xlu0 %v334, 3
  %v357 = vpop.permute.xlu0 %356
  %358 = vrot.lane.b32.xlu0 %v339, 3
  %v359 = vpop.permute.xlu0 %358
  %v360 = vmul.f32 %v162, %v357
  %v361 = vmul.f32 %v162, %v359
  %v362 = vadd.f32 %v354, %v360
  %v363 = vadd.f32 %v355, %v361
  %364 = vrot.lane.b32.xlu0 %v334, 2
  %v365 = vpop.permute.xlu0 %364
  %366 = vrot.lane.b32.xlu0 %v339, 2
  %v367 = vpop.permute.xlu0 %366
  %v368 = vmul.f32 %v175, %v365
  %v369 = vmul.f32 %v175, %v367
  %v370 = vadd.f32 %v362, %v368
  %v371 = vadd.f32 %v363, %v369
  %372 = vrot.lane.b32.xlu0 %v334, 1
  %v373 = vpop.permute.xlu0 %372
  %374 = vrot.lane.b32.xlu0 %v339, 1
  %v375 = vpop.permute.xlu0 %374
  %v376 = vmul.f32 %v188, %v373
  %v377 = vmul.f32 %v188, %v375
  %v378 = vadd.f32 %v370, %v376
  %v379 = vadd.f32 %v371, %v377
  %v380 = vmul.f32 %v197, %v334
  %v381 = vmul.f32 %v197, %v339
  %v382 = vadd.f32 %v378, %v380
  %v383 = vadd.f32 %v379, %v381
  %384 = vrot.lane.b32.xlu0 %v334, 127
  %v385 = vpop.permute.xlu0 %384
  %386 = vrot.lane.b32.xlu0 %v339, 127
  %v387 = vpop.permute.xlu0 %386
  %v388 = vmul.f32 %v210, %v385
  %v389 = vmul.f32 %v210, %v387
  %v390 = vadd.f32 %v382, %v388
  %v391 = vadd.f32 %v383, %v389
  %392 = vrot.lane.b32.xlu0 %v334, 126
  %v393 = vpop.permute.xlu0 %392
  %394 = vrot.lane.b32.xlu0 %v339, 126
  %v395 = vpop.permute.xlu0 %394
  %v396 = vmul.f32 %v223, %v393
  %v397 = vmul.f32 %v223, %v395
  %v398 = vadd.f32 %v390, %v396
  %v399 = vadd.f32 %v391, %v397
  %400 = vrot.lane.b32.xlu0 %v334, 125
  %v401 = vpop.permute.xlu0 %400
  %402 = vrot.lane.b32.xlu0 %v339, 125
  %v403 = vpop.permute.xlu0 %402
  %v404 = vmul.f32 %v236, %v401
  %v405 = vmul.f32 %v236, %v403
  %v406 = vadd.f32 %v398, %v404
  %v407 = vadd.f32 %v399, %v405
  %408 = vrot.lane.b32.xlu0 %v334, 124
  %v409 = vpop.permute.xlu0 %408
  %410 = vrot.lane.b32.xlu0 %v339, 124
  %v411 = vpop.permute.xlu0 %410
  %v412 = vmul.f32 %v249, %v409
  %v413 = vmul.f32 %v249, %v411
  %v414 = vadd.f32 %v406, %v412
  %v415 = vadd.f32 %v407, %v413
  %416 = vrot.lane.b32.xlu0 %v334, 123
  %v417 = vpop.permute.xlu0 %416
  %418 = vrot.lane.b32.xlu0 %v339, 123
  %v419 = vpop.permute.xlu0 %418
  %v420 = vmul.f32 %v262, %v417
  %v421 = vmul.f32 %v262, %v419
  %v422 = vadd.f32 %v414, %v420
  %v423 = vadd.f32 %v415, %v421
  %v424 = vmul.f32 %v41, %v41
  %v425 = vmul.f32 %v42, %v42
  %426 = vmatprep.subr.mxu0 0.0
  %427 = vmatpush1.msra.mxu0 0.0
  %428 = vmatprep.subr.mxu0 0.0
  %429 = vmatpush1.msra.mxu0 0.0
  %430 = vmatprep.subr.mxu0 0.0
  %431 = vmatpush1.msra.mxu0 0.0
  %432 = vmatprep.subr.mxu0 0.0
  %433 = vmatpush1.msra.mxu0 0.0
  %434 = vmatprep.subr.mxu0 0.0
  %435 = vmatpush1.msra.mxu0 0.0
  %436 = vmatprep.subr.mxu0 0.0
  %437 = vmatpush1.msra.mxu0 0.0
  %438 = vmatprep.subr.mxu0 0.0
  %439 = vmatpush1.msra.mxu0 0.0
  %440 = vmatprep.subr.mxu0 0.0
  %441 = vmatpush1.msra.mxu0 0.0
  %442 = vmatprep.subr.mxu0 0.0
  %443 = vmatpush1.msra.mxu0 0.0
  %444 = vmatprep.subr.mxu0 0.0
  %445 = vmatpush1.msra.mxu0 0.0
  %446 = vmatprep.subr.mxu0 0.0
  %447 = vmatpush1.msra.mxu0 0.0
  %448 = vmatprep.subr.mxu0 0.0
  %449 = vmatpush1.msra.mxu0 0.0
  %450 = vmatprep.subr.mxu0 0.0
  %451 = vmatpush1.msra.mxu0 0.0
  %452 = vmatprep.subr.mxu0 0.0
  %453 = vmatpush1.msra.mxu0 0.0
  %454 = vmatprep.subr.mxu0 0.0
  %455 = vmatpush1.msra.mxu0 %v425
  %456 = vmatprep.subr.mxu0 0.0
  %457 = vmatpush1.msra.mxu0 %v424
  %458 = vmatprep.subr.mxu0 0.0
  %459 = vmatpush2.msra.mxu0 0.0
  %460 = vmatprep.subr.mxu0 0.0
  %461 = vmatpush2.msra.mxu0 0.0
  %462 = vmatprep.subr.mxu0 0.0
  %463 = vmatpush2.msra.mxu0 0.0
  %464 = vmatprep.subr.mxu0 0.0
  %465 = vmatpush2.msra.mxu0 0.0
  %466 = vmatprep.subr.mxu0 0.0
  %467 = vmatpush2.msra.mxu0 0.0
  %468 = vmatprep.subr.mxu0 0.0
  %469 = vmatpush2.msra.mxu0 0.0
  %470 = vmatprep.subr.mxu0 0.0
  %471 = vmatpush2.msra.mxu0 0.0
  %472 = vmatprep.subr.mxu0 0.0
  %473 = vmatpush2.msra.mxu0 0.0
  %474 = vmatprep.subr.mxu0 0.0
  %475 = vmatpush2.msra.mxu0 0.0
  %476 = vmatprep.subr.mxu0 0.0
  %477 = vmatpush2.msra.mxu0 0.0
  %478 = vmatprep.subr.mxu0 0.0
  %479 = vmatpush2.msra.mxu0 0.0
  %480 = vmatprep.subr.mxu0 0.0
  %481 = vmatpush2.msra.mxu0 0.0
  %482 = vmatprep.subr.mxu0 0.0
  %483 = vmatpush2.msra.mxu0 0.0
  %484 = vmatprep.subr.mxu0 0.0
  %485 = vmatpush2.msra.mxu0 0.0
  %486 = vmatprep.subr.mxu0 0.0
  %487 = vmatpush2.msra.mxu0 0.0
  %488 = vmatprep.subr.mxu0 0.0
  %489 = vmatpush2.msra.mxu0 0.0
  %490 = vmatprep.mubr.f32.mxu0 0.0
  %491 = vmatmul.mubr.f32.gmra.mxu0 %v50
  %v492 = vpop.f32.mrf.mxu0
  %v493 = vadd.f32 0.0, %v492
  %v494 = vpop.f32.mrf.mxu0
  %495 = vmatprep.mubr.f32.mxu0 0.0
  %496 = vmatmul.mubr.f32.gmra.mxu0 %v53
  %v497 = vpop.f32.mrf.mxu0
  %v498 = vadd.f32 0.0, %v497
  %v499 = vpop.f32.mrf.mxu0
  %500 = vdwg.mxu0
  %501 = vrot.lane.b32.xlu0 %v493, 5
  %v502 = vpop.permute.xlu0 %501
  %503 = vrot.lane.b32.xlu0 %v498, 5
  %v504 = vpop.permute.xlu0 %503
  %v505 = vmul.f32 %v138, %v502
  %v506 = vmul.f32 %v138, %v504
  %507 = vrot.lane.b32.xlu0 %v493, 4
  %v508 = vpop.permute.xlu0 %507
  %509 = vrot.lane.b32.xlu0 %v498, 4
  %v510 = vpop.permute.xlu0 %509
  %v511 = vmul.f32 %v149, %v508
  %v512 = vmul.f32 %v149, %v510
  %v513 = vadd.f32 %v505, %v511
  %v514 = vadd.f32 %v506, %v512
  %515 = vrot.lane.b32.xlu0 %v493, 3
  %v516 = vpop.permute.xlu0 %515
  %517 = vrot.lane.b32.xlu0 %v498, 3
  %v518 = vpop.permute.xlu0 %517
  %v519 = vmul.f32 %v162, %v516
  %v520 = vmul.f32 %v162, %v518
  %v521 = vadd.f32 %v513, %v519
  %v522 = vadd.f32 %v514, %v520
  %523 = vrot.lane.b32.xlu0 %v493, 2
  %v524 = vpop.permute.xlu0 %523
  %525 = vrot.lane.b32.xlu0 %v498, 2
  %v526 = vpop.permute.xlu0 %525
  %v527 = vmul.f32 %v175, %v524
  %v528 = vmul.f32 %v175, %v526
  %v529 = vadd.f32 %v521, %v527
  %v530 = vadd.f32 %v522, %v528
  %531 = vrot.lane.b32.xlu0 %v493, 1
  %v532 = vpop.permute.xlu0 %531
  %533 = vrot.lane.b32.xlu0 %v498, 1
  %v534 = vpop.permute.xlu0 %533
  %v535 = vmul.f32 %v188, %v532
  %v536 = vmul.f32 %v188, %v534
  %v537 = vadd.f32 %v529, %v535
  %v538 = vadd.f32 %v530, %v536
  %v539 = vmul.f32 %v197, %v493
  %v540 = vmul.f32 %v197, %v498
  %v541 = vadd.f32 %v537, %v539
  %v542 = vadd.f32 %v538, %v540
  %543 = vrot.lane.b32.xlu0 %v493, 127
  %v544 = vpop.permute.xlu0 %543
  %545 = vrot.lane.b32.xlu0 %v498, 127
  %v546 = vpop.permute.xlu0 %545
  %v547 = vmul.f32 %v210, %v544
  %v548 = vmul.f32 %v210, %v546
  %v549 = vadd.f32 %v541, %v547
  %v550 = vadd.f32 %v542, %v548
  %551 = vrot.lane.b32.xlu0 %v493, 126
  %v552 = vpop.permute.xlu0 %551
  %553 = vrot.lane.b32.xlu0 %v498, 126
  %v554 = vpop.permute.xlu0 %553
  %v555 = vmul.f32 %v223, %v552
  %v556 = vmul.f32 %v223, %v554
  %v557 = vadd.f32 %v549, %v555
  %v558 = vadd.f32 %v550, %v556
  %559 = vrot.lane.b32.xlu0 %v493, 125
  %v560 = vpop.permute.xlu0 %559
  %561 = vrot.lane.b32.xlu0 %v498, 125
  %v562 = vpop.permute.xlu0 %561
  %v563 = vmul.f32 %v236, %v560
  %v564 = vmul.f32 %v236, %v562
  %v565 = vadd.f32 %v557, %v563
  %v566 = vadd.f32 %v558, %v564
  %567 = vrot.lane.b32.xlu0 %v493, 124
  %v568 = vpop.permute.xlu0 %567
  %569 = vrot.lane.b32.xlu0 %v498, 124
  %v570 = vpop.permute.xlu0 %569
  %v571 = vmul.f32 %v249, %v568
  %v572 = vmul.f32 %v249, %v570
  %v573 = vadd.f32 %v565, %v571
  %v574 = vadd.f32 %v566, %v572
  %575 = vrot.lane.b32.xlu0 %v493, 123
  %v576 = vpop.permute.xlu0 %575
  %577 = vrot.lane.b32.xlu0 %v498, 123
  %v578 = vpop.permute.xlu0 %577
  %v579 = vmul.f32 %v262, %v576
  %v580 = vmul.f32 %v262, %v578
  %v581 = vadd.f32 %v573, %v579
  %v582 = vadd.f32 %v574, %v580
  %v583 = vmul.f32 %v44, %v44
  %v584 = vmul.f32 %v45, %v45
  %585 = vmatprep.subr.mxu0 0.0
  %586 = vmatpush1.msra.mxu0 0.0
  %587 = vmatprep.subr.mxu0 0.0
  %588 = vmatpush1.msra.mxu0 0.0
  %589 = vmatprep.subr.mxu0 0.0
  %590 = vmatpush1.msra.mxu0 0.0
  %591 = vmatprep.subr.mxu0 0.0
  %592 = vmatpush1.msra.mxu0 0.0
  %593 = vmatprep.subr.mxu0 0.0
  %594 = vmatpush1.msra.mxu0 0.0
  %595 = vmatprep.subr.mxu0 0.0
  %596 = vmatpush1.msra.mxu0 0.0
  %597 = vmatprep.subr.mxu0 0.0
  %598 = vmatpush1.msra.mxu0 0.0
  %599 = vmatprep.subr.mxu0 0.0
  %600 = vmatpush1.msra.mxu0 0.0
  %601 = vmatprep.subr.mxu0 0.0
  %602 = vmatpush1.msra.mxu0 0.0
  %603 = vmatprep.subr.mxu0 0.0
  %604 = vmatpush1.msra.mxu0 0.0
  %605 = vmatprep.subr.mxu0 0.0
  %606 = vmatpush1.msra.mxu0 0.0
  %607 = vmatprep.subr.mxu0 0.0
  %608 = vmatpush1.msra.mxu0 0.0
  %609 = vmatprep.subr.mxu0 0.0
  %610 = vmatpush1.msra.mxu0 0.0
  %611 = vmatprep.subr.mxu0 0.0
  %612 = vmatpush1.msra.mxu0 0.0
  %613 = vmatprep.subr.mxu0 0.0
  %614 = vmatpush1.msra.mxu0 %v584
  %615 = vmatprep.subr.mxu0 0.0
  %616 = vmatpush1.msra.mxu0 %v583
  %617 = vmatprep.subr.mxu0 0.0
  %618 = vmatpush2.msra.mxu0 0.0
  %619 = vmatprep.subr.mxu0 0.0
  %620 = vmatpush2.msra.mxu0 0.0
  %621 = vmatprep.subr.mxu0 0.0
  %622 = vmatpush2.msra.mxu0 0.0
  %623 = vmatprep.subr.mxu0 0.0
  %624 = vmatpush2.msra.mxu0 0.0
  %625 = vmatprep.subr.mxu0 0.0
  %626 = vmatpush2.msra.mxu0 0.0
  %627 = vmatprep.subr.mxu0 0.0
  %628 = vmatpush2.msra.mxu0 0.0
  %629 = vmatprep.subr.mxu0 0.0
  %630 = vmatpush2.msra.mxu0 0.0
  %631 = vmatprep.subr.mxu0 0.0
  %632 = vmatpush2.msra.mxu0 0.0
  %633 = vmatprep.subr.mxu0 0.0
  %634 = vmatpush2.msra.mxu0 0.0
  %635 = vmatprep.subr.mxu0 0.0
  %636 = vmatpush2.msra.mxu0 0.0
  %637 = vmatprep.subr.mxu0 0.0
  %638 = vmatpush2.msra.mxu0 0.0
  %639 = vmatprep.subr.mxu0 0.0
  %640 = vmatpush2.msra.mxu0 0.0
  %641 = vmatprep.subr.mxu0 0.0
  %642 = vmatpush2.msra.mxu0 0.0
  %643 = vmatprep.subr.mxu0 0.0
  %644 = vmatpush2.msra.mxu0 0.0
  %645 = vmatprep.subr.mxu0 0.0
  %646 = vmatpush2.msra.mxu0 0.0
  %647 = vmatprep.subr.mxu0 0.0
  %648 = vmatpush2.msra.mxu0 0.0
  %649 = vmatprep.mubr.f32.mxu0 0.0
  %650 = vmatmul.mubr.f32.gmra.mxu0 %v50
  %v651 = vpop.f32.mrf.mxu0
  %v652 = vadd.f32 0.0, %v651
  %v653 = vpop.f32.mrf.mxu0
  %654 = vmatprep.mubr.f32.mxu0 0.0
  %655 = vmatmul.mubr.f32.gmra.mxu0 %v53
  %v656 = vpop.f32.mrf.mxu0
  %v657 = vadd.f32 0.0, %v656
  %v658 = vpop.f32.mrf.mxu0
  %659 = vdwg.mxu0
  %660 = vrot.lane.b32.xlu0 %v652, 5
  %v661 = vpop.permute.xlu0 %660
  %662 = vrot.lane.b32.xlu0 %v657, 5
  %v663 = vpop.permute.xlu0 %662
  %v664 = vmul.f32 %v138, %v661
  %v665 = vmul.f32 %v138, %v663
  %666 = vrot.lane.b32.xlu0 %v652, 4
  %v667 = vpop.permute.xlu0 %666
  %668 = vrot.lane.b32.xlu0 %v657, 4
  %v669 = vpop.permute.xlu0 %668
  %v670 = vmul.f32 %v149, %v667
  %v671 = vmul.f32 %v149, %v669
  %v672 = vadd.f32 %v664, %v670
  %v673 = vadd.f32 %v665, %v671
  %674 = vrot.lane.b32.xlu0 %v652, 3
  %v675 = vpop.permute.xlu0 %674
  %676 = vrot.lane.b32.xlu0 %v657, 3
  %v677 = vpop.permute.xlu0 %676
  %v678 = vmul.f32 %v162, %v675
  %v679 = vmul.f32 %v162, %v677
  %v680 = vadd.f32 %v672, %v678
  %v681 = vadd.f32 %v673, %v679
  %682 = vrot.lane.b32.xlu0 %v652, 2
  %v683 = vpop.permute.xlu0 %682
  %684 = vrot.lane.b32.xlu0 %v657, 2
  %v685 = vpop.permute.xlu0 %684
  %v686 = vmul.f32 %v175, %v683
  %v687 = vmul.f32 %v175, %v685
  %v688 = vadd.f32 %v680, %v686
  %v689 = vadd.f32 %v681, %v687
  %690 = vrot.lane.b32.xlu0 %v652, 1
  %v691 = vpop.permute.xlu0 %690
  %692 = vrot.lane.b32.xlu0 %v657, 1
  %v693 = vpop.permute.xlu0 %692
  %v694 = vmul.f32 %v188, %v691
  %v695 = vmul.f32 %v188, %v693
  %v696 = vadd.f32 %v688, %v694
  %v697 = vadd.f32 %v689, %v695
  %v698 = vmul.f32 %v197, %v652
  %v699 = vmul.f32 %v197, %v657
  %v700 = vadd.f32 %v696, %v698
  %v701 = vadd.f32 %v697, %v699
  %702 = vrot.lane.b32.xlu0 %v652, 127
  %v703 = vpop.permute.xlu0 %702
  %704 = vrot.lane.b32.xlu0 %v657, 127
  %v705 = vpop.permute.xlu0 %704
  %v706 = vmul.f32 %v210, %v703
  %v707 = vmul.f32 %v210, %v705
  %v708 = vadd.f32 %v700, %v706
  %v709 = vadd.f32 %v701, %v707
  %710 = vrot.lane.b32.xlu0 %v652, 126
  %v711 = vpop.permute.xlu0 %710
  %712 = vrot.lane.b32.xlu0 %v657, 126
  %v713 = vpop.permute.xlu0 %712
  %v714 = vmul.f32 %v223, %v711
  %v715 = vmul.f32 %v223, %v713
  %v716 = vadd.f32 %v708, %v714
  %v717 = vadd.f32 %v709, %v715
  %718 = vrot.lane.b32.xlu0 %v652, 125
  %v719 = vpop.permute.xlu0 %718
  %720 = vrot.lane.b32.xlu0 %v657, 125
  %v721 = vpop.permute.xlu0 %720
  %v722 = vmul.f32 %v236, %v719
  %v723 = vmul.f32 %v236, %v721
  %v724 = vadd.f32 %v716, %v722
  %v725 = vadd.f32 %v717, %v723
  %726 = vrot.lane.b32.xlu0 %v652, 124
  %v727 = vpop.permute.xlu0 %726
  %728 = vrot.lane.b32.xlu0 %v657, 124
  %v729 = vpop.permute.xlu0 %728
  %v730 = vmul.f32 %v249, %v727
  %v731 = vmul.f32 %v249, %v729
  %v732 = vadd.f32 %v724, %v730
  %v733 = vadd.f32 %v725, %v731
  %734 = vrot.lane.b32.xlu0 %v652, 123
  %v735 = vpop.permute.xlu0 %734
  %736 = vrot.lane.b32.xlu0 %v657, 123
  %v737 = vpop.permute.xlu0 %736
  %v738 = vmul.f32 %v262, %v735
  %v739 = vmul.f32 %v262, %v737
  %v740 = vadd.f32 %v732, %v738
  %v741 = vadd.f32 %v733, %v739
  %v742 = vmul.f32 %v41, %v44
  %v743 = vmul.f32 %v42, %v45
  %744 = vmatprep.subr.mxu0 0.0
  %745 = vmatpush1.msra.mxu0 0.0
  %746 = vmatprep.subr.mxu0 0.0
  %747 = vmatpush1.msra.mxu0 0.0
  %748 = vmatprep.subr.mxu0 0.0
  %749 = vmatpush1.msra.mxu0 0.0
  %750 = vmatprep.subr.mxu0 0.0
  %751 = vmatpush1.msra.mxu0 0.0
  %752 = vmatprep.subr.mxu0 0.0
  %753 = vmatpush1.msra.mxu0 0.0
  %754 = vmatprep.subr.mxu0 0.0
  %755 = vmatpush1.msra.mxu0 0.0
  %756 = vmatprep.subr.mxu0 0.0
  %757 = vmatpush1.msra.mxu0 0.0
  %758 = vmatprep.subr.mxu0 0.0
  %759 = vmatpush1.msra.mxu0 0.0
  %760 = vmatprep.subr.mxu0 0.0
  %761 = vmatpush1.msra.mxu0 0.0
  %762 = vmatprep.subr.mxu0 0.0
  %763 = vmatpush1.msra.mxu0 0.0
  %764 = vmatprep.subr.mxu0 0.0
  %765 = vmatpush1.msra.mxu0 0.0
  %766 = vmatprep.subr.mxu0 0.0
  %767 = vmatpush1.msra.mxu0 0.0
  %768 = vmatprep.subr.mxu0 0.0
  %769 = vmatpush1.msra.mxu0 0.0
  %770 = vmatprep.subr.mxu0 0.0
  %771 = vmatpush1.msra.mxu0 0.0
  %772 = vmatprep.subr.mxu0 0.0
  %773 = vmatpush1.msra.mxu0 %v743
  %774 = vmatprep.subr.mxu0 0.0
  %775 = vmatpush1.msra.mxu0 %v742
  %776 = vmatprep.subr.mxu0 0.0
  %777 = vmatpush2.msra.mxu0 0.0
  %778 = vmatprep.subr.mxu0 0.0
  %779 = vmatpush2.msra.mxu0 0.0
  %780 = vmatprep.subr.mxu0 0.0
  %781 = vmatpush2.msra.mxu0 0.0
  %782 = vmatprep.subr.mxu0 0.0
  %783 = vmatpush2.msra.mxu0 0.0
  %784 = vmatprep.subr.mxu0 0.0
  %785 = vmatpush2.msra.mxu0 0.0
  %786 = vmatprep.subr.mxu0 0.0
  %787 = vmatpush2.msra.mxu0 0.0
  %788 = vmatprep.subr.mxu0 0.0
  %789 = vmatpush2.msra.mxu0 0.0
  %790 = vmatprep.subr.mxu0 0.0
  %791 = vmatpush2.msra.mxu0 0.0
  %792 = vmatprep.subr.mxu0 0.0
  %793 = vmatpush2.msra.mxu0 0.0
  %794 = vmatprep.subr.mxu0 0.0
  %795 = vmatpush2.msra.mxu0 0.0
  %796 = vmatprep.subr.mxu0 0.0
  %797 = vmatpush2.msra.mxu0 0.0
  %798 = vmatprep.subr.mxu0 0.0
  %799 = vmatpush2.msra.mxu0 0.0
  %800 = vmatprep.subr.mxu0 0.0
  %801 = vmatpush2.msra.mxu0 0.0
  %802 = vmatprep.subr.mxu0 0.0
  %803 = vmatpush2.msra.mxu0 0.0
  %804 = vmatprep.subr.mxu0 0.0
  %805 = vmatpush2.msra.mxu0 0.0
  %806 = vmatprep.subr.mxu0 0.0
  %807 = vmatpush2.msra.mxu0 0.0
  %808 = vmatprep.mubr.f32.mxu0 0.0
  %809 = vmatmul.mubr.f32.gmra.mxu0 %v50
  %v810 = vpop.f32.mrf.mxu0
  %v811 = vadd.f32 0.0, %v810
  %v812 = vpop.f32.mrf.mxu0
  %813 = vmatprep.mubr.f32.mxu0 0.0
  %814 = vmatmul.mubr.f32.gmra.mxu0 %v53
  %v815 = vpop.f32.mrf.mxu0
  %v816 = vadd.f32 0.0, %v815
  %v817 = vpop.f32.mrf.mxu0
  %818 = vdwg.mxu0
  %819 = vrot.lane.b32.xlu0 %v811, 5
  %v820 = vpop.permute.xlu0 %819
  %821 = vrot.lane.b32.xlu0 %v816, 5
  %v822 = vpop.permute.xlu0 %821
  %v823 = vmul.f32 %v138, %v820
  %v824 = vmul.f32 %v138, %v822
  %825 = vrot.lane.b32.xlu0 %v811, 4
  %v826 = vpop.permute.xlu0 %825
  %827 = vrot.lane.b32.xlu0 %v816, 4
  %v828 = vpop.permute.xlu0 %827
  %v829 = vmul.f32 %v149, %v826
  %v830 = vmul.f32 %v149, %v828
  %v831 = vadd.f32 %v823, %v829
  %v832 = vadd.f32 %v824, %v830
  %833 = vrot.lane.b32.xlu0 %v811, 3
  %v834 = vpop.permute.xlu0 %833
  %835 = vrot.lane.b32.xlu0 %v816, 3
  %v836 = vpop.permute.xlu0 %835
  %v837 = vmul.f32 %v162, %v834
  %v838 = vmul.f32 %v162, %v836
  %v839 = vadd.f32 %v831, %v837
  %v840 = vadd.f32 %v832, %v838
  %841 = vrot.lane.b32.xlu0 %v811, 2
  %v842 = vpop.permute.xlu0 %841
  %843 = vrot.lane.b32.xlu0 %v816, 2
  %v844 = vpop.permute.xlu0 %843
  %v845 = vmul.f32 %v175, %v842
  %v846 = vmul.f32 %v175, %v844
  %v847 = vadd.f32 %v839, %v845
  %v848 = vadd.f32 %v840, %v846
  %849 = vrot.lane.b32.xlu0 %v811, 1
  %v850 = vpop.permute.xlu0 %849
  %851 = vrot.lane.b32.xlu0 %v816, 1
  %v852 = vpop.permute.xlu0 %851
  %v853 = vmul.f32 %v188, %v850
  %v854 = vmul.f32 %v188, %v852
  %v855 = vadd.f32 %v847, %v853
  %v856 = vadd.f32 %v848, %v854
  %v857 = vmul.f32 %v197, %v811
  %v858 = vmul.f32 %v197, %v816
  %v859 = vadd.f32 %v855, %v857
  %v860 = vadd.f32 %v856, %v858
  %861 = vrot.lane.b32.xlu0 %v811, 127
  %v862 = vpop.permute.xlu0 %861
  %863 = vrot.lane.b32.xlu0 %v816, 127
  %v864 = vpop.permute.xlu0 %863
  %v865 = vmul.f32 %v210, %v862
  %v866 = vmul.f32 %v210, %v864
  %v867 = vadd.f32 %v859, %v865
  %v868 = vadd.f32 %v860, %v866
  %869 = vrot.lane.b32.xlu0 %v811, 126
  %v870 = vpop.permute.xlu0 %869
  %871 = vrot.lane.b32.xlu0 %v816, 126
  %v872 = vpop.permute.xlu0 %871
  %v873 = vmul.f32 %v223, %v870
  %v874 = vmul.f32 %v223, %v872
  %v875 = vadd.f32 %v867, %v873
  %v876 = vadd.f32 %v868, %v874
  %877 = vrot.lane.b32.xlu0 %v811, 125
  %v878 = vpop.permute.xlu0 %877
  %879 = vrot.lane.b32.xlu0 %v816, 125
  %v880 = vpop.permute.xlu0 %879
  %v881 = vmul.f32 %v236, %v878
  %v882 = vmul.f32 %v236, %v880
  %v883 = vadd.f32 %v875, %v881
  %v884 = vadd.f32 %v876, %v882
  %885 = vrot.lane.b32.xlu0 %v811, 124
  %v886 = vpop.permute.xlu0 %885
  %887 = vrot.lane.b32.xlu0 %v816, 124
  %v888 = vpop.permute.xlu0 %887
  %v889 = vmul.f32 %v249, %v886
  %v890 = vmul.f32 %v249, %v888
  %v891 = vadd.f32 %v883, %v889
  %v892 = vadd.f32 %v884, %v890
  %893 = vrot.lane.b32.xlu0 %v811, 123
  %v894 = vpop.permute.xlu0 %893
  %895 = vrot.lane.b32.xlu0 %v816, 123
  %v896 = vpop.permute.xlu0 %895
  %v897 = vmul.f32 %v262, %v894
  %v898 = vmul.f32 %v262, %v896
  %v899 = vadd.f32 %v891, %v897
  %v900 = vadd.f32 %v892, %v898
  %v901 = vmul.f32 %v265, %v422
  %v902 = vmul.f32 %v266, %v423
  %v903 = vmul.f32 %v265, %v265
  %v904 = vmul.f32 %v266, %v266
  %v905 = vmul.f32 %v422, %v422
  %v906 = vmul.f32 %v423, %v423
  %v907 = vmul.f32 %v901, 2.0
  %v908 = vmul.f32 %v902, 2.0
  %v909 = vadd.f32 %v907, 0.0001
  %v910 = vadd.f32 %v908, 0.0001
  %v911 = vsub.f32 %v899, %v901
  %v912 = vsub.f32 %v900, %v902
  %v913 = vmul.f32 %v911, 2.0
  %v914 = vmul.f32 %v912, 2.0
  %v915 = vadd.f32 %v913, 0.0009
  %v916 = vadd.f32 %v914, 0.0009
  %v917 = vmul.f32 %v909, %v915
  %v918 = vmul.f32 %v910, %v916
  %v919 = vadd.f32 %v903, %v905
  %v920 = vadd.f32 %v904, %v906
  %v921 = vadd.f32 %v919, 0.0001
  %v922 = vadd.f32 %v920, 0.0001
  %v923 = vsub.f32 %v581, %v903
  %v924 = vsub.f32 %v582, %v904
  %v925 = vsub.f32 %v740, %v905
  %v926 = vsub.f32 %v741, %v906
  %v927 = vadd.f32 %v923, %v925
  %v928 = vadd.f32 %v924, %v926
  %v929 = vadd.f32 %v927, 0.0009
  %v930 = vadd.f32 %v928, 0.0009
  %v931 = vmul.f32 %v921, %v929
  %v932 = vmul.f32 %v922, %v930
  %v933 = vrcp.pop %v931
  %v934 = vrcp.pop %v932
  %v935 = vmul.f32 %v931, %v933
  %v936 = vmul.f32 %v932, %v934
  %v937 = vsub.f32 2.0, %v935
  %v938 = vsub.f32 2.0, %v936
  %v939 = vmul.f32 %v933, %v937
  %v940 = vmul.f32 %v934, %v938
  %v941 = vmul.f32 %v917, %v939
  %v942 = vmul.f32 %v918, %v940
  %943 = vadd.xlane.f32.xlu0 %v941
  %v944 = vpop.xlane.xlu0 %943
  %945 = vadd.xlane.f32.xlu0 %v942
  %v946 = vpop.xlane.xlu0 %945
  %v947 = vadd.f32 %v944, %v946
  %v948 = vrot.slane %v947, 4
  %v949 = vadd.f32 %v947, %v948
  %v950 = vrot.slane %v949, 2
  %v951 = vadd.f32 %v949, %v950
  %v952 = vrot.slane %v951, 1
  %v953 = vadd.f32 %v951, %v952
  %v954 = vmul.f32 %v953, 0.00048828125
  %v955 = vld [vmem:[%s1] sm:$0xff]
  %s956 = scalar_lea.vmem %s1, 8
  %v957 = vld [vmem:[%s956] sm:$0xff]
  %v958 = vld [vmem:[%s5] sm:$0xff]
  %vm959 = vcmask 64512
  %v961 = vsel %vm959, %v958, 0
  %963 = vmatprep.subr.mxu0 0.0
  %964 = vmatpush1.msra.mxu0 0.0
  %965 = vmatprep.subr.mxu0 0.0
  %966 = vmatpush1.msra.mxu0 0.0
  %967 = vmatprep.subr.mxu0 0.0
  %968 = vmatpush1.msra.mxu0 0.0
  %969 = vmatprep.subr.mxu0 0.0
  %970 = vmatpush1.msra.mxu0 0.0
  %971 = vmatprep.subr.mxu0 0.0
  %972 = vmatpush1.msra.mxu0 0.0
  %973 = vmatprep.subr.mxu0 0.0
  %974 = vmatpush1.msra.mxu0 0.0
  %975 = vmatprep.subr.mxu0 0.0
  %976 = vmatpush1.msra.mxu0 0.0
  %977 = vmatprep.subr.mxu0 0.0
  %978 = vmatpush1.msra.mxu0 0.0
  %979 = vmatprep.subr.mxu0 0.0
  %980 = vmatpush1.msra.mxu0 0.0
  %981 = vmatprep.subr.mxu0 0.0
  %982 = vmatpush1.msra.mxu0 0.0
  %983 = vmatprep.subr.mxu0 0.0
  %984 = vmatpush1.msra.mxu0 0.0
  %985 = vmatprep.subr.mxu0 0.0
  %986 = vmatpush1.msra.mxu0 0.0
  %987 = vmatprep.subr.mxu0 0.0
  %988 = vmatpush1.msra.mxu0 0.0
  %989 = vmatprep.subr.mxu0 0.0
  %990 = vmatpush1.msra.mxu0 0.0
  %991 = vmatprep.subr.mxu0 0.0
  %992 = vmatpush1.msra.mxu0 0.0
  %993 = vmatprep.subr.mxu0 0.0
  %994 = vmatpush1.msra.mxu0 %v955
  %995 = vmatprep.subr.mxu0 0.0
  %996 = vmatpush2.msra.mxu0 0.0
  %997 = vmatprep.subr.mxu0 0.0
  %998 = vmatpush2.msra.mxu0 0.0
  %999 = vmatprep.subr.mxu0 0.0
  %1000 = vmatpush2.msra.mxu0 0.0
  %1001 = vmatprep.subr.mxu0 0.0
  %1002 = vmatpush2.msra.mxu0 0.0
  %1003 = vmatprep.subr.mxu0 0.0
  %1004 = vmatpush2.msra.mxu0 0.0
  %1005 = vmatprep.subr.mxu0 0.0
  %1006 = vmatpush2.msra.mxu0 0.0
  %1007 = vmatprep.subr.mxu0 0.0
  %1008 = vmatpush2.msra.mxu0 0.0
  %1009 = vmatprep.subr.mxu0 0.0
  %1010 = vmatpush2.msra.mxu0 0.0
  %1011 = vmatprep.subr.mxu0 0.0
  %1012 = vmatpush2.msra.mxu0 0.0
  %1013 = vmatprep.subr.mxu0 0.0
  %1014 = vmatpush2.msra.mxu0 0.0
  %1015 = vmatprep.subr.mxu0 0.0
  %1016 = vmatpush2.msra.mxu0 0.0
  %1017 = vmatprep.subr.mxu0 0.0
  %1018 = vmatpush2.msra.mxu0 0.0
  %1019 = vmatprep.subr.mxu0 0.0
  %1020 = vmatpush2.msra.mxu0 0.0
  %1021 = vmatprep.subr.mxu0 0.0
  %1022 = vmatpush2.msra.mxu0 0.0
  %1023 = vmatprep.subr.mxu0 0.0
  %1024 = vmatpush2.msra.mxu0 0.0
  %1025 = vmatprep.subr.mxu0 0.0
  %1026 = vmatpush2.msra.mxu0 0.0
  %1027 = vmatprep.mubr.f32.mxu0 0.0
  %1028 = vmatmul.mubr.f32.gmra.mxu0 %v961
  %v1029 = vpop.f32.mrf.mxu0
  %v1030 = vadd.f32 0.0, %v1029
  %v1031 = vpop.f32.mrf.mxu0
  %1032 = vdwg.mxu0
  %v1033 = vld [vmem:[%s9] sm:$0xff]
  %v1034 = vld [vmem:[%s9 + $0x8] sm:$0xff]
  %v1035 = vld [vmem:[%s9 + $0x10] sm:$0xff]
  %v1036 = vld [vmem:[%s9 + $0x18] sm:$0xff]
  %v1037 = vld [vmem:[%s9 + $0x20] sm:$0xff]
  %v1038 = vld [vmem:[%s9 + $0x28] sm:$0xff]
  %v1039 = vld [vmem:[%s9 + $0x30] sm:$0xff]
  %v1040 = vld [vmem:[%s9 + $0x38] sm:$0xff]
  %vm1041 = vcmask 523264
  %v1043 = vsel %vm1041, %v1030, 0
  %1045 = vmatprep.subr.mxu0 0.0
  %1046 = vmatpush1.msra.mxu0 0.0
  %1047 = vmatprep.subr.mxu0 0.0
  %1048 = vmatpush1.msra.mxu0 0.0
  %1049 = vmatprep.subr.mxu0 0.0
  %1050 = vmatpush1.msra.mxu0 0.0
  %1051 = vmatprep.subr.mxu0 0.0
  %1052 = vmatpush1.msra.mxu0 0.0
  %1053 = vmatprep.subr.mxu0 0.0
  %1054 = vmatpush1.msra.mxu0 0.0
  %1055 = vmatprep.subr.mxu0 0.0
  %1056 = vmatpush1.msra.mxu0 0.0
  %1057 = vmatprep.subr.mxu0 0.0
  %1058 = vmatpush1.msra.mxu0 0.0
  %1059 = vmatprep.subr.mxu0 0.0
  %1060 = vmatpush1.msra.mxu0 0.0
  %1061 = vmatprep.subr.mxu0 0.0
  %1062 = vmatpush1.msra.mxu0 %v1040
  %1063 = vmatprep.subr.mxu0 0.0
  %1064 = vmatpush1.msra.mxu0 %v1039
  %1065 = vmatprep.subr.mxu0 0.0
  %1066 = vmatpush1.msra.mxu0 %v1038
  %1067 = vmatprep.subr.mxu0 0.0
  %1068 = vmatpush1.msra.mxu0 %v1037
  %1069 = vmatprep.subr.mxu0 0.0
  %1070 = vmatpush1.msra.mxu0 %v1036
  %1071 = vmatprep.subr.mxu0 0.0
  %1072 = vmatpush1.msra.mxu0 %v1035
  %1073 = vmatprep.subr.mxu0 0.0
  %1074 = vmatpush1.msra.mxu0 %v1034
  %1075 = vmatprep.subr.mxu0 0.0
  %1076 = vmatpush1.msra.mxu0 %v1033
  %1077 = vmatprep.subr.mxu0 0.0
  %1078 = vmatpush2.msra.mxu0 0.0
  %1079 = vmatprep.subr.mxu0 0.0
  %1080 = vmatpush2.msra.mxu0 0.0
  %1081 = vmatprep.subr.mxu0 0.0
  %1082 = vmatpush2.msra.mxu0 0.0
  %1083 = vmatprep.subr.mxu0 0.0
  %1084 = vmatpush2.msra.mxu0 0.0
  %1085 = vmatprep.subr.mxu0 0.0
  %1086 = vmatpush2.msra.mxu0 0.0
  %1087 = vmatprep.subr.mxu0 0.0
  %1088 = vmatpush2.msra.mxu0 0.0
  %1089 = vmatprep.subr.mxu0 0.0
  %1090 = vmatpush2.msra.mxu0 0.0
  %1091 = vmatprep.subr.mxu0 0.0
  %1092 = vmatpush2.msra.mxu0 0.0
  %1093 = vmatprep.subr.mxu0 0.0
  %1094 = vmatpush2.msra.mxu0 0.0
  %1095 = vmatprep.subr.mxu0 0.0
  %1096 = vmatpush2.msra.mxu0 0.0
  %1097 = vmatprep.subr.mxu0 0.0
  %1098 = vmatpush2.msra.mxu0 0.0
  %1099 = vmatprep.subr.mxu0 0.0
  %1100 = vmatpush2.msra.mxu0 0.0
  %1101 = vmatprep.subr.mxu0 0.0
  %1102 = vmatpush2.msra.mxu0 0.0
  %1103 = vmatprep.subr.mxu0 0.0
  %1104 = vmatpush2.msra.mxu0 0.0
  %1105 = vmatprep.subr.mxu0 0.0
  %1106 = vmatpush2.msra.mxu0 0.0
  %1107 = vmatprep.subr.mxu0 0.0
  %1108 = vmatpush2.msra.mxu0 0.0
  %1109 = vmatprep.mubr.f32.mxu0 0.0
  %1110 = vmatmul.mubr.f32.gmra.mxu0 %v1043
  %v1111 = vpop.f32.mrf.mxu0
  %v1112 = vadd.f32 0.0, %v1111
  %v1113 = vpop.f32.mrf.mxu0
  %1114 = vdwg.mxu0
  %1115 = vmatprep.subr.mxu0 0.0
  %1116 = vmatpush1.msra.mxu0 0.0
  %1117 = vmatprep.subr.mxu0 0.0
  %1118 = vmatpush1.msra.mxu0 0.0
  %1119 = vmatprep.subr.mxu0 0.0
  %1120 = vmatpush1.msra.mxu0 0.0
  %1121 = vmatprep.subr.mxu0 0.0
  %1122 = vmatpush1.msra.mxu0 0.0
  %1123 = vmatprep.subr.mxu0 0.0
  %1124 = vmatpush1.msra.mxu0 0.0
  %1125 = vmatprep.subr.mxu0 0.0
  %1126 = vmatpush1.msra.mxu0 0.0
  %1127 = vmatprep.subr.mxu0 0.0
  %1128 = vmatpush1.msra.mxu0 0.0
  %1129 = vmatprep.subr.mxu0 0.0
  %1130 = vmatpush1.msra.mxu0 0.0
  %1131 = vmatprep.subr.mxu0 0.0
  %1132 = vmatpush1.msra.mxu0 0.0
  %1133 = vmatprep.subr.mxu0 0.0
  %1134 = vmatpush1.msra.mxu0 0.0
  %1135 = vmatprep.subr.mxu0 0.0
  %1136 = vmatpush1.msra.mxu0 0.0
  %1137 = vmatprep.subr.mxu0 0.0
  %1138 = vmatpush1.msra.mxu0 0.0
  %1139 = vmatprep.subr.mxu0 0.0
  %1140 = vmatpush1.msra.mxu0 0.0
  %1141 = vmatprep.subr.mxu0 0.0
  %1142 = vmatpush1.msra.mxu0 0.0
  %1143 = vmatprep.subr.mxu0 0.0
  %1144 = vmatpush1.msra.mxu0 0.0
  %1145 = vmatprep.subr.mxu0 0.0
  %1146 = vmatpush1.msra.mxu0 %v957
  %1147 = vmatprep.subr.mxu0 0.0
  %1148 = vmatpush2.msra.mxu0 0.0
  %1149 = vmatprep.subr.mxu0 0.0
  %1150 = vmatpush2.msra.mxu0 0.0
  %1151 = vmatprep.subr.mxu0 0.0
  %1152 = vmatpush2.msra.mxu0 0.0
  %1153 = vmatprep.subr.mxu0 0.0
  %1154 = vmatpush2.msra.mxu0 0.0
  %1155 = vmatprep.subr.mxu0 0.0
  %1156 = vmatpush2.msra.mxu0 0.0
  %1157 = vmatprep.subr.mxu0 0.0
  %1158 = vmatpush2.msra.mxu0 0.0
  %1159 = vmatprep.subr.mxu0 0.0
  %1160 = vmatpush2.msra.mxu0 0.0
  %1161 = vmatprep.subr.mxu0 0.0
  %1162 = vmatpush2.msra.mxu0 0.0
  %1163 = vmatprep.subr.mxu0 0.0
  %1164 = vmatpush2.msra.mxu0 0.0
  %1165 = vmatprep.subr.mxu0 0.0
  %1166 = vmatpush2.msra.mxu0 0.0
  %1167 = vmatprep.subr.mxu0 0.0
  %1168 = vmatpush2.msra.mxu0 0.0
  %1169 = vmatprep.subr.mxu0 0.0
  %1170 = vmatpush2.msra.mxu0 0.0
  %1171 = vmatprep.subr.mxu0 0.0
  %1172 = vmatpush2.msra.mxu0 0.0
  %1173 = vmatprep.subr.mxu0 0.0
  %1174 = vmatpush2.msra.mxu0 0.0
  %1175 = vmatprep.subr.mxu0 0.0
  %1176 = vmatpush2.msra.mxu0 0.0
  %1177 = vmatprep.subr.mxu0 0.0
  %1178 = vmatpush2.msra.mxu0 0.0
  %1179 = vmatprep.mubr.f32.mxu0 0.0
  %1180 = vmatmul.mubr.f32.gmra.mxu0 %v961
  %v1181 = vpop.f32.mrf.mxu0
  %v1182 = vadd.f32 0.0, %v1181
  %v1183 = vpop.f32.mrf.mxu0
  %1184 = vdwg.mxu0
  %v1186 = vsel %vm1041, %v1182, 0
  %1188 = vmatprep.subr.mxu0 0.0
  %1189 = vmatpush1.msra.mxu0 0.0
  %1190 = vmatprep.subr.mxu0 0.0
  %1191 = vmatpush1.msra.mxu0 0.0
  %1192 = vmatprep.subr.mxu0 0.0
  %1193 = vmatpush1.msra.mxu0 0.0
  %1194 = vmatprep.subr.mxu0 0.0
  %1195 = vmatpush1.msra.mxu0 0.0
  %1196 = vmatprep.subr.mxu0 0.0
  %1197 = vmatpush1.msra.mxu0 0.0
  %1198 = vmatprep.subr.mxu0 0.0
  %1199 = vmatpush1.msra.mxu0 0.0
  %1200 = vmatprep.subr.mxu0 0.0
  %1201 = vmatpush1.msra.mxu0 0.0
  %1202 = vmatprep.subr.mxu0 0.0
  %1203 = vmatpush1.msra.mxu0 0.0
  %1204 = vmatprep.subr.mxu0 0.0
  %1205 = vmatpush1.msra.mxu0 %v1040
  %1206 = vmatprep.subr.mxu0 0.0
  %1207 = vmatpush1.msra.mxu0 %v1039
  %1208 = vmatprep.subr.mxu0 0.0
  %1209 = vmatpush1.msra.mxu0 %v1038
  %1210 = vmatprep.subr.mxu0 0.0
  %1211 = vmatpush1.msra.mxu0 %v1037
  %1212 = vmatprep.subr.mxu0 0.0
  %1213 = vmatpush1.msra.mxu0 %v1036
  %1214 = vmatprep.subr.mxu0 0.0
  %1215 = vmatpush1.msra.mxu0 %v1035
  %1216 = vmatprep.subr.mxu0 0.0
  %1217 = vmatpush1.msra.mxu0 %v1034
  %1218 = vmatprep.subr.mxu0 0.0
  %1219 = vmatpush1.msra.mxu0 %v1033
  %1220 = vmatprep.subr.mxu0 0.0
  %1221 = vmatpush2.msra.mxu0 0.0
  %1222 = vmatprep.subr.mxu0 0.0
  %1223 = vmatpush2.msra.mxu0 0.0
  %1224 = vmatprep.subr.mxu0 0.0
  %1225 = vmatpush2.msra.mxu0 0.0
  %1226 = vmatprep.subr.mxu0 0.0
  %1227 = vmatpush2.msra.mxu0 0.0
  %1228 = vmatprep.subr.mxu0 0.0
  %1229 = vmatpush2.msra.mxu0 0.0
  %1230 = vmatprep.subr.mxu0 0.0
  %1231 = vmatpush2.msra.mxu0 0.0
  %1232 = vmatprep.subr.mxu0 0.0
  %1233 = vmatpush2.msra.mxu0 0.0
  %1234 = vmatprep.subr.mxu0 0.0
  %1235 = vmatpush2.msra.mxu0 0.0
  %1236 = vmatprep.subr.mxu0 0.0
  %1237 = vmatpush2.msra.mxu0 0.0
  %1238 = vmatprep.subr.mxu0 0.0
  %1239 = vmatpush2.msra.mxu0 0.0
  %1240 = vmatprep.subr.mxu0 0.0
  %1241 = vmatpush2.msra.mxu0 0.0
  %1242 = vmatprep.subr.mxu0 0.0
  %1243 = vmatpush2.msra.mxu0 0.0
  %1244 = vmatprep.subr.mxu0 0.0
  %1245 = vmatpush2.msra.mxu0 0.0
  %1246 = vmatprep.subr.mxu0 0.0
  %1247 = vmatpush2.msra.mxu0 0.0
  %1248 = vmatprep.subr.mxu0 0.0
  %1249 = vmatpush2.msra.mxu0 0.0
  %1250 = vmatprep.subr.mxu0 0.0
  %1251 = vmatpush2.msra.mxu0 0.0
  %1252 = vmatprep.mubr.f32.mxu0 0.0
  %1253 = vmatmul.mubr.f32.gmra.mxu0 %v1186
  %v1254 = vpop.f32.mrf.mxu0
  %v1255 = vadd.f32 0.0, %v1254
  %v1256 = vpop.f32.mrf.mxu0
  %1257 = vdwg.mxu0
  %v1258 = vmul.f32 %v955, %v955
  %1259 = vmatprep.subr.mxu0 0.0
  %1260 = vmatpush1.msra.mxu0 0.0
  %1261 = vmatprep.subr.mxu0 0.0
  %1262 = vmatpush1.msra.mxu0 0.0
  %1263 = vmatprep.subr.mxu0 0.0
  %1264 = vmatpush1.msra.mxu0 0.0
  %1265 = vmatprep.subr.mxu0 0.0
  %1266 = vmatpush1.msra.mxu0 0.0
  %1267 = vmatprep.subr.mxu0 0.0
  %1268 = vmatpush1.msra.mxu0 0.0
  %1269 = vmatprep.subr.mxu0 0.0
  %1270 = vmatpush1.msra.mxu0 0.0
  %1271 = vmatprep.subr.mxu0 0.0
  %1272 = vmatpush1.msra.mxu0 0.0
  %1273 = vmatprep.subr.mxu0 0.0
  %1274 = vmatpush1.msra.mxu0 0.0
  %1275 = vmatprep.subr.mxu0 0.0
  %1276 = vmatpush1.msra.mxu0 0.0
  %1277 = vmatprep.subr.mxu0 0.0
  %1278 = vmatpush1.msra.mxu0 0.0
  %1279 = vmatprep.subr.mxu0 0.0
  %1280 = vmatpush1.msra.mxu0 0.0
  %1281 = vmatprep.subr.mxu0 0.0
  %1282 = vmatpush1.msra.mxu0 0.0
  %1283 = vmatprep.subr.mxu0 0.0
  %1284 = vmatpush1.msra.mxu0 0.0
  %1285 = vmatprep.subr.mxu0 0.0
  %1286 = vmatpush1.msra.mxu0 0.0
  %1287 = vmatprep.subr.mxu0 0.0
  %1288 = vmatpush1.msra.mxu0 0.0
  %1289 = vmatprep.subr.mxu0 0.0
  %1290 = vmatpush1.msra.mxu0 %v1258
  %1291 = vmatprep.subr.mxu0 0.0
  %1292 = vmatpush2.msra.mxu0 0.0
  %1293 = vmatprep.subr.mxu0 0.0
  %1294 = vmatpush2.msra.mxu0 0.0
  %1295 = vmatprep.subr.mxu0 0.0
  %1296 = vmatpush2.msra.mxu0 0.0
  %1297 = vmatprep.subr.mxu0 0.0
  %1298 = vmatpush2.msra.mxu0 0.0
  %1299 = vmatprep.subr.mxu0 0.0
  %1300 = vmatpush2.msra.mxu0 0.0
  %1301 = vmatprep.subr.mxu0 0.0
  %1302 = vmatpush2.msra.mxu0 0.0
  %1303 = vmatprep.subr.mxu0 0.0
  %1304 = vmatpush2.msra.mxu0 0.0
  %1305 = vmatprep.subr.mxu0 0.0
  %1306 = vmatpush2.msra.mxu0 0.0
  %1307 = vmatprep.subr.mxu0 0.0
  %1308 = vmatpush2.msra.mxu0 0.0
  %1309 = vmatprep.subr.mxu0 0.0
  %1310 = vmatpush2.msra.mxu0 0.0
  %1311 = vmatprep.subr.mxu0 0.0
  %1312 = vmatpush2.msra.mxu0 0.0
  %1313 = vmatprep.subr.mxu0 0.0
  %1314 = vmatpush2.msra.mxu0 0.0
  %1315 = vmatprep.subr.mxu0 0.0
  %1316 = vmatpush2.msra.mxu0 0.0
  %1317 = vmatprep.subr.mxu0 0.0
  %1318 = vmatpush2.msra.mxu0 0.0
  %1319 = vmatprep.subr.mxu0 0.0
  %1320 = vmatpush2.msra.mxu0 0.0
  %1321 = vmatprep.subr.mxu0 0.0
  %1322 = vmatpush2.msra.mxu0 0.0
  %1323 = vmatprep.mubr.f32.mxu0 0.0
  %1324 = vmatmul.mubr.f32.gmra.mxu0 %v961
  %v1325 = vpop.f32.mrf.mxu0
  %v1326 = vadd.f32 0.0, %v1325
  %v1327 = vpop.f32.mrf.mxu0
  %1328 = vdwg.mxu0
  %v1330 = vsel %vm1041, %v1326, 0
  %1332 = vmatprep.subr.mxu0 0.0
  %1333 = vmatpush1.msra.mxu0 0.0
  %1334 = vmatprep.subr.mxu0 0.0
  %1335 = vmatpush1.msra.mxu0 0.0
  %1336 = vmatprep.subr.mxu0 0.0
  %1337 = vmatpush1.msra.mxu0 0.0
  %1338 = vmatprep.subr.mxu0 0.0
  %1339 = vmatpush1.msra.mxu0 0.0
  %1340 = vmatprep.subr.mxu0 0.0
  %1341 = vmatpush1.msra.mxu0 0.0
  %1342 = vmatprep.subr.mxu0 0.0
  %1343 = vmatpush1.msra.mxu0 0.0
  %1344 = vmatprep.subr.mxu0 0.0
  %1345 = vmatpush1.msra.mxu0 0.0
  %1346 = vmatprep.subr.mxu0 0.0
  %1347 = vmatpush1.msra.mxu0 0.0
  %1348 = vmatprep.subr.mxu0 0.0
  %1349 = vmatpush1.msra.mxu0 %v1040
  %1350 = vmatprep.subr.mxu0 0.0
  %1351 = vmatpush1.msra.mxu0 %v1039
  %1352 = vmatprep.subr.mxu0 0.0
  %1353 = vmatpush1.msra.mxu0 %v1038
  %1354 = vmatprep.subr.mxu0 0.0
  %1355 = vmatpush1.msra.mxu0 %v1037
  %1356 = vmatprep.subr.mxu0 0.0
  %1357 = vmatpush1.msra.mxu0 %v1036
  %1358 = vmatprep.subr.mxu0 0.0
  %1359 = vmatpush1.msra.mxu0 %v1035
  %1360 = vmatprep.subr.mxu0 0.0
  %1361 = vmatpush1.msra.mxu0 %v1034
  %1362 = vmatprep.subr.mxu0 0.0
  %1363 = vmatpush1.msra.mxu0 %v1033
  %1364 = vmatprep.subr.mxu0 0.0
  %1365 = vmatpush2.msra.mxu0 0.0
  %1366 = vmatprep.subr.mxu0 0.0
  %1367 = vmatpush2.msra.mxu0 0.0
  %1368 = vmatprep.subr.mxu0 0.0
  %1369 = vmatpush2.msra.mxu0 0.0
  %1370 = vmatprep.subr.mxu0 0.0
  %1371 = vmatpush2.msra.mxu0 0.0
  %1372 = vmatprep.subr.mxu0 0.0
  %1373 = vmatpush2.msra.mxu0 0.0
  %1374 = vmatprep.subr.mxu0 0.0
  %1375 = vmatpush2.msra.mxu0 0.0
  %1376 = vmatprep.subr.mxu0 0.0
  %1377 = vmatpush2.msra.mxu0 0.0
  %1378 = vmatprep.subr.mxu0 0.0
  %1379 = vmatpush2.msra.mxu0 0.0
  %1380 = vmatprep.subr.mxu0 0.0
  %1381 = vmatpush2.msra.mxu0 0.0
  %1382 = vmatprep.subr.mxu0 0.0
  %1383 = vmatpush2.msra.mxu0 0.0
  %1384 = vmatprep.subr.mxu0 0.0
  %1385 = vmatpush2.msra.mxu0 0.0
  %1386 = vmatprep.subr.mxu0 0.0
  %1387 = vmatpush2.msra.mxu0 0.0
  %1388 = vmatprep.subr.mxu0 0.0
  %1389 = vmatpush2.msra.mxu0 0.0
  %1390 = vmatprep.subr.mxu0 0.0
  %1391 = vmatpush2.msra.mxu0 0.0
  %1392 = vmatprep.subr.mxu0 0.0
  %1393 = vmatpush2.msra.mxu0 0.0
  %1394 = vmatprep.subr.mxu0 0.0
  %1395 = vmatpush2.msra.mxu0 0.0
  %1396 = vmatprep.mubr.f32.mxu0 0.0
  %1397 = vmatmul.mubr.f32.gmra.mxu0 %v1330
  %v1398 = vpop.f32.mrf.mxu0
  %v1399 = vadd.f32 0.0, %v1398
  %v1400 = vpop.f32.mrf.mxu0
  %1401 = vdwg.mxu0
  %v1402 = vmul.f32 %v957, %v957
  %1403 = vmatprep.subr.mxu0 0.0
  %1404 = vmatpush1.msra.mxu0 0.0
  %1405 = vmatprep.subr.mxu0 0.0
  %1406 = vmatpush1.msra.mxu0 0.0
  %1407 = vmatprep.subr.mxu0 0.0
  %1408 = vmatpush1.msra.mxu0 0.0
  %1409 = vmatprep.subr.mxu0 0.0
  %1410 = vmatpush1.msra.mxu0 0.0
  %1411 = vmatprep.subr.mxu0 0.0
  %1412 = vmatpush1.msra.mxu0 0.0
  %1413 = vmatprep.subr.mxu0 0.0
  %1414 = vmatpush1.msra.mxu0 0.0
  %1415 = vmatprep.subr.mxu0 0.0
  %1416 = vmatpush1.msra.mxu0 0.0
  %1417 = vmatprep.subr.mxu0 0.0
  %1418 = vmatpush1.msra.mxu0 0.0
  %1419 = vmatprep.subr.mxu0 0.0
  %1420 = vmatpush1.msra.mxu0 0.0
  %1421 = vmatprep.subr.mxu0 0.0
  %1422 = vmatpush1.msra.mxu0 0.0
  %1423 = vmatprep.subr.mxu0 0.0
  %1424 = vmatpush1.msra.mxu0 0.0
  %1425 = vmatprep.subr.mxu0 0.0
  %1426 = vmatpush1.msra.mxu0 0.0
  %1427 = vmatprep.subr.mxu0 0.0
  %1428 = vmatpush1.msra.mxu0 0.0
  %1429 = vmatprep.subr.mxu0 0.0
  %1430 = vmatpush1.msra.mxu0 0.0
  %1431 = vmatprep.subr.mxu0 0.0
  %1432 = vmatpush1.msra.mxu0 0.0
  %1433 = vmatprep.subr.mxu0 0.0
  %1434 = vmatpush1.msra.mxu0 %v1402
  %1435 = vmatprep.subr.mxu0 0.0
  %1436 = vmatpush2.msra.mxu0 0.0
  %1437 = vmatprep.subr.mxu0 0.0
  %1438 = vmatpush2.msra.mxu0 0.0
  %1439 = vmatprep.subr.mxu0 0.0
  %1440 = vmatpush2.msra.mxu0 0.0
  %1441 = vmatprep.subr.mxu0 0.0
  %1442 = vmatpush2.msra.mxu0 0.0
  %1443 = vmatprep.subr.mxu0 0.0
  %1444 = vmatpush2.msra.mxu0 0.0
  %1445 = vmatprep.subr.mxu0 0.0
  %1446 = vmatpush2.msra.mxu0 0.0
  %1447 = vmatprep.subr.mxu0 0.0
  %1448 = vmatpush2.msra.mxu0 0.0
  %1449 = vmatprep.subr.mxu0 0.0
  %1450 = vmatpush2.msra.mxu0 0.0
  %1451 = vmatprep.subr.mxu0 0.0
  %1452 = vmatpush2.msra.mxu0 0.0
  %1453 = vmatprep.subr.mxu0 0.0
  %1454 = vmatpush2.msra.mxu0 0.0
  %1455 = vmatprep.subr.mxu0 0.0
  %1456 = vmatpush2.msra.mxu0 0.0
  %1457 = vmatprep.subr.mxu0 0.0
  %1458 = vmatpush2.msra.mxu0 0.0
  %1459 = vmatprep.subr.mxu0 0.0
  %1460 = vmatpush2.msra.mxu0 0.0
  %1461 = vmatprep.subr.mxu0 0.0
  %1462 = vmatpush2.msra.mxu0 0.0
  %1463 = vmatprep.subr.mxu0 0.0
  %1464 = vmatpush2.msra.mxu0 0.0
  %1465 = vmatprep.subr.mxu0 0.0
  %1466 = vmatpush2.msra.mxu0 0.0
  %1467 = vmatprep.mubr.f32.mxu0 0.0
  %1468 = vmatmul.mubr.f32.gmra.mxu0 %v961
  %v1469 = vpop.f32.mrf.mxu0
  %v1470 = vadd.f32 0.0, %v1469
  %v1471 = vpop.f32.mrf.mxu0
  %1472 = vdwg.mxu0
  %v1474 = vsel %vm1041, %v1470, 0
  %1476 = vmatprep.subr.mxu0 0.0
  %1477 = vmatpush1.msra.mxu0 0.0
  %1478 = vmatprep.subr.mxu0 0.0
  %1479 = vmatpush1.msra.mxu0 0.0
  %1480 = vmatprep.subr.mxu0 0.0
  %1481 = vmatpush1.msra.mxu0 0.0
  %1482 = vmatprep.subr.mxu0 0.0
  %1483 = vmatpush1.msra.mxu0 0.0
  %1484 = vmatprep.subr.mxu0 0.0
  %1485 = vmatpush1.msra.mxu0 0.0
  %1486 = vmatprep.subr.mxu0 0.0
  %1487 = vmatpush1.msra.mxu0 0.0
  %1488 = vmatprep.subr.mxu0 0.0
  %1489 = vmatpush1.msra.mxu0 0.0
  %1490 = vmatprep.subr.mxu0 0.0
  %1491 = vmatpush1.msra.mxu0 0.0
  %1492 = vmatprep.subr.mxu0 0.0
  %1493 = vmatpush1.msra.mxu0 %v1040
  %1494 = vmatprep.subr.mxu0 0.0
  %1495 = vmatpush1.msra.mxu0 %v1039
  %1496 = vmatprep.subr.mxu0 0.0
  %1497 = vmatpush1.msra.mxu0 %v1038
  %1498 = vmatprep.subr.mxu0 0.0
  %1499 = vmatpush1.msra.mxu0 %v1037
  %1500 = vmatprep.subr.mxu0 0.0
  %1501 = vmatpush1.msra.mxu0 %v1036
  %1502 = vmatprep.subr.mxu0 0.0
  %1503 = vmatpush1.msra.mxu0 %v1035
  %1504 = vmatprep.subr.mxu0 0.0
  %1505 = vmatpush1.msra.mxu0 %v1034
  %1506 = vmatprep.subr.mxu0 0.0
  %1507 = vmatpush1.msra.mxu0 %v1033
  %1508 = vmatprep.subr.mxu0 0.0
  %1509 = vmatpush2.msra.mxu0 0.0
  %1510 = vmatprep.subr.mxu0 0.0
  %1511 = vmatpush2.msra.mxu0 0.0
  %1512 = vmatprep.subr.mxu0 0.0
  %1513 = vmatpush2.msra.mxu0 0.0
  %1514 = vmatprep.subr.mxu0 0.0
  %1515 = vmatpush2.msra.mxu0 0.0
  %1516 = vmatprep.subr.mxu0 0.0
  %1517 = vmatpush2.msra.mxu0 0.0
  %1518 = vmatprep.subr.mxu0 0.0
  %1519 = vmatpush2.msra.mxu0 0.0
  %1520 = vmatprep.subr.mxu0 0.0
  %1521 = vmatpush2.msra.mxu0 0.0
  %1522 = vmatprep.subr.mxu0 0.0
  %1523 = vmatpush2.msra.mxu0 0.0
  %1524 = vmatprep.subr.mxu0 0.0
  %1525 = vmatpush2.msra.mxu0 0.0
  %1526 = vmatprep.subr.mxu0 0.0
  %1527 = vmatpush2.msra.mxu0 0.0
  %1528 = vmatprep.subr.mxu0 0.0
  %1529 = vmatpush2.msra.mxu0 0.0
  %1530 = vmatprep.subr.mxu0 0.0
  %1531 = vmatpush2.msra.mxu0 0.0
  %1532 = vmatprep.subr.mxu0 0.0
  %1533 = vmatpush2.msra.mxu0 0.0
  %1534 = vmatprep.subr.mxu0 0.0
  %1535 = vmatpush2.msra.mxu0 0.0
  %1536 = vmatprep.subr.mxu0 0.0
  %1537 = vmatpush2.msra.mxu0 0.0
  %1538 = vmatprep.subr.mxu0 0.0
  %1539 = vmatpush2.msra.mxu0 0.0
  %1540 = vmatprep.mubr.f32.mxu0 0.0
  %1541 = vmatmul.mubr.f32.gmra.mxu0 %v1474
  %v1542 = vpop.f32.mrf.mxu0
  %v1543 = vadd.f32 0.0, %v1542
  %v1544 = vpop.f32.mrf.mxu0
  %1545 = vdwg.mxu0
  %v1546 = vmul.f32 %v955, %v957
  %1547 = vmatprep.subr.mxu0 0.0
  %1548 = vmatpush1.msra.mxu0 0.0
  %1549 = vmatprep.subr.mxu0 0.0
  %1550 = vmatpush1.msra.mxu0 0.0
  %1551 = vmatprep.subr.mxu0 0.0
  %1552 = vmatpush1.msra.mxu0 0.0
  %1553 = vmatprep.subr.mxu0 0.0
  %1554 = vmatpush1.msra.mxu0 0.0
  %1555 = vmatprep.subr.mxu0 0.0
  %1556 = vmatpush1.msra.mxu0 0.0
  %1557 = vmatprep.subr.mxu0 0.0
  %1558 = vmatpush1.msra.mxu0 0.0
  %1559 = vmatprep.subr.mxu0 0.0
  %1560 = vmatpush1.msra.mxu0 0.0
  %1561 = vmatprep.subr.mxu0 0.0
  %1562 = vmatpush1.msra.mxu0 0.0
  %1563 = vmatprep.subr.mxu0 0.0
  %1564 = vmatpush1.msra.mxu0 0.0
  %1565 = vmatprep.subr.mxu0 0.0
  %1566 = vmatpush1.msra.mxu0 0.0
  %1567 = vmatprep.subr.mxu0 0.0
  %1568 = vmatpush1.msra.mxu0 0.0
  %1569 = vmatprep.subr.mxu0 0.0
  %1570 = vmatpush1.msra.mxu0 0.0
  %1571 = vmatprep.subr.mxu0 0.0
  %1572 = vmatpush1.msra.mxu0 0.0
  %1573 = vmatprep.subr.mxu0 0.0
  %1574 = vmatpush1.msra.mxu0 0.0
  %1575 = vmatprep.subr.mxu0 0.0
  %1576 = vmatpush1.msra.mxu0 0.0
  %1577 = vmatprep.subr.mxu0 0.0
  %1578 = vmatpush1.msra.mxu0 %v1546
  %1579 = vmatprep.subr.mxu0 0.0
  %1580 = vmatpush2.msra.mxu0 0.0
  %1581 = vmatprep.subr.mxu0 0.0
  %1582 = vmatpush2.msra.mxu0 0.0
  %1583 = vmatprep.subr.mxu0 0.0
  %1584 = vmatpush2.msra.mxu0 0.0
  %1585 = vmatprep.subr.mxu0 0.0
  %1586 = vmatpush2.msra.mxu0 0.0
  %1587 = vmatprep.subr.mxu0 0.0
  %1588 = vmatpush2.msra.mxu0 0.0
  %1589 = vmatprep.subr.mxu0 0.0
  %1590 = vmatpush2.msra.mxu0 0.0
  %1591 = vmatprep.subr.mxu0 0.0
  %1592 = vmatpush2.msra.mxu0 0.0
  %1593 = vmatprep.subr.mxu0 0.0
  %1594 = vmatpush2.msra.mxu0 0.0
  %1595 = vmatprep.subr.mxu0 0.0
  %1596 = vmatpush2.msra.mxu0 0.0
  %1597 = vmatprep.subr.mxu0 0.0
  %1598 = vmatpush2.msra.mxu0 0.0
  %1599 = vmatprep.subr.mxu0 0.0
  %1600 = vmatpush2.msra.mxu0 0.0
  %1601 = vmatprep.subr.mxu0 0.0
  %1602 = vmatpush2.msra.mxu0 0.0
  %1603 = vmatprep.subr.mxu0 0.0
  %1604 = vmatpush2.msra.mxu0 0.0
  %1605 = vmatprep.subr.mxu0 0.0
  %1606 = vmatpush2.msra.mxu0 0.0
  %1607 = vmatprep.subr.mxu0 0.0
  %1608 = vmatpush2.msra.mxu0 0.0
  %1609 = vmatprep.subr.mxu0 0.0
  %1610 = vmatpush2.msra.mxu0 0.0
  %1611 = vmatprep.mubr.f32.mxu0 0.0
  %1612 = vmatmul.mubr.f32.gmra.mxu0 %v961
  %v1613 = vpop.f32.mrf.mxu0
  %v1614 = vadd.f32 0.0, %v1613
  %v1615 = vpop.f32.mrf.mxu0
  %1616 = vdwg.mxu0
  %v1618 = vsel %vm1041, %v1614, 0
  %1620 = vmatprep.subr.mxu0 0.0
  %1621 = vmatpush1.msra.mxu0 0.0
  %1622 = vmatprep.subr.mxu0 0.0
  %1623 = vmatpush1.msra.mxu0 0.0
  %1624 = vmatprep.subr.mxu0 0.0
  %1625 = vmatpush1.msra.mxu0 0.0
  %1626 = vmatprep.subr.mxu0 0.0
  %1627 = vmatpush1.msra.mxu0 0.0
  %1628 = vmatprep.subr.mxu0 0.0
  %1629 = vmatpush1.msra.mxu0 0.0
  %1630 = vmatprep.subr.mxu0 0.0
  %1631 = vmatpush1.msra.mxu0 0.0
  %1632 = vmatprep.subr.mxu0 0.0
  %1633 = vmatpush1.msra.mxu0 0.0
  %1634 = vmatprep.subr.mxu0 0.0
  %1635 = vmatpush1.msra.mxu0 0.0
  %1636 = vmatprep.subr.mxu0 0.0
  %1637 = vmatpush1.msra.mxu0 %v1040
  %1638 = vmatprep.subr.mxu0 0.0
  %1639 = vmatpush1.msra.mxu0 %v1039
  %1640 = vmatprep.subr.mxu0 0.0
  %1641 = vmatpush1.msra.mxu0 %v1038
  %1642 = vmatprep.subr.mxu0 0.0
  %1643 = vmatpush1.msra.mxu0 %v1037
  %1644 = vmatprep.subr.mxu0 0.0
  %1645 = vmatpush1.msra.mxu0 %v1036
  %1646 = vmatprep.subr.mxu0 0.0
  %1647 = vmatpush1.msra.mxu0 %v1035
  %1648 = vmatprep.subr.mxu0 0.0
  %1649 = vmatpush1.msra.mxu0 %v1034
  %1650 = vmatprep.subr.mxu0 0.0
  %1651 = vmatpush1.msra.mxu0 %v1033
  %1652 = vmatprep.subr.mxu0 0.0
  %1653 = vmatpush2.msra.mxu0 0.0
  %1654 = vmatprep.subr.mxu0 0.0
  %1655 = vmatpush2.msra.mxu0 0.0
  %1656 = vmatprep.subr.mxu0 0.0
  %1657 = vmatpush2.msra.mxu0 0.0
  %1658 = vmatprep.subr.mxu0 0.0
  %1659 = vmatpush2.msra.mxu0 0.0
  %1660 = vmatprep.subr.mxu0 0.0
  %1661 = vmatpush2.msra.mxu0 0.0
  %1662 = vmatprep.subr.mxu0 0.0
  %1663 = vmatpush2.msra.mxu0 0.0
  %1664 = vmatprep.subr.mxu0 0.0
  %1665 = vmatpush2.msra.mxu0 0.0
  %1666 = vmatprep.subr.mxu0 0.0
  %1667 = vmatpush2.msra.mxu0 0.0
  %1668 = vmatprep.subr.mxu0 0.0
  %1669 = vmatpush2.msra.mxu0 0.0
  %1670 = vmatprep.subr.mxu0 0.0
  %1671 = vmatpush2.msra.mxu0 0.0
  %1672 = vmatprep.subr.mxu0 0.0
  %1673 = vmatpush2.msra.mxu0 0.0
  %1674 = vmatprep.subr.mxu0 0.0
  %1675 = vmatpush2.msra.mxu0 0.0
  %1676 = vmatprep.subr.mxu0 0.0
  %1677 = vmatpush2.msra.mxu0 0.0
  %1678 = vmatprep.subr.mxu0 0.0
  %1679 = vmatpush2.msra.mxu0 0.0
  %1680 = vmatprep.subr.mxu0 0.0
  %1681 = vmatpush2.msra.mxu0 0.0
  %1682 = vmatprep.subr.mxu0 0.0
  %1683 = vmatpush2.msra.mxu0 0.0
  %1684 = vmatprep.mubr.f32.mxu0 0.0
  %1685 = vmatmul.mubr.f32.gmra.mxu0 %v1618
  %v1686 = vpop.f32.mrf.mxu0
  %v1687 = vadd.f32 0.0, %v1686
  %v1688 = vpop.f32.mrf.mxu0
  %1689 = vdwg.mxu0
  %v1690 = vmul.f32 %v1112, %v1255
  %v1691 = vmul.f32 %v1112, %v1112
  %v1692 = vmul.f32 %v1255, %v1255
  %v1693 = vmul.f32 %v1690, 2.0
  %v1694 = vadd.f32 %v1693, 0.0001
  %v1695 = vsub.f32 %v1687, %v1690
  %v1696 = vmul.f32 %v1695, 2.0
  %v1697 = vadd.f32 %v1696, 0.0009
  %v1698 = vmul.f32 %v1694, %v1697
  %v1699 = vadd.f32 %v1691, %v1692
  %v1700 = vadd.f32 %v1699, 0.0001
  %v1701 = vsub.f32 %v1399, %v1691
  %v1702 = vsub.f32 %v1543, %v1692
  %v1703 = vadd.f32 %v1701, %v1702
  %v1704 = vadd.f32 %v1703, 0.0009
  %v1705 = vmul.f32 %v1700, %v1704
  %v1706 = vrcp.pop %v1705
  %v1707 = vmul.f32 %v1705, %v1706
  %v1708 = vsub.f32 2.0, %v1707
  %v1709 = vmul.f32 %v1706, %v1708
  %v1710 = vmul.f32 %v1698, %v1709
  %v1711 = vsel %vm1041, %v1710, 0.0
  %1712 = vadd.xlane.f32.xlu0 %v1711
  %v1713 = vpop.xlane.xlu0 %1712
  %v1714 = vrot.slane %v1713, 4
  %v1715 = vadd.f32 %v1713, %v1714
  %v1716 = vrot.slane %v1715, 2
  %v1717 = vadd.f32 %v1715, %v1716
  %v1718 = vrot.slane %v1717, 1
  %v1719 = vadd.f32 %v1717, %v1718
  %v1720 = vmul.f32 %v1719, 0.001953125
  %v1721 = vadd.f32 %v954, %v1720
  %1722 = vst [vmem:[%s12] sm:$0xff] %v1721
  %p1723 = scmp.eq.s32.totalorder 0, 0
  // Predicated region
  $region50: #{mssim_loss_pallas.1} parent=0 // pred_check
    %p1724 = pneg %p1723
  $region51: #{mssim_loss_pallas.1} parent=0 // pred_check_branch
    %1726 = sbr.rel (%p1724) target = $region53
  $region52: #{mssim_loss_pallas.1} parent=0 // pred_region
    %v1727 = vld [vmem:[%s2] sm:$0xf]
    %s1728 = scalar_lea.vmem %s2, 4
    %v1729 = vld [vmem:[%s1728] sm:$0xf]
    %v1730 = vld [vmem:[%s6] sm:$0xf]
    %vm1731 = vcmask 31744
    %v1733 = vsel %vm1731, %v1730, 0
    %vm1735 = vcmask 1043456
    %v1737 = vsel %vm1735, %v1727, 0
    %1739 = vmatprep.subr.mxu0 0.0
    %1740 = vmatpush1.msra.mxu0 0.0
    %1741 = vmatprep.subr.mxu0 0.0
    %1742 = vmatpush1.msra.mxu0 0.0
    %1743 = vmatprep.subr.mxu0 0.0
    %1744 = vmatpush1.msra.mxu0 0.0
    %1745 = vmatprep.subr.mxu0 0.0
    %1746 = vmatpush1.msra.mxu0 0.0
    %1747 = vmatprep.subr.mxu0 0.0
    %1748 = vmatpush1.msra.mxu0 0.0
    %1749 = vmatprep.subr.mxu0 0.0
    %1750 = vmatpush1.msra.mxu0 0.0
    %1751 = vmatprep.subr.mxu0 0.0
    %1752 = vmatpush1.msra.mxu0 0.0
    %1753 = vmatprep.subr.mxu0 0.0
    %1754 = vmatpush1.msra.mxu0 0.0
    %1755 = vmatprep.subr.mxu0 0.0
    %1756 = vmatpush1.msra.mxu0 0.0
    %1757 = vmatprep.subr.mxu0 0.0
    %1758 = vmatpush1.msra.mxu0 0.0
    %1759 = vmatprep.subr.mxu0 0.0
    %1760 = vmatpush1.msra.mxu0 0.0
    %1761 = vmatprep.subr.mxu0 0.0
    %1762 = vmatpush1.msra.mxu0 0.0
    %1763 = vmatprep.subr.mxu0 0.0
    %1764 = vmatpush1.msra.mxu0 0.0
    %1765 = vmatprep.subr.mxu0 0.0
    %1766 = vmatpush1.msra.mxu0 0.0
    %1767 = vmatprep.subr.mxu0 0.0
    %1768 = vmatpush1.msra.mxu0 0.0
    %1769 = vmatprep.subr.mxu0 0.0
    %1770 = vmatpush1.msra.mxu0 %v1737
    %1771 = vmatprep.subr.mxu0 0.0
    %1772 = vmatpush2.msra.mxu0 0.0
    %1773 = vmatprep.subr.mxu0 0.0
    %1774 = vmatpush2.msra.mxu0 0.0
    %1775 = vmatprep.subr.mxu0 0.0
    %1776 = vmatpush2.msra.mxu0 0.0
    %1777 = vmatprep.subr.mxu0 0.0
    %1778 = vmatpush2.msra.mxu0 0.0
    %1779 = vmatprep.subr.mxu0 0.0
    %1780 = vmatpush2.msra.mxu0 0.0
    %1781 = vmatprep.subr.mxu0 0.0
    %1782 = vmatpush2.msra.mxu0 0.0
    %1783 = vmatprep.subr.mxu0 0.0
    %1784 = vmatpush2.msra.mxu0 0.0
    %1785 = vmatprep.subr.mxu0 0.0
    %1786 = vmatpush2.msra.mxu0 0.0
    %1787 = vmatprep.subr.mxu0 0.0
    %1788 = vmatpush2.msra.mxu0 0.0
    %1789 = vmatprep.subr.mxu0 0.0
    %1790 = vmatpush2.msra.mxu0 0.0
    %1791 = vmatprep.subr.mxu0 0.0
    %1792 = vmatpush2.msra.mxu0 0.0
    %1793 = vmatprep.subr.mxu0 0.0
    %1794 = vmatpush2.msra.mxu0 0.0
    %1795 = vmatprep.subr.mxu0 0.0
    %1796 = vmatpush2.msra.mxu0 0.0
    %1797 = vmatprep.subr.mxu0 0.0
    %1798 = vmatpush2.msra.mxu0 0.0
    %1799 = vmatprep.subr.mxu0 0.0
    %1800 = vmatpush2.msra.mxu0 0.0
    %1801 = vmatprep.subr.mxu0 0.0
    %1802 = vmatpush2.msra.mxu0 0.0
    %1803 = vmatprep.mubr.f32.mxu0 0.0
    %1804 = vmatmul.mubr.f32.gmra.mxu0 %v1733
    %v1805 = vpop.f32.mrf.mxu0
    %v1806 = vadd.f32 0.0, %v1805
    %v1807 = vpop.f32.mrf.mxu0
    %1808 = vdwg.mxu0
    %v1809 = vld [vmem:[%s10] sm:$0xff]
    %v1810 = vld [vmem:[%s10 + $0x8] sm:$0xff]
    %v1811 = vld [vmem:[%s10 + $0x10] sm:$0xff]
    %v1812 = vld [vmem:[%s10 + $0x18] sm:$0xff]
    %vm1813 = vcmask 261120
    %v1815 = vsel %vm1813, %v1806, 0
    %1817 = vmatprep.subr.mxu0 0.0
    %1818 = vmatpush1.msra.mxu0 0.0
    %1819 = vmatprep.subr.mxu0 0.0
    %1820 = vmatpush1.msra.mxu0 0.0
    %1821 = vmatprep.subr.mxu0 0.0
    %1822 = vmatpush1.msra.mxu0 0.0
    %1823 = vmatprep.subr.mxu0 0.0
    %1824 = vmatpush1.msra.mxu0 0.0
    %1825 = vmatprep.subr.mxu0 0.0
    %1826 = vmatpush1.msra.mxu0 0.0
    %1827 = vmatprep.subr.mxu0 0.0
    %1828 = vmatpush1.msra.mxu0 0.0
    %1829 = vmatprep.subr.mxu0 0.0
    %1830 = vmatpush1.msra.mxu0 0.0
    %1831 = vmatprep.subr.mxu0 0.0
    %1832 = vmatpush1.msra.mxu0 0.0
    %1833 = vmatprep.subr.mxu0 0.0
    %1834 = vmatpush1.msra.mxu0 0.0
    %1835 = vmatprep.subr.mxu0 0.0
    %1836 = vmatpush1.msra.mxu0 0.0
    %1837 = vmatprep.subr.mxu0 0.0
    %1838 = vmatpush1.msra.mxu0 0.0
    %1839 = vmatprep.subr.mxu0 0.0
    %1840 = vmatpush1.msra.mxu0 0.0
    %1841 = vmatprep.subr.mxu0 0.0
    %1842 = vmatpush1.msra.mxu0 %v1812
    %1843 = vmatprep.subr.mxu0 0.0
    %1844 = vmatpush1.msra.mxu0 %v1811
    %1845 = vmatprep.subr.mxu0 0.0
    %1846 = vmatpush1.msra.mxu0 %v1810
    %1847 = vmatprep.subr.mxu0 0.0
    %1848 = vmatpush1.msra.mxu0 %v1809
    %1849 = vmatprep.subr.mxu0 0.0
    %1850 = vmatpush2.msra.mxu0 0.0
    %1851 = vmatprep.subr.mxu0 0.0
    %1852 = vmatpush2.msra.mxu0 0.0
    %1853 = vmatprep.subr.mxu0 0.0
    %1854 = vmatpush2.msra.mxu0 0.0
    %1855 = vmatprep.subr.mxu0 0.0
    %1856 = vmatpush2.msra.mxu0 0.0
    %1857 = vmatprep.subr.mxu0 0.0
    %1858 = vmatpush2.msra.mxu0 0.0
    %1859 = vmatprep.subr.mxu0 0.0
    %1860 = vmatpush2.msra.mxu0 0.0
    %1861 = vmatprep.subr.mxu0 0.0
    %1862 = vmatpush2.msra.mxu0 0.0
    %1863 = vmatprep.subr.mxu0 0.0
    %1864 = vmatpush2.msra.mxu0 0.0
    %1865 = vmatprep.subr.mxu0 0.0
    %1866 = vmatpush2.msra.mxu0 0.0
    %1867 = vmatprep.subr.mxu0 0.0
    %1868 = vmatpush2.msra.mxu0 0.0
    %1869 = vmatprep.subr.mxu0 0.0
    %1870 = vmatpush2.msra.mxu0 0.0
    %1871 = vmatprep.subr.mxu0 0.0
    %1872 = vmatpush2.msra.mxu0 0.0
    %1873 = vmatprep.subr.mxu0 0.0
    %1874 = vmatpush2.msra.mxu0 0.0
    %1875 = vmatprep.subr.mxu0 0.0
    %1876 = vmatpush2.msra.mxu0 0.0
    %1877 = vmatprep.subr.mxu0 0.0
    %1878 = vmatpush2.msra.mxu0 0.0
    %1879 = vmatprep.subr.mxu0 0.0
    %1880 = vmatpush2.msra.mxu0 0.0
    %1881 = vmatprep.mubr.f32.mxu0 0.0
    %1882 = vmatmul.mubr.f32.gmra.mxu0 %v1815
    %v1883 = vpop.f32.mrf.mxu0
    %v1884 = vadd.f32 0.0, %v1883
    %v1885 = vpop.f32.mrf.mxu0
    %1886 = vdwg.mxu0
    %v1888 = vsel %vm1735, %v1729, 0
    %1890 = vmatprep.subr.mxu0 0.0
    %1891 = vmatpush1.msra.mxu0 0.0
    %1892 = vmatprep.subr.mxu0 0.0
    %1893 = vmatpush1.msra.mxu0 0.0
    %1894 = vmatprep.subr.mxu0 0.0
    %1895 = vmatpush1.msra.mxu0 0.0
    %1896 = vmatprep.subr.mxu0 0.0
    %1897 = vmatpush1.msra.mxu0 0.0
    %1898 = vmatprep.subr.mxu0 0.0
    %1899 = vmatpush1.msra.mxu0 0.0
    %1900 = vmatprep.subr.mxu0 0.0
    %1901 = vmatpush1.msra.mxu0 0.0
    %1902 = vmatprep.subr.mxu0 0.0
    %1903 = vmatpush1.msra.mxu0 0.0
    %1904 = vmatprep.subr.mxu0 0.0
    %1905 = vmatpush1.msra.mxu0 0.0
    %1906 = vmatprep.subr.mxu0 0.0
    %1907 = vmatpush1.msra.mxu0 0.0
    %1908 = vmatprep.subr.mxu0 0.0
    %1909 = vmatpush1.msra.mxu0 0.0
    %1910 = vmatprep.subr.mxu0 0.0
    %1911 = vmatpush1.msra.mxu0 0.0
    %1912 = vmatprep.subr.mxu0 0.0
    %1913 = vmatpush1.msra.mxu0 0.0
    %1914 = vmatprep.subr.mxu0 0.0
    %1915 = vmatpush1.msra.mxu0 0.0
    %1916 = vmatprep.subr.mxu0 0.0
    %1917 = vmatpush1.msra.mxu0 0.0
    %1918 = vmatprep.subr.mxu0 0.0
    %1919 = vmatpush1.msra.mxu0 0.0
    %1920 = vmatprep.subr.mxu0 0.0
    %1921 = vmatpush1.msra.mxu0 %v1888
    %1922 = vmatprep.subr.mxu0 0.0
    %1923 = vmatpush2.msra.mxu0 0.0
    %1924 = vmatprep.subr.mxu0 0.0
    %1925 = vmatpush2.msra.mxu0 0.0
    %1926 = vmatprep.subr.mxu0 0.0
    %1927 = vmatpush2.msra.mxu0 0.0
    %1928 = vmatprep.subr.mxu0 0.0
    %1929 = vmatpush2.msra.mxu0 0.0
    %1930 = vmatprep.subr.mxu0 0.0
    %1931 = vmatpush2.msra.mxu0 0.0
    %1932 = vmatprep.subr.mxu0 0.0
    %1933 = vmatpush2.msra.mxu0 0.0
    %1934 = vmatprep.subr.mxu0 0.0
    %1935 = vmatpush2.msra.mxu0 0.0
    %1936 = vmatprep.subr.mxu0 0.0
    %1937 = vmatpush2.msra.mxu0 0.0
    %1938 = vmatprep.subr.mxu0 0.0
    %1939 = vmatpush2.msra.mxu0 0.0
    %1940 = vmatprep.subr.mxu0 0.0
    %1941 = vmatpush2.msra.mxu0 0.0
    %1942 = vmatprep.subr.mxu0 0.0
    %1943 = vmatpush2.msra.mxu0 0.0
    %1944 = vmatprep.subr.mxu0 0.0
    %1945 = vmatpush2.msra.mxu0 0.0
    %1946 = vmatprep.subr.mxu0 0.0
    %1947 = vmatpush2.msra.mxu0 0.0
    %1948 = vmatprep.subr.mxu0 0.0
    %1949 = vmatpush2.msra.mxu0 0.0
    %1950 = vmatprep.subr.mxu0 0.0
    %1951 = vmatpush2.msra.mxu0 0.0
    %1952 = vmatprep.subr.mxu0 0.0
    %1953 = vmatpush2.msra.mxu0 0.0
    %1954 = vmatprep.mubr.f32.mxu0 0.0
    %1955 = vmatmul.mubr.f32.gmra.mxu0 %v1733
    %v1956 = vpop.f32.mrf.mxu0
    %v1957 = vadd.f32 0.0, %v1956
    %v1958 = vpop.f32.mrf.mxu0
    %1959 = vdwg.mxu0
    %v1961 = vsel %vm1813, %v1957, 0
    %1963 = vmatprep.subr.mxu0 0.0
    %1964 = vmatpush1.msra.mxu0 0.0
    %1965 = vmatprep.subr.mxu0 0.0
    %1966 = vmatpush1.msra.mxu0 0.0
    %1967 = vmatprep.subr.mxu0 0.0
    %1968 = vmatpush1.msra.mxu0 0.0
    %1969 = vmatprep.subr.mxu0 0.0
    %1970 = vmatpush1.msra.mxu0 0.0
    %1971 = vmatprep.subr.mxu0 0.0
    %1972 = vmatpush1.msra.mxu0 0.0
    %1973 = vmatprep.subr.mxu0 0.0
    %1974 = vmatpush1.msra.mxu0 0.0
    %1975 = vmatprep.subr.mxu0 0.0
    %1976 = vmatpush1.msra.mxu0 0.0
    %1977 = vmatprep.subr.mxu0 0.0
    %1978 = vmatpush1.msra.mxu0 0.0
    %1979 = vmatprep.subr.mxu0 0.0
    %1980 = vmatpush1.msra.mxu0 0.0
    %1981 = vmatprep.subr.mxu0 0.0
    %1982 = vmatpush1.msra.mxu0 0.0
    %1983 = vmatprep.subr.mxu0 0.0
    %1984 = vmatpush1.msra.mxu0 0.0
    %1985 = vmatprep.subr.mxu0 0.0
    %1986 = vmatpush1.msra.mxu0 0.0
    %1987 = vmatprep.subr.mxu0 0.0
    %1988 = vmatpush1.msra.mxu0 %v1812
    %1989 = vmatprep.subr.mxu0 0.0
    %1990 = vmatpush1.msra.mxu0 %v1811
    %1991 = vmatprep.subr.mxu0 0.0
    %1992 = vmatpush1.msra.mxu0 %v1810
    %1993 = vmatprep.subr.mxu0 0.0
    %1994 = vmatpush1.msra.mxu0 %v1809
    %1995 = vmatprep.subr.mxu0 0.0
    %1996 = vmatpush2.msra.mxu0 0.0
    %1997 = vmatprep.subr.mxu0 0.0
    %1998 = vmatpush2.msra.mxu0 0.0
    %1999 = vmatprep.subr.mxu0 0.0
    %2000 = vmatpush2.msra.mxu0 0.0
    %2001 = vmatprep.subr.mxu0 0.0
    %2002 = vmatpush2.msra.mxu0 0.0
    %2003 = vmatprep.subr.mxu0 0.0
    %2004 = vmatpush2.msra.mxu0 0.0
    %2005 = vmatprep.subr.mxu0 0.0
    %2006 = vmatpush2.msra.mxu0 0.0
    %2007 = vmatprep.subr.mxu0 0.0
    %2008 = vmatpush2.msra.mxu0 0.0
    %2009 = vmatprep.subr.mxu0 0.0
    %2010 = vmatpush2.msra.mxu0 0.0
    %2011 = vmatprep.subr.mxu0 0.0
    %2012 = vmatpush2.msra.mxu0 0.0
    %2013 = vmatprep.subr.mxu0 0.0
    %2014 = vmatpush2.msra.mxu0 0.0
    %2015 = vmatprep.subr.mxu0 0.0
    %2016 = vmatpush2.msra.mxu0 0.0
    %2017 = vmatprep.subr.mxu0 0.0
    %2018 = vmatpush2.msra.mxu0 0.0
    %2019 = vmatprep.subr.mxu0 0.0
    %2020 = vmatpush2.msra.mxu0 0.0
    %2021 = vmatprep.subr.mxu0 0.0
    %2022 = vmatpush2.msra.mxu0 0.0
    %2023 = vmatprep.subr.mxu0 0.0
    %2024 = vmatpush2.msra.mxu0 0.0
    %2025 = vmatprep.subr.mxu0 0.0
    %2026 = vmatpush2.msra.mxu0 0.0
    %2027 = vmatprep.mubr.f32.mxu0 0.0
    %2028 = vmatmul.mubr.f32.gmra.mxu0 %v1961
    %v2029 = vpop.f32.mrf.mxu0
    %v2030 = vadd.f32 0.0, %v2029
    %v2031 = vpop.f32.mrf.mxu0
    %2032 = vdwg.mxu0
    %v2033 = vmul.f32 %v1727, %v1727
    %v2035 = vsel %vm1735, %v2033, 0
    %2037 = vmatprep.subr.mxu0 0.0
    %2038 = vmatpush1.msra.mxu0 0.0
    %2039 = vmatprep.subr.mxu0 0.0
    %2040 = vmatpush1.msra.mxu0 0.0
    %2041 = vmatprep.subr.mxu0 0.0
    %2042 = vmatpush1.msra.mxu0 0.0
    %2043 = vmatprep.subr.mxu0 0.0
    %2044 = vmatpush1.msra.mxu0 0.0
    %2045 = vmatprep.subr.mxu0 0.0
    %2046 = vmatpush1.msra.mxu0 0.0
    %2047 = vmatprep.subr.mxu0 0.0
    %2048 = vmatpush1.msra.mxu0 0.0
    %2049 = vmatprep.subr.mxu0 0.0
    %2050 = vmatpush1.msra.mxu0 0.0
    %2051 = vmatprep.subr.mxu0 0.0
    %2052 = vmatpush1.msra.mxu0 0.0
    %2053 = vmatprep.subr.mxu0 0.0
    %2054 = vmatpush1.msra.mxu0 0.0
    %2055 = vmatprep.subr.mxu0 0.0
    %2056 = vmatpush1.msra.mxu0 0.0
    %2057 = vmatprep.subr.mxu0 0.0
    %2058 = vmatpush1.msra.mxu0 0.0
    %2059 = vmatprep.subr.mxu0 0.0
    %2060 = vmatpush1.msra.mxu0 0.0
    %2061 = vmatprep.subr.mxu0 0.0
    %2062 = vmatpush1.msra.mxu0 0.0
    %2063 = vmatprep.subr.mxu0 0.0
    %2064 = vmatpush1.msra.mxu0 0.0
    %2065 = vmatprep.subr.mxu0 0.0
    %2066 = vmatpush1.msra.mxu0 0.0
    %2067 = vmatprep.subr.mxu0 0.0
    %2068 = vmatpush1.msra.mxu0 %v2035
    %2069 = vmatprep.subr.mxu0 0.0
    %2070 = vmatpush2.msra.mxu0 0.0
    %2071 = vmatprep.subr.mxu0 0.0
    %2072 = vmatpush2.msra.mxu0 0.0
    %2073 = vmatprep.subr.mxu0 0.0
    %2074 = vmatpush2.msra.mxu0 0.0
    %2075 = vmatprep.subr.mxu0 0.0
    %2076 = vmatpush2.msra.mxu0 0.0
    %2077 = vmatprep.subr.mxu0 0.0
    %2078 = vmatpush2.msra.mxu0 0.0
    %2079 = vmatprep.subr.mxu0 0.0
    %2080 = vmatpush2.msra.mxu0 0.0
    %2081 = vmatprep.subr.mxu0 0.0
    %2082 = vmatpush2.msra.mxu0 0.0
    %2083 = vmatprep.subr.mxu0 0.0
    %2084 = vmatpush2.msra.mxu0 0.0
    %2085 = vmatprep.subr.mxu0 0.0
    %2086 = vmatpush2.msra.mxu0 0.0
    %2087 = vmatprep.subr.mxu0 0.0
    %2088 = vmatpush2.msra.mxu0 0.0
    %2089 = vmatprep.subr.mxu0 0.0
    %2090 = vmatpush2.msra.mxu0 0.0
    %2091 = vmatprep.subr.mxu0 0.0
    %2092 = vmatpush2.msra.mxu0 0.0
    %2093 = vmatprep.subr.mxu0 0.0
    %2094 = vmatpush2.msra.mxu0 0.0
    %2095 = vmatprep.subr.mxu0 0.0
    %2096 = vmatpush2.msra.mxu0 0.0
    %2097 = vmatprep.subr.mxu0 0.0
    %2098 = vmatpush2.msra.mxu0 0.0
    %2099 = vmatprep.subr.mxu0 0.0
    %2100 = vmatpush2.msra.mxu0 0.0
    %2101 = vmatprep.mubr.f32.mxu0 0.0
    %2102 = vmatmul.mubr.f32.gmra.mxu0 %v1733
    %v2103 = vpop.f32.mrf.mxu0
    %v2104 = vadd.f32 0.0, %v2103
    %v2105 = vpop.f32.mrf.mxu0
    %2106 = vdwg.mxu0
    %v2108 = vsel %vm1813, %v2104, 0
    %2110 = vmatprep.subr.mxu0 0.0
    %2111 = vmatpush1.msra.mxu0 0.0
    %2112 = vmatprep.subr.mxu0 0.0
    %2113 = vmatpush1.msra.mxu0 0.0
    %2114 = vmatprep.subr.mxu0 0.0
    %2115 = vmatpush1.msra.mxu0 0.0
    %2116 = vmatprep.subr.mxu0 0.0
    %2117 = vmatpush1.msra.mxu0 0.0
    %2118 = vmatprep.subr.mxu0 0.0
    %2119 = vmatpush1.msra.mxu0 0.0
    %2120 = vmatprep.subr.mxu0 0.0
    %2121 = vmatpush1.msra.mxu0 0.0
    %2122 = vmatprep.subr.mxu0 0.0
    %2123 = vmatpush1.msra.mxu0 0.0
    %2124 = vmatprep.subr.mxu0 0.0
    %2125 = vmatpush1.msra.mxu0 0.0
    %2126 = vmatprep.subr.mxu0 0.0
    %2127 = vmatpush1.msra.mxu0 0.0
    %2128 = vmatprep.subr.mxu0 0.0
    %2129 = vmatpush1.msra.mxu0 0.0
    %2130 = vmatprep.subr.mxu0 0.0
    %2131 = vmatpush1.msra.mxu0 0.0
    %2132 = vmatprep.subr.mxu0 0.0
    %2133 = vmatpush1.msra.mxu0 0.0
    %2134 = vmatprep.subr.mxu0 0.0
    %2135 = vmatpush1.msra.mxu0 %v1812
    %2136 = vmatprep.subr.mxu0 0.0
    %2137 = vmatpush1.msra.mxu0 %v1811
    %2138 = vmatprep.subr.mxu0 0.0
    %2139 = vmatpush1.msra.mxu0 %v1810
    %2140 = vmatprep.subr.mxu0 0.0
    %2141 = vmatpush1.msra.mxu0 %v1809
    %2142 = vmatprep.subr.mxu0 0.0
    %2143 = vmatpush2.msra.mxu0 0.0
    %2144 = vmatprep.subr.mxu0 0.0
    %2145 = vmatpush2.msra.mxu0 0.0
    %2146 = vmatprep.subr.mxu0 0.0
    %2147 = vmatpush2.msra.mxu0 0.0
    %2148 = vmatprep.subr.mxu0 0.0
    %2149 = vmatpush2.msra.mxu0 0.0
    %2150 = vmatprep.subr.mxu0 0.0
    %2151 = vmatpush2.msra.mxu0 0.0
    %2152 = vmatprep.subr.mxu0 0.0
    %2153 = vmatpush2.msra.mxu0 0.0
    %2154 = vmatprep.subr.mxu0 0.0
    %2155 = vmatpush2.msra.mxu0 0.0
    %2156 = vmatprep.subr.mxu0 0.0
    %2157 = vmatpush2.msra.mxu0 0.0
    %2158 = vmatprep.subr.mxu0 0.0
    %2159 = vmatpush2.msra.mxu0 0.0
    %2160 = vmatprep.subr.mxu0 0.0
    %2161 = vmatpush2.msra.mxu0 0.0
    %2162 = vmatprep.subr.mxu0 0.0
    %2163 = vmatpush2.msra.mxu0 0.0
    %2164 = vmatprep.subr.mxu0 0.0
    %2165 = vmatpush2.msra.mxu0 0.0
    %2166 = vmatprep.subr.mxu0 0.0
    %2167 = vmatpush2.msra.mxu0 0.0
    %2168 = vmatprep.subr.mxu0 0.0
    %2169 = vmatpush2.msra.mxu0 0.0
    %2170 = vmatprep.subr.mxu0 0.0
    %2171 = vmatpush2.msra.mxu0 0.0
    %2172 = vmatprep.subr.mxu0 0.0
    %2173 = vmatpush2.msra.mxu0 0.0
    %2174 = vmatprep.mubr.f32.mxu0 0.0
    %2175 = vmatmul.mubr.f32.gmra.mxu0 %v2108
    %v2176 = vpop.f32.mrf.mxu0
    %v2177 = vadd.f32 0.0, %v2176
    %v2178 = vpop.f32.mrf.mxu0
    %2179 = vdwg.mxu0
    %v2180 = vmul.f32 %v1729, %v1729
    %v2182 = vsel %vm1735, %v2180, 0
    %2184 = vmatprep.subr.mxu0 0.0
    %2185 = vmatpush1.msra.mxu0 0.0
    %2186 = vmatprep.subr.mxu0 0.0
    %2187 = vmatpush1.msra.mxu0 0.0
    %2188 = vmatprep.subr.mxu0 0.0
    %2189 = vmatpush1.msra.mxu0 0.0
    %2190 = vmatprep.subr.mxu0 0.0
    %2191 = vmatpush1.msra.mxu0 0.0
    %2192 = vmatprep.subr.mxu0 0.0
    %2193 = vmatpush1.msra.mxu0 0.0
    %2194 = vmatprep.subr.mxu0 0.0
    %2195 = vmatpush1.msra.mxu0 0.0
    %2196 = vmatprep.subr.mxu0 0.0
    %2197 = vmatpush1.msra.mxu0 0.0
    %2198 = vmatprep.subr.mxu0 0.0
    %2199 = vmatpush1.msra.mxu0 0.0
    %2200 = vmatprep.subr.mxu0 0.0
    %2201 = vmatpush1.msra.mxu0 0.0
    %2202 = vmatprep.subr.mxu0 0.0
    %2203 = vmatpush1.msra.mxu0 0.0
    %2204 = vmatprep.subr.mxu0 0.0
    %2205 = vmatpush1.msra.mxu0 0.0
    %2206 = vmatprep.subr.mxu0 0.0
    %2207 = vmatpush1.msra.mxu0 0.0
    %2208 = vmatprep.subr.mxu0 0.0
    %2209 = vmatpush1.msra.mxu0 0.0
    %2210 = vmatprep.subr.mxu0 0.0
    %2211 = vmatpush1.msra.mxu0 0.0
    %2212 = vmatprep.subr.mxu0 0.0
    %2213 = vmatpush1.msra.mxu0 0.0
    %2214 = vmatprep.subr.mxu0 0.0
    %2215 = vmatpush1.msra.mxu0 %v2182
    %2216 = vmatprep.subr.mxu0 0.0
    %2217 = vmatpush2.msra.mxu0 0.0
    %2218 = vmatprep.subr.mxu0 0.0
    %2219 = vmatpush2.msra.mxu0 0.0
    %2220 = vmatprep.subr.mxu0 0.0
    %2221 = vmatpush2.msra.mxu0 0.0
    %2222 = vmatprep.subr.mxu0 0.0
    %2223 = vmatpush2.msra.mxu0 0.0
    %2224 = vmatprep.subr.mxu0 0.0
    %2225 = vmatpush2.msra.mxu0 0.0
    %2226 = vmatprep.subr.mxu0 0.0
    %2227 = vmatpush2.msra.mxu0 0.0
    %2228 = vmatprep.subr.mxu0 0.0
    %2229 = vmatpush2.msra.mxu0 0.0
    %2230 = vmatprep.subr.mxu0 0.0
    %2231 = vmatpush2.msra.mxu0 0.0
    %2232 = vmatprep.subr.mxu0 0.0
    %2233 = vmatpush2.msra.mxu0 0.0
    %2234 = vmatprep.subr.mxu0 0.0
    %2235 = vmatpush2.msra.mxu0 0.0
    %2236 = vmatprep.subr.mxu0 0.0
    %2237 = vmatpush2.msra.mxu0 0.0
    %2238 = vmatprep.subr.mxu0 0.0
    %2239 = vmatpush2.msra.mxu0 0.0
    %2240 = vmatprep.subr.mxu0 0.0
    %2241 = vmatpush2.msra.mxu0 0.0
    %2242 = vmatprep.subr.mxu0 0.0
    %2243 = vmatpush2.msra.mxu0 0.0
    %2244 = vmatprep.subr.mxu0 0.0
    %2245 = vmatpush2.msra.mxu0 0.0
    %2246 = vmatprep.subr.mxu0 0.0
    %2247 = vmatpush2.msra.mxu0 0.0
    %2248 = vmatprep.mubr.f32.mxu0 0.0
    %2249 = vmatmul.mubr.f32.gmra.mxu0 %v1733
    %v2250 = vpop.f32.mrf.mxu0
    %v2251 = vadd.f32 0.0, %v2250
    %v2252 = vpop.f32.mrf.mxu0
    %2253 = vdwg.mxu0
    %v2255 = vsel %vm1813, %v2251, 0
    %2257 = vmatprep.subr.mxu0 0.0
    %2258 = vmatpush1.msra.mxu0 0.0
    %2259 = vmatprep.subr.mxu0 0.0
    %2260 = vmatpush1.msra.mxu0 0.0
    %2261 = vmatprep.subr.mxu0 0.0
    %2262 = vmatpush1.msra.mxu0 0.0
    %2263 = vmatprep.subr.mxu0 0.0
    %2264 = vmatpush1.msra.mxu0 0.0
    %2265 = vmatprep.subr.mxu0 0.0
    %2266 = vmatpush1.msra.mxu0 0.0
    %2267 = vmatprep.subr.mxu0 0.0
    %2268 = vmatpush1.msra.mxu0 0.0
    %2269 = vmatprep.subr.mxu0 0.0
    %2270 = vmatpush1.msra.mxu0 0.0
    %2271 = vmatprep.subr.mxu0 0.0
    %2272 = vmatpush1.msra.mxu0 0.0
    %2273 = vmatprep.subr.mxu0 0.0
    %2274 = vmatpush1.msra.mxu0 0.0
    %2275 = vmatprep.subr.mxu0 0.0
    %2276 = vmatpush1.msra.mxu0 0.0
    %2277 = vmatprep.subr.mxu0 0.0
    %2278 = vmatpush1.msra.mxu0 0.0
    %2279 = vmatprep.subr.mxu0 0.0
    %2280 = vmatpush1.msra.mxu0 0.0
    %2281 = vmatprep.subr.mxu0 0.0
    %2282 = vmatpush1.msra.mxu0 %v1812
    %2283 = vmatprep.subr.mxu0 0.0
    %2284 = vmatpush1.msra.mxu0 %v1811
    %2285 = vmatprep.subr.mxu0 0.0
    %2286 = vmatpush1.msra.mxu0 %v1810
    %2287 = vmatprep.subr.mxu0 0.0
    %2288 = vmatpush1.msra.mxu0 %v1809
    %2289 = vmatprep.subr.mxu0 0.0
    %2290 = vmatpush2.msra.mxu0 0.0
    %2291 = vmatprep.subr.mxu0 0.0
    %2292 = vmatpush2.msra.mxu0 0.0
    %2293 = vmatprep.subr.mxu0 0.0
    %2294 = vmatpush2.msra.mxu0 0.0
    %2295 = vmatprep.subr.mxu0 0.0
    %2296 = vmatpush2.msra.mxu0 0.0
    %2297 = vmatprep.subr.mxu0 0.0
    %2298 = vmatpush2.msra.mxu0 0.0
    %2299 = vmatprep.subr.mxu0 0.0
    %2300 = vmatpush2.msra.mxu0 0.0
    %2301 = vmatprep.subr.mxu0 0.0
    %2302 = vmatpush2.msra.mxu0 0.0
    %2303 = vmatprep.subr.mxu0 0.0
    %2304 = vmatpush2.msra.mxu0 0.0
    %2305 = vmatprep.subr.mxu0 0.0
    %2306 = vmatpush2.msra.mxu0 0.0
    %2307 = vmatprep.subr.mxu0 0.0
    %2308 = vmatpush2.msra.mxu0 0.0
    %2309 = vmatprep.subr.mxu0 0.0
    %2310 = vmatpush2.msra.mxu0 0.0
    %2311 = vmatprep.subr.mxu0 0.0
    %2312 = vmatpush2.msra.mxu0 0.0
    %2313 = vmatprep.subr.mxu0 0.0
    %2314 = vmatpush2.msra.mxu0 0.0
    %2315 = vmatprep.subr.mxu0 0.0
    %2316 = vmatpush2.msra.mxu0 0.0
    %2317 = vmatprep.subr.mxu0 0.0
    %2318 = vmatpush2.msra.mxu0 0.0
    %2319 = vmatprep.subr.mxu0 0.0
    %2320 = vmatpush2.msra.mxu0 0.0
    %2321 = vmatprep.mubr.f32.mxu0 0.0
    %2322 = vmatmul.mubr.f32.gmra.mxu0 %v2255
    %v2323 = vpop.f32.mrf.mxu0
    %v2324 = vadd.f32 0.0, %v2323
    %v2325 = vpop.f32.mrf.mxu0
    %2326 = vdwg.mxu0
    %v2327 = vmul.f32 %v1727, %v1729
    %v2329 = vsel %vm1735, %v2327, 0
    %2331 = vmatprep.subr.mxu0 0.0
    %2332 = vmatpush1.msra.mxu0 0.0
    %2333 = vmatprep.subr.mxu0 0.0
    %2334 = vmatpush1.msra.mxu0 0.0
    %2335 = vmatprep.subr.mxu0 0.0
    %2336 = vmatpush1.msra.mxu0 0.0
    %2337 = vmatprep.subr.mxu0 0.0
    %2338 = vmatpush1.msra.mxu0 0.0
    %2339 = vmatprep.subr.mxu0 0.0
    %2340 = vmatpush1.msra.mxu0 0.0
    %2341 = vmatprep.subr.mxu0 0.0
    %2342 = vmatpush1.msra.mxu0 0.0
    %2343 = vmatprep.subr.mxu0 0.0
    %2344 = vmatpush1.msra.mxu0 0.0
    %2345 = vmatprep.subr.mxu0 0.0
    %2346 = vmatpush1.msra.mxu0 0.0
    %2347 = vmatprep.subr.mxu0 0.0
    %2348 = vmatpush1.msra.mxu0 0.0
    %2349 = vmatprep.subr.mxu0 0.0
    %2350 = vmatpush1.msra.mxu0 0.0
    %2351 = vmatprep.subr.mxu0 0.0
    %2352 = vmatpush1.msra.mxu0 0.0
    %2353 = vmatprep.subr.mxu0 0.0
    %2354 = vmatpush1.msra.mxu0 0.0
    %2355 = vmatprep.subr.mxu0 0.0
    %2356 = vmatpush1.msra.mxu0 0.0
    %2357 = vmatprep.subr.mxu0 0.0
    %2358 = vmatpush1.msra.mxu0 0.0
    %2359 = vmatprep.subr.mxu0 0.0
    %2360 = vmatpush1.msra.mxu0 0.0
    %2361 = vmatprep.subr.mxu0 0.0
    %2362 = vmatpush1.msra.mxu0 %v2329
    %2363 = vmatprep.subr.mxu0 0.0
    %2364 = vmatpush2.msra.mxu0 0.0
    %2365 = vmatprep.subr.mxu0 0.0
    %2366 = vmatpush2.msra.mxu0 0.0
    %2367 = vmatprep.subr.mxu0 0.0
    %2368 = vmatpush2.msra.mxu0 0.0
    %2369 = vmatprep.subr.mxu0 0.0
    %2370 = vmatpush2.msra.mxu0 0.0
    %2371 = vmatprep.subr.mxu0 0.0
    %2372 = vmatpush2.msra.mxu0 0.0
    %2373 = vmatprep.subr.mxu0 0.0
    %2374 = vmatpush2.msra.mxu0 0.0
    %2375 = vmatprep.subr.mxu0 0.0
    %2376 = vmatpush2.msra.mxu0 0.0
    %2377 = vmatprep.subr.mxu0 0.0
    %2378 = vmatpush2.msra.mxu0 0.0
    %2379 = vmatprep.subr.mxu0 0.0
    %2380 = vmatpush2.msra.mxu0 0.0
    %2381 = vmatprep.subr.mxu0 0.0
    %2382 = vmatpush2.msra.mxu0 0.0
    %2383 = vmatprep.subr.mxu0 0.0
    %2384 = vmatpush2.msra.mxu0 0.0
    %2385 = vmatprep.subr.mxu0 0.0
    %2386 = vmatpush2.msra.mxu0 0.0
    %2387 = vmatprep.subr.mxu0 0.0
    %2388 = vmatpush2.msra.mxu0 0.0
    %2389 = vmatprep.subr.mxu0 0.0
    %2390 = vmatpush2.msra.mxu0 0.0
    %2391 = vmatprep.subr.mxu0 0.0
    %2392 = vmatpush2.msra.mxu0 0.0
    %2393 = vmatprep.subr.mxu0 0.0
    %2394 = vmatpush2.msra.mxu0 0.0
    %2395 = vmatprep.mubr.f32.mxu0 0.0
    %2396 = vmatmul.mubr.f32.gmra.mxu0 %v1733
    %v2397 = vpop.f32.mrf.mxu0
    %v2398 = vadd.f32 0.0, %v2397
    %v2399 = vpop.f32.mrf.mxu0
    %2400 = vdwg.mxu0
    %v2402 = vsel %vm1813, %v2398, 0
    %2404 = vmatprep.subr.mxu0 0.0
    %2405 = vmatpush1.msra.mxu0 0.0
    %2406 = vmatprep.subr.mxu0 0.0
    %2407 = vmatpush1.msra.mxu0 0.0
    %2408 = vmatprep.subr.mxu0 0.0
    %2409 = vmatpush1.msra.mxu0 0.0
    %2410 = vmatprep.subr.mxu0 0.0
    %2411 = vmatpush1.msra.mxu0 0.0
    %2412 = vmatprep.subr.mxu0 0.0
    %2413 = vmatpush1.msra.mxu0 0.0
    %2414 = vmatprep.subr.mxu0 0.0
    %2415 = vmatpush1.msra.mxu0 0.0
    %2416 = vmatprep.subr.mxu0 0.0
    %2417 = vmatpush1.msra.mxu0 0.0
    %2418 = vmatprep.subr.mxu0 0.0
    %2419 = vmatpush1.msra.mxu0 0.0
    %2420 = vmatprep.subr.mxu0 0.0
    %2421 = vmatpush1.msra.mxu0 0.0
    %2422 = vmatprep.subr.mxu0 0.0
    %2423 = vmatpush1.msra.mxu0 0.0
    %2424 = vmatprep.subr.mxu0 0.0
    %2425 = vmatpush1.msra.mxu0 0.0
    %2426 = vmatprep.subr.mxu0 0.0
    %2427 = vmatpush1.msra.mxu0 0.0
    %2428 = vmatprep.subr.mxu0 0.0
    %2429 = vmatpush1.msra.mxu0 %v1812
    %2430 = vmatprep.subr.mxu0 0.0
    %2431 = vmatpush1.msra.mxu0 %v1811
    %2432 = vmatprep.subr.mxu0 0.0
    %2433 = vmatpush1.msra.mxu0 %v1810
    %2434 = vmatprep.subr.mxu0 0.0
    %2435 = vmatpush1.msra.mxu0 %v1809
    %2436 = vmatprep.subr.mxu0 0.0
    %2437 = vmatpush2.msra.mxu0 0.0
    %2438 = vmatprep.subr.mxu0 0.0
    %2439 = vmatpush2.msra.mxu0 0.0
    %2440 = vmatprep.subr.mxu0 0.0
    %2441 = vmatpush2.msra.mxu0 0.0
    %2442 = vmatprep.subr.mxu0 0.0
    %2443 = vmatpush2.msra.mxu0 0.0
    %2444 = vmatprep.subr.mxu0 0.0
    %2445 = vmatpush2.msra.mxu0 0.0
    %2446 = vmatprep.subr.mxu0 0.0
    %2447 = vmatpush2.msra.mxu0 0.0
    %2448 = vmatprep.subr.mxu0 0.0
    %2449 = vmatpush2.msra.mxu0 0.0
    %2450 = vmatprep.subr.mxu0 0.0
    %2451 = vmatpush2.msra.mxu0 0.0
    %2452 = vmatprep.subr.mxu0 0.0
    %2453 = vmatpush2.msra.mxu0 0.0
    %2454 = vmatprep.subr.mxu0 0.0
    %2455 = vmatpush2.msra.mxu0 0.0
    %2456 = vmatprep.subr.mxu0 0.0
    %2457 = vmatpush2.msra.mxu0 0.0
    %2458 = vmatprep.subr.mxu0 0.0
    %2459 = vmatpush2.msra.mxu0 0.0
    %2460 = vmatprep.subr.mxu0 0.0
    %2461 = vmatpush2.msra.mxu0 0.0
    %2462 = vmatprep.subr.mxu0 0.0
    %2463 = vmatpush2.msra.mxu0 0.0
    %2464 = vmatprep.subr.mxu0 0.0
    %2465 = vmatpush2.msra.mxu0 0.0
    %2466 = vmatprep.subr.mxu0 0.0
    %2467 = vmatpush2.msra.mxu0 0.0
    %2468 = vmatprep.mubr.f32.mxu0 0.0
    %2469 = vmatmul.mubr.f32.gmra.mxu0 %v2402
    %v2470 = vpop.f32.mrf.mxu0
    %v2471 = vadd.f32 0.0, %v2470
    %v2472 = vpop.f32.mrf.mxu0
    %2473 = vdwg.mxu0
    %v2474 = vmul.f32 %v1884, %v2030
    %v2475 = vmul.f32 %v1884, %v1884
    %v2476 = vmul.f32 %v2030, %v2030
    %v2477 = vmul.f32 %v2474, 2.0
    %v2478 = vadd.f32 %v2477, 0.0001
    %v2479 = vsub.f32 %v2471, %v2474
    %v2480 = vmul.f32 %v2479, 2.0
    %v2481 = vadd.f32 %v2480, 0.0009
    %v2482 = vmul.f32 %v2478, %v2481
    %v2483 = vadd.f32 %v2475, %v2476
    %v2484 = vadd.f32 %v2483, 0.0001
    %v2485 = vsub.f32 %v2177, %v2475
    %v2486 = vsub.f32 %v2324, %v2476
    %v2487 = vadd.f32 %v2485, %v2486
    %v2488 = vadd.f32 %v2487, 0.0009
    %v2489 = vmul.f32 %v2484, %v2488
    %v2490 = vrcp.pop %v2489
    %v2491 = vmul.f32 %v2489, %v2490
    %v2492 = vsub.f32 2.0, %v2491
    %v2493 = vmul.f32 %v2490, %v2492
    %v2494 = vmul.f32 %v2482, %v2493
    %vm2495 = vcmask 257024
    %v2496 = vsel %vm2495, %v2494, 0.0
    %2497 = vadd.xlane.f32.xlu0 %v2496
    %v2498 = vpop.xlane.xlu0 %2497
    %v2499 = vsel %vm1735, %v2498, 0.0
    %v2500 = vrot.slane %v2499, 4
    %v2501 = vadd.f32 %v2499, %v2500
    %v2502 = vrot.slane %v2501, 2
    %v2503 = vadd.f32 %v2501, %v2502
    %v2504 = vrot.slane %v2503, 1
    %v2505 = vadd.f32 %v2503, %v2504
    %v2506 = vmul.f32 %v2505, 0.0078125
    %v2507 = vld [vmem:[%s3] sm:$0x3]
    %s2508 = scalar_lea.vmem %s3, 2
    %v2509 = vld [vmem:[%s2508] sm:$0x3]
    %v2510 = vld [vmem:[%s7] sm:$0x3]
    %vm2511 = vcmask 15360
    %v2513 = vsel %vm2511, %v2510, 0
    %vm2515 = vcmask 1041408
    %v2517 = vsel %vm2515, %v2507, 0
    %2519 = vmatprep.subr.mxu0 0.0
    %2520 = vmatpush1.msra.mxu0 0.0
    %2521 = vmatprep.subr.mxu0 0.0
    %2522 = vmatpush1.msra.mxu0 0.0
    %2523 = vmatprep.subr.mxu0 0.0
    %2524 = vmatpush1.msra.mxu0 0.0
    %2525 = vmatprep.subr.mxu0 0.0
    %2526 = vmatpush1.msra.mxu0 0.0
    %2527 = vmatprep.subr.mxu0 0.0
    %2528 = vmatpush1.msra.mxu0 0.0
    %2529 = vmatprep.subr.mxu0 0.0
    %2530 = vmatpush1.msra.mxu0 0.0
    %2531 = vmatprep.subr.mxu0 0.0
    %2532 = vmatpush1.msra.mxu0 0.0
    %2533 = vmatprep.subr.mxu0 0.0
    %2534 = vmatpush1.msra.mxu0 0.0
    %2535 = vmatprep.subr.mxu0 0.0
    %2536 = vmatpush1.msra.mxu0 0.0
    %2537 = vmatprep.subr.mxu0 0.0
    %2538 = vmatpush1.msra.mxu0 0.0
    %2539 = vmatprep.subr.mxu0 0.0
    %2540 = vmatpush1.msra.mxu0 0.0
    %2541 = vmatprep.subr.mxu0 0.0
    %2542 = vmatpush1.msra.mxu0 0.0
    %2543 = vmatprep.subr.mxu0 0.0
    %2544 = vmatpush1.msra.mxu0 0.0
    %2545 = vmatprep.subr.mxu0 0.0
    %2546 = vmatpush1.msra.mxu0 0.0
    %2547 = vmatprep.subr.mxu0 0.0
    %2548 = vmatpush1.msra.mxu0 0.0
    %2549 = vmatprep.subr.mxu0 0.0
    %2550 = vmatpush1.msra.mxu0 %v2517
    %2551 = vmatprep.subr.mxu0 0.0
    %2552 = vmatpush2.msra.mxu0 0.0
    %2553 = vmatprep.subr.mxu0 0.0
    %2554 = vmatpush2.msra.mxu0 0.0
    %2555 = vmatprep.subr.mxu0 0.0
    %2556 = vmatpush2.msra.mxu0 0.0
    %2557 = vmatprep.subr.mxu0 0.0
    %2558 = vmatpush2.msra.mxu0 0.0
    %2559 = vmatprep.subr.mxu0 0.0
    %2560 = vmatpush2.msra.mxu0 0.0
    %2561 = vmatprep.subr.mxu0 0.0
    %2562 = vmatpush2.msra.mxu0 0.0
    %2563 = vmatprep.subr.mxu0 0.0
    %2564 = vmatpush2.msra.mxu0 0.0
    %2565 = vmatprep.subr.mxu0 0.0
    %2566 = vmatpush2.msra.mxu0 0.0
    %2567 = vmatprep.subr.mxu0 0.0
    %2568 = vmatpush2.msra.mxu0 0.0
    %2569 = vmatprep.subr.mxu0 0.0
    %2570 = vmatpush2.msra.mxu0 0.0
    %2571 = vmatprep.subr.mxu0 0.0
    %2572 = vmatpush2.msra.mxu0 0.0
    %2573 = vmatprep.subr.mxu0 0.0
    %2574 = vmatpush2.msra.mxu0 0.0
    %2575 = vmatprep.subr.mxu0 0.0
    %2576 = vmatpush2.msra.mxu0 0.0
    %2577 = vmatprep.subr.mxu0 0.0
    %2578 = vmatpush2.msra.mxu0 0.0
    %2579 = vmatprep.subr.mxu0 0.0
    %2580 = vmatpush2.msra.mxu0 0.0
    %2581 = vmatprep.subr.mxu0 0.0
    %2582 = vmatpush2.msra.mxu0 0.0
    %2583 = vmatprep.mubr.f32.mxu0 0.0
    %2584 = vmatmul.mubr.f32.gmra.mxu0 %v2513
    %v2585 = vpop.f32.mrf.mxu0
    %v2586 = vadd.f32 0.0, %v2585
    %v2587 = vpop.f32.mrf.mxu0
    %2588 = vdwg.mxu0
    %v2589 = vld [vmem:[%s11] sm:$0xff]
    %v2590 = vld [vmem:[%s11 + $0x8] sm:$0xff]
    %v2592 = vsel %vm48, %v2586, 0
    %2594 = vmatprep.subr.mxu0 0.0
    %2595 = vmatpush1.msra.mxu0 0.0
    %2596 = vmatprep.subr.mxu0 0.0
    %2597 = vmatpush1.msra.mxu0 0.0
    %2598 = vmatprep.subr.mxu0 0.0
    %2599 = vmatpush1.msra.mxu0 0.0
    %2600 = vmatprep.subr.mxu0 0.0
    %2601 = vmatpush1.msra.mxu0 0.0
    %2602 = vmatprep.subr.mxu0 0.0
    %2603 = vmatpush1.msra.mxu0 0.0
    %2604 = vmatprep.subr.mxu0 0.0
    %2605 = vmatpush1.msra.mxu0 0.0
    %2606 = vmatprep.subr.mxu0 0.0
    %2607 = vmatpush1.msra.mxu0 0.0
    %2608 = vmatprep.subr.mxu0 0.0
    %2609 = vmatpush1.msra.mxu0 0.0
    %2610 = vmatprep.subr.mxu0 0.0
    %2611 = vmatpush1.msra.mxu0 0.0
    %2612 = vmatprep.subr.mxu0 0.0
    %2613 = vmatpush1.msra.mxu0 0.0
    %2614 = vmatprep.subr.mxu0 0.0
    %2615 = vmatpush1.msra.mxu0 0.0
    %2616 = vmatprep.subr.mxu0 0.0
    %2617 = vmatpush1.msra.mxu0 0.0
    %2618 = vmatprep.subr.mxu0 0.0
    %2619 = vmatpush1.msra.mxu0 0.0
    %2620 = vmatprep.subr.mxu0 0.0
    %2621 = vmatpush1.msra.mxu0 0.0
    %2622 = vmatprep.subr.mxu0 0.0
    %2623 = vmatpush1.msra.mxu0 %v2590
    %2624 = vmatprep.subr.mxu0 0.0
    %2625 = vmatpush1.msra.mxu0 %v2589
    %2626 = vmatprep.subr.mxu0 0.0
    %2627 = vmatpush2.msra.mxu0 0.0
    %2628 = vmatprep.subr.mxu0 0.0
    %2629 = vmatpush2.msra.mxu0 0.0
    %2630 = vmatprep.subr.mxu0 0.0
    %2631 = vmatpush2.msra.mxu0 0.0
    %2632 = vmatprep.subr.mxu0 0.0
    %2633 = vmatpush2.msra.mxu0 0.0
    %2634 = vmatprep.subr.mxu0 0.0
    %2635 = vmatpush2.msra.mxu0 0.0
    %2636 = vmatprep.subr.mxu0 0.0
    %2637 = vmatpush2.msra.mxu0 0.0
    %2638 = vmatprep.subr.mxu0 0.0
    %2639 = vmatpush2.msra.mxu0 0.0
    %2640 = vmatprep.subr.mxu0 0.0
    %2641 = vmatpush2.msra.mxu0 0.0
    %2642 = vmatprep.subr.mxu0 0.0
    %2643 = vmatpush2.msra.mxu0 0.0
    %2644 = vmatprep.subr.mxu0 0.0
    %2645 = vmatpush2.msra.mxu0 0.0
    %2646 = vmatprep.subr.mxu0 0.0
    %2647 = vmatpush2.msra.mxu0 0.0
    %2648 = vmatprep.subr.mxu0 0.0
    %2649 = vmatpush2.msra.mxu0 0.0
    %2650 = vmatprep.subr.mxu0 0.0
    %2651 = vmatpush2.msra.mxu0 0.0
    %2652 = vmatprep.subr.mxu0 0.0
    %2653 = vmatpush2.msra.mxu0 0.0
    %2654 = vmatprep.subr.mxu0 0.0
    %2655 = vmatpush2.msra.mxu0 0.0
    %2656 = vmatprep.subr.mxu0 0.0
    %2657 = vmatpush2.msra.mxu0 0.0
    %2658 = vmatprep.mubr.f32.mxu0 0.0
    %2659 = vmatmul.mubr.f32.gmra.mxu0 %v2592
    %v2660 = vpop.f32.mrf.mxu0
    %v2661 = vadd.f32 0.0, %v2660
    %v2662 = vpop.f32.mrf.mxu0
    %2663 = vdwg.mxu0
    %v2665 = vsel %vm2515, %v2509, 0
    %2667 = vmatprep.subr.mxu0 0.0
    %2668 = vmatpush1.msra.mxu0 0.0
    %2669 = vmatprep.subr.mxu0 0.0
    %2670 = vmatpush1.msra.mxu0 0.0
    %2671 = vmatprep.subr.mxu0 0.0
    %2672 = vmatpush1.msra.mxu0 0.0
    %2673 = vmatprep.subr.mxu0 0.0
    %2674 = vmatpush1.msra.mxu0 0.0
    %2675 = vmatprep.subr.mxu0 0.0
    %2676 = vmatpush1.msra.mxu0 0.0
    %2677 = vmatprep.subr.mxu0 0.0
    %2678 = vmatpush1.msra.mxu0 0.0
    %2679 = vmatprep.subr.mxu0 0.0
    %2680 = vmatpush1.msra.mxu0 0.0
    %2681 = vmatprep.subr.mxu0 0.0
    %2682 = vmatpush1.msra.mxu0 0.0
    %2683 = vmatprep.subr.mxu0 0.0
    %2684 = vmatpush1.msra.mxu0 0.0
    %2685 = vmatprep.subr.mxu0 0.0
    %2686 = vmatpush1.msra.mxu0 0.0
    %2687 = vmatprep.subr.mxu0 0.0
    %2688 = vmatpush1.msra.mxu0 0.0
    %2689 = vmatprep.subr.mxu0 0.0
    %2690 = vmatpush1.msra.mxu0 0.0
    %2691 = vmatprep.subr.mxu0 0.0
    %2692 = vmatpush1.msra.mxu0 0.0
    %2693 = vmatprep.subr.mxu0 0.0
    %2694 = vmatpush1.msra.mxu0 0.0
    %2695 = vmatprep.subr.mxu0 0.0
    %2696 = vmatpush1.msra.mxu0 0.0
    %2697 = vmatprep.subr.mxu0 0.0
    %2698 = vmatpush1.msra.mxu0 %v2665
    %2699 = vmatprep.subr.mxu0 0.0
    %2700 = vmatpush2.msra.mxu0 0.0
    %2701 = vmatprep.subr.mxu0 0.0
    %2702 = vmatpush2.msra.mxu0 0.0
    %2703 = vmatprep.subr.mxu0 0.0
    %2704 = vmatpush2.msra.mxu0 0.0
    %2705 = vmatprep.subr.mxu0 0.0
    %2706 = vmatpush2.msra.mxu0 0.0
    %2707 = vmatprep.subr.mxu0 0.0
    %2708 = vmatpush2.msra.mxu0 0.0
    %2709 = vmatprep.subr.mxu0 0.0
    %2710 = vmatpush2.msra.mxu0 0.0
    %2711 = vmatprep.subr.mxu0 0.0
    %2712 = vmatpush2.msra.mxu0 0.0
    %2713 = vmatprep.subr.mxu0 0.0
    %2714 = vmatpush2.msra.mxu0 0.0
    %2715 = vmatprep.subr.mxu0 0.0
    %2716 = vmatpush2.msra.mxu0 0.0
    %2717 = vmatprep.subr.mxu0 0.0
    %2718 = vmatpush2.msra.mxu0 0.0
    %2719 = vmatprep.subr.mxu0 0.0
    %2720 = vmatpush2.msra.mxu0 0.0
    %2721 = vmatprep.subr.mxu0 0.0
    %2722 = vmatpush2.msra.mxu0 0.0
    %2723 = vmatprep.subr.mxu0 0.0
    %2724 = vmatpush2.msra.mxu0 0.0
    %2725 = vmatprep.subr.mxu0 0.0
    %2726 = vmatpush2.msra.mxu0 0.0
    %2727 = vmatprep.subr.mxu0 0.0
    %2728 = vmatpush2.msra.mxu0 0.0
    %2729 = vmatprep.subr.mxu0 0.0
    %2730 = vmatpush2.msra.mxu0 0.0
    %2731 = vmatprep.mubr.f32.mxu0 0.0
    %2732 = vmatmul.mubr.f32.gmra.mxu0 %v2513
    %v2733 = vpop.f32.mrf.mxu0
    %v2734 = vadd.f32 0.0, %v2733
    %v2735 = vpop.f32.mrf.mxu0
    %2736 = vdwg.mxu0
    %v2738 = vsel %vm48, %v2734, 0
    %2740 = vmatprep.subr.mxu0 0.0
    %2741 = vmatpush1.msra.mxu0 0.0
    %2742 = vmatprep.subr.mxu0 0.0
    %2743 = vmatpush1.msra.mxu0 0.0
    %2744 = vmatprep.subr.mxu0 0.0
    %2745 = vmatpush1.msra.mxu0 0.0
    %2746 = vmatprep.subr.mxu0 0.0
    %2747 = vmatpush1.msra.mxu0 0.0
    %2748 = vmatprep.subr.mxu0 0.0
    %2749 = vmatpush1.msra.mxu0 0.0
    %2750 = vmatprep.subr.mxu0 0.0
    %2751 = vmatpush1.msra.mxu0 0.0
    %2752 = vmatprep.subr.mxu0 0.0
    %2753 = vmatpush1.msra.mxu0 0.0
    %2754 = vmatprep.subr.mxu0 0.0
    %2755 = vmatpush1.msra.mxu0 0.0
    %2756 = vmatprep.subr.mxu0 0.0
    %2757 = vmatpush1.msra.mxu0 0.0
    %2758 = vmatprep.subr.mxu0 0.0
    %2759 = vmatpush1.msra.mxu0 0.0
    %2760 = vmatprep.subr.mxu0 0.0
    %2761 = vmatpush1.msra.mxu0 0.0
    %2762 = vmatprep.subr.mxu0 0.0
    %2763 = vmatpush1.msra.mxu0 0.0
    %2764 = vmatprep.subr.mxu0 0.0
    %2765 = vmatpush1.msra.mxu0 0.0
    %2766 = vmatprep.subr.mxu0 0.0
    %2767 = vmatpush1.msra.mxu0 0.0
    %2768 = vmatprep.subr.mxu0 0.0
    %2769 = vmatpush1.msra.mxu0 %v2590
    %2770 = vmatprep.subr.mxu0 0.0
    %2771 = vmatpush1.msra.mxu0 %v2589
    %2772 = vmatprep.subr.mxu0 0.0
    %2773 = vmatpush2.msra.mxu0 0.0
    %2774 = vmatprep.subr.mxu0 0.0
    %2775 = vmatpush2.msra.mxu0 0.0
    %2776 = vmatprep.subr.mxu0 0.0
    %2777 = vmatpush2.msra.mxu0 0.0
    %2778 = vmatprep.subr.mxu0 0.0
    %2779 = vmatpush2.msra.mxu0 0.0
    %2780 = vmatprep.subr.mxu0 0.0
    %2781 = vmatpush2.msra.mxu0 0.0
    %2782 = vmatprep.subr.mxu0 0.0
    %2783 = vmatpush2.msra.mxu0 0.0
    %2784 = vmatprep.subr.mxu0 0.0
    %2785 = vmatpush2.msra.mxu0 0.0
    %2786 = vmatprep.subr.mxu0 0.0
    %2787 = vmatpush2.msra.mxu0 0.0
    %2788 = vmatprep.subr.mxu0 0.0
    %2789 = vmatpush2.msra.mxu0 0.0
    %2790 = vmatprep.subr.mxu0 0.0
    %2791 = vmatpush2.msra.mxu0 0.0
    %2792 = vmatprep.subr.mxu0 0.0
    %2793 = vmatpush2.msra.mxu0 0.0
    %2794 = vmatprep.subr.mxu0 0.0
    %2795 = vmatpush2.msra.mxu0 0.0
    %2796 = vmatprep.subr.mxu0 0.0
    %2797 = vmatpush2.msra.mxu0 0.0
    %2798 = vmatprep.subr.mxu0 0.0
    %2799 = vmatpush2.msra.mxu0 0.0
    %2800 = vmatprep.subr.mxu0 0.0
    %2801 = vmatpush2.msra.mxu0 0.0
    %2802 = vmatprep.subr.mxu0 0.0
    %2803 = vmatpush2.msra.mxu0 0.0
    %2804 = vmatprep.mubr.f32.mxu0 0.0
    %2805 = vmatmul.mubr.f32.gmra.mxu0 %v2738
    %v2806 = vpop.f32.mrf.mxu0
    %v2807 = vadd.f32 0.0, %v2806
    %v2808 = vpop.f32.mrf.mxu0
    %2809 = vdwg.mxu0
    %v2810 = vmul.f32 %v2507, %v2507
    %v2812 = vsel %vm2515, %v2810, 0
    %2814 = vmatprep.subr.mxu0 0.0
    %2815 = vmatpush1.msra.mxu0 0.0
    %2816 = vmatprep.subr.mxu0 0.0
    %2817 = vmatpush1.msra.mxu0 0.0
    %2818 = vmatprep.subr.mxu0 0.0
    %2819 = vmatpush1.msra.mxu0 0.0
    %2820 = vmatprep.subr.mxu0 0.0
    %2821 = vmatpush1.msra.mxu0 0.0
    %2822 = vmatprep.subr.mxu0 0.0
    %2823 = vmatpush1.msra.mxu0 0.0
    %2824 = vmatprep.subr.mxu0 0.0
    %2825 = vmatpush1.msra.mxu0 0.0
    %2826 = vmatprep.subr.mxu0 0.0
    %2827 = vmatpush1.msra.mxu0 0.0
    %2828 = vmatprep.subr.mxu0 0.0
    %2829 = vmatpush1.msra.mxu0 0.0
    %2830 = vmatprep.subr.mxu0 0.0
    %2831 = vmatpush1.msra.mxu0 0.0
    %2832 = vmatprep.subr.mxu0 0.0
    %2833 = vmatpush1.msra.mxu0 0.0
    %2834 = vmatprep.subr.mxu0 0.0
    %2835 = vmatpush1.msra.mxu0 0.0
    %2836 = vmatprep.subr.mxu0 0.0
    %2837 = vmatpush1.msra.mxu0 0.0
    %2838 = vmatprep.subr.mxu0 0.0
    %2839 = vmatpush1.msra.mxu0 0.0
    %2840 = vmatprep.subr.mxu0 0.0
    %2841 = vmatpush1.msra.mxu0 0.0
    %2842 = vmatprep.subr.mxu0 0.0
    %2843 = vmatpush1.msra.mxu0 0.0
    %2844 = vmatprep.subr.mxu0 0.0
    %2845 = vmatpush1.msra.mxu0 %v2812
    %2846 = vmatprep.subr.mxu0 0.0
    %2847 = vmatpush2.msra.mxu0 0.0
    %2848 = vmatprep.subr.mxu0 0.0
    %2849 = vmatpush2.msra.mxu0 0.0
    %2850 = vmatprep.subr.mxu0 0.0
    %2851 = vmatpush2.msra.mxu0 0.0
    %2852 = vmatprep.subr.mxu0 0.0
    %2853 = vmatpush2.msra.mxu0 0.0
    %2854 = vmatprep.subr.mxu0 0.0
    %2855 = vmatpush2.msra.mxu0 0.0
    %2856 = vmatprep.subr.mxu0 0.0
    %2857 = vmatpush2.msra.mxu0 0.0
    %2858 = vmatprep.subr.mxu0 0.0
    %2859 = vmatpush2.msra.mxu0 0.0
    %2860 = vmatprep.subr.mxu0 0.0
    %2861 = vmatpush2.msra.mxu0 0.0
    %2862 = vmatprep.subr.mxu0 0.0
    %2863 = vmatpush2.msra.mxu0 0.0
    %2864 = vmatprep.subr.mxu0 0.0
    %2865 = vmatpush2.msra.mxu0 0.0
    %2866 = vmatprep.subr.mxu0 0.0
    %2867 = vmatpush2.msra.mxu0 0.0
    %2868 = vmatprep.subr.mxu0 0.0
    %2869 = vmatpush2.msra.mxu0 0.0
    %2870 = vmatprep.subr.mxu0 0.0
    %2871 = vmatpush2.msra.mxu0 0.0
    %2872 = vmatprep.subr.mxu0 0.0
    %2873 = vmatpush2.msra.mxu0 0.0
    %2874 = vmatprep.subr.mxu0 0.0
    %2875 = vmatpush2.msra.mxu0 0.0
    %2876 = vmatprep.subr.mxu0 0.0
    %2877 = vmatpush2.msra.mxu0 0.0
    %2878 = vmatprep.mubr.f32.mxu0 0.0
    %2879 = vmatmul.mubr.f32.gmra.mxu0 %v2513
    %v2880 = vpop.f32.mrf.mxu0
    %v2881 = vadd.f32 0.0, %v2880
    %v2882 = vpop.f32.mrf.mxu0
    %2883 = vdwg.mxu0
    %v2885 = vsel %vm48, %v2881, 0
    %2887 = vmatprep.subr.mxu0 0.0
    %2888 = vmatpush1.msra.mxu0 0.0
    %2889 = vmatprep.subr.mxu0 0.0
    %2890 = vmatpush1.msra.mxu0 0.0
    %2891 = vmatprep.subr.mxu0 0.0
    %2892 = vmatpush1.msra.mxu0 0.0
    %2893 = vmatprep.subr.mxu0 0.0
    %2894 = vmatpush1.msra.mxu0 0.0
    %2895 = vmatprep.subr.mxu0 0.0
    %2896 = vmatpush1.msra.mxu0 0.0
    %2897 = vmatprep.subr.mxu0 0.0
    %2898 = vmatpush1.msra.mxu0 0.0
    %2899 = vmatprep.subr.mxu0 0.0
    %2900 = vmatpush1.msra.mxu0 0.0
    %2901 = vmatprep.subr.mxu0 0.0
    %2902 = vmatpush1.msra.mxu0 0.0
    %2903 = vmatprep.subr.mxu0 0.0
    %2904 = vmatpush1.msra.mxu0 0.0
    %2905 = vmatprep.subr.mxu0 0.0
    %2906 = vmatpush1.msra.mxu0 0.0
    %2907 = vmatprep.subr.mxu0 0.0
    %2908 = vmatpush1.msra.mxu0 0.0
    %2909 = vmatprep.subr.mxu0 0.0
    %2910 = vmatpush1.msra.mxu0 0.0
    %2911 = vmatprep.subr.mxu0 0.0
    %2912 = vmatpush1.msra.mxu0 0.0
    %2913 = vmatprep.subr.mxu0 0.0
    %2914 = vmatpush1.msra.mxu0 0.0
    %2915 = vmatprep.subr.mxu0 0.0
    %2916 = vmatpush1.msra.mxu0 %v2590
    %2917 = vmatprep.subr.mxu0 0.0
    %2918 = vmatpush1.msra.mxu0 %v2589
    %2919 = vmatprep.subr.mxu0 0.0
    %2920 = vmatpush2.msra.mxu0 0.0
    %2921 = vmatprep.subr.mxu0 0.0
    %2922 = vmatpush2.msra.mxu0 0.0
    %2923 = vmatprep.subr.mxu0 0.0
    %2924 = vmatpush2.msra.mxu0 0.0
    %2925 = vmatprep.subr.mxu0 0.0
    %2926 = vmatpush2.msra.mxu0 0.0
    %2927 = vmatprep.subr.mxu0 0.0
    %2928 = vmatpush2.msra.mxu0 0.0
    %2929 = vmatprep.subr.mxu0 0.0
    %2930 = vmatpush2.msra.mxu0 0.0
    %2931 = vmatprep.subr.mxu0 0.0
    %2932 = vmatpush2.msra.mxu0 0.0
    %2933 = vmatprep.subr.mxu0 0.0
    %2934 = vmatpush2.msra.mxu0 0.0
    %2935 = vmatprep.subr.mxu0 0.0
    %2936 = vmatpush2.msra.mxu0 0.0
    %2937 = vmatprep.subr.mxu0 0.0
    %2938 = vmatpush2.msra.mxu0 0.0
    %2939 = vmatprep.subr.mxu0 0.0
    %2940 = vmatpush2.msra.mxu0 0.0
    %2941 = vmatprep.subr.mxu0 0.0
    %2942 = vmatpush2.msra.mxu0 0.0
    %2943 = vmatprep.subr.mxu0 0.0
    %2944 = vmatpush2.msra.mxu0 0.0
    %2945 = vmatprep.subr.mxu0 0.0
    %2946 = vmatpush2.msra.mxu0 0.0
    %2947 = vmatprep.subr.mxu0 0.0
    %2948 = vmatpush2.msra.mxu0 0.0
    %2949 = vmatprep.subr.mxu0 0.0
    %2950 = vmatpush2.msra.mxu0 0.0
    %2951 = vmatprep.mubr.f32.mxu0 0.0
    %2952 = vmatmul.mubr.f32.gmra.mxu0 %v2885
    %v2953 = vpop.f32.mrf.mxu0
    %v2954 = vadd.f32 0.0, %v2953
    %v2955 = vpop.f32.mrf.mxu0
    %2956 = vdwg.mxu0
    %v2957 = vmul.f32 %v2509, %v2509
    %v2959 = vsel %vm2515, %v2957, 0
    %2961 = vmatprep.subr.mxu0 0.0
    %2962 = vmatpush1.msra.mxu0 0.0
    %2963 = vmatprep.subr.mxu0 0.0
    %2964 = vmatpush1.msra.mxu0 0.0
    %2965 = vmatprep.subr.mxu0 0.0
    %2966 = vmatpush1.msra.mxu0 0.0
    %2967 = vmatprep.subr.mxu0 0.0
    %2968 = vmatpush1.msra.mxu0 0.0
    %2969 = vmatprep.subr.mxu0 0.0
    %2970 = vmatpush1.msra.mxu0 0.0
    %2971 = vmatprep.subr.mxu0 0.0
    %2972 = vmatpush1.msra.mxu0 0.0
    %2973 = vmatprep.subr.mxu0 0.0
    %2974 = vmatpush1.msra.mxu0 0.0
    %2975 = vmatprep.subr.mxu0 0.0
    %2976 = vmatpush1.msra.mxu0 0.0
    %2977 = vmatprep.subr.mxu0 0.0
    %2978 = vmatpush1.msra.mxu0 0.0
    %2979 = vmatprep.subr.mxu0 0.0
    %2980 = vmatpush1.msra.mxu0 0.0
    %2981 = vmatprep.subr.mxu0 0.0
    %2982 = vmatpush1.msra.mxu0 0.0
    %2983 = vmatprep.subr.mxu0 0.0
    %2984 = vmatpush1.msra.mxu0 0.0
    %2985 = vmatprep.subr.mxu0 0.0
    %2986 = vmatpush1.msra.mxu0 0.0
    %2987 = vmatprep.subr.mxu0 0.0
    %2988 = vmatpush1.msra.mxu0 0.0
    %2989 = vmatprep.subr.mxu0 0.0
    %2990 = vmatpush1.msra.mxu0 0.0
    %2991 = vmatprep.subr.mxu0 0.0
    %2992 = vmatpush1.msra.mxu0 %v2959
    %2993 = vmatprep.subr.mxu0 0.0
    %2994 = vmatpush2.msra.mxu0 0.0
    %2995 = vmatprep.subr.mxu0 0.0
    %2996 = vmatpush2.msra.mxu0 0.0
    %2997 = vmatprep.subr.mxu0 0.0
    %2998 = vmatpush2.msra.mxu0 0.0
    %2999 = vmatprep.subr.mxu0 0.0
    %3000 = vmatpush2.msra.mxu0 0.0
    %3001 = vmatprep.subr.mxu0 0.0
    %3002 = vmatpush2.msra.mxu0 0.0
    %3003 = vmatprep.subr.mxu0 0.0
    %3004 = vmatpush2.msra.mxu0 0.0
    %3005 = vmatprep.subr.mxu0 0.0
    %3006 = vmatpush2.msra.mxu0 0.0
    %3007 = vmatprep.subr.mxu0 0.0
    %3008 = vmatpush2.msra.mxu0 0.0
    %3009 = vmatprep.subr.mxu0 0.0
    %3010 = vmatpush2.msra.mxu0 0.0
    %3011 = vmatprep.subr.mxu0 0.0
    %3012 = vmatpush2.msra.mxu0 0.0
    %3013 = vmatprep.subr.mxu0 0.0
    %3014 = vmatpush2.msra.mxu0 0.0
    %3015 = vmatprep.subr.mxu0 0.0
    %3016 = vmatpush2.msra.mxu0 0.0
    %3017 = vmatprep.subr.mxu0 0.0
    %3018 = vmatpush2.msra.mxu0 0.0
    %3019 = vmatprep.subr.mxu0 0.0
    %3020 = vmatpush2.msra.mxu0 0.0
    %3021 = vmatprep.subr.mxu0 0.0
    %3022 = vmatpush2.msra.mxu0 0.0
    %3023 = vmatprep.subr.mxu0 0.0
    %3024 = vmatpush2.msra.mxu0 0.0
    %3025 = vmatprep.mubr.f32.mxu0 0.0
    %3026 = vmatmul.mubr.f32.gmra.mxu0 %v2513
    %v3027 = vpop.f32.mrf.mxu0
    %v3028 = vadd.f32 0.0, %v3027
    %v3029 = vpop.f32.mrf.mxu0
    %3030 = vdwg.mxu0
    %v3032 = vsel %vm48, %v3028, 0
    %3034 = vmatprep.subr.mxu0 0.0
    %3035 = vmatpush1.msra.mxu0 0.0
    %3036 = vmatprep.subr.mxu0 0.0
    %3037 = vmatpush1.msra.mxu0 0.0
    %3038 = vmatprep.subr.mxu0 0.0
    %3039 = vmatpush1.msra.mxu0 0.0
    %3040 = vmatprep.subr.mxu0 0.0
    %3041 = vmatpush1.msra.mxu0 0.0
    %3042 = vmatprep.subr.mxu0 0.0
    %3043 = vmatpush1.msra.mxu0 0.0
    %3044 = vmatprep.subr.mxu0 0.0
    %3045 = vmatpush1.msra.mxu0 0.0
    %3046 = vmatprep.subr.mxu0 0.0
    %3047 = vmatpush1.msra.mxu0 0.0
    %3048 = vmatprep.subr.mxu0 0.0
    %3049 = vmatpush1.msra.mxu0 0.0
    %3050 = vmatprep.subr.mxu0 0.0
    %3051 = vmatpush1.msra.mxu0 0.0
    %3052 = vmatprep.subr.mxu0 0.0
    %3053 = vmatpush1.msra.mxu0 0.0
    %3054 = vmatprep.subr.mxu0 0.0
    %3055 = vmatpush1.msra.mxu0 0.0
    %3056 = vmatprep.subr.mxu0 0.0
    %3057 = vmatpush1.msra.mxu0 0.0
    %3058 = vmatprep.subr.mxu0 0.0
    %3059 = vmatpush1.msra.mxu0 0.0
    %3060 = vmatprep.subr.mxu0 0.0
    %3061 = vmatpush1.msra.mxu0 0.0
    %3062 = vmatprep.subr.mxu0 0.0
    %3063 = vmatpush1.msra.mxu0 %v2590
    %3064 = vmatprep.subr.mxu0 0.0
    %3065 = vmatpush1.msra.mxu0 %v2589
    %3066 = vmatprep.subr.mxu0 0.0
    %3067 = vmatpush2.msra.mxu0 0.0
    %3068 = vmatprep.subr.mxu0 0.0
    %3069 = vmatpush2.msra.mxu0 0.0
    %3070 = vmatprep.subr.mxu0 0.0
    %3071 = vmatpush2.msra.mxu0 0.0
    %3072 = vmatprep.subr.mxu0 0.0
    %3073 = vmatpush2.msra.mxu0 0.0
    %3074 = vmatprep.subr.mxu0 0.0
    %3075 = vmatpush2.msra.mxu0 0.0
    %3076 = vmatprep.subr.mxu0 0.0
    %3077 = vmatpush2.msra.mxu0 0.0
    %3078 = vmatprep.subr.mxu0 0.0
    %3079 = vmatpush2.msra.mxu0 0.0
    %3080 = vmatprep.subr.mxu0 0.0
    %3081 = vmatpush2.msra.mxu0 0.0
    %3082 = vmatprep.subr.mxu0 0.0
    %3083 = vmatpush2.msra.mxu0 0.0
    %3084 = vmatprep.subr.mxu0 0.0
    %3085 = vmatpush2.msra.mxu0 0.0
    %3086 = vmatprep.subr.mxu0 0.0
    %3087 = vmatpush2.msra.mxu0 0.0
    %3088 = vmatprep.subr.mxu0 0.0
    %3089 = vmatpush2.msra.mxu0 0.0
    %3090 = vmatprep.subr.mxu0 0.0
    %3091 = vmatpush2.msra.mxu0 0.0
    %3092 = vmatprep.subr.mxu0 0.0
    %3093 = vmatpush2.msra.mxu0 0.0
    %3094 = vmatprep.subr.mxu0 0.0
    %3095 = vmatpush2.msra.mxu0 0.0
    %3096 = vmatprep.subr.mxu0 0.0
    %3097 = vmatpush2.msra.mxu0 0.0
    %3098 = vmatprep.mubr.f32.mxu0 0.0
    %3099 = vmatmul.mubr.f32.gmra.mxu0 %v3032
    %v3100 = vpop.f32.mrf.mxu0
    %v3101 = vadd.f32 0.0, %v3100
    %v3102 = vpop.f32.mrf.mxu0
    %3103 = vdwg.mxu0
    %v3104 = vmul.f32 %v2507, %v2509
    %v3106 = vsel %vm2515, %v3104, 0
    %3108 = vmatprep.subr.mxu0 0.0
    %3109 = vmatpush1.msra.mxu0 0.0
    %3110 = vmatprep.subr.mxu0 0.0
    %3111 = vmatpush1.msra.mxu0 0.0
    %3112 = vmatprep.subr.mxu0 0.0
    %3113 = vmatpush1.msra.mxu0 0.0
    %3114 = vmatprep.subr.mxu0 0.0
    %3115 = vmatpush1.msra.mxu0 0.0
    %3116 = vmatprep.subr.mxu0 0.0
    %3117 = vmatpush1.msra.mxu0 0.0
    %3118 = vmatprep.subr.mxu0 0.0
    %3119 = vmatpush1.msra.mxu0 0.0
    %3120 = vmatprep.subr.mxu0 0.0
    %3121 = vmatpush1.msra.mxu0 0.0
    %3122 = vmatprep.subr.mxu0 0.0
    %3123 = vmatpush1.msra.mxu0 0.0
    %3124 = vmatprep.subr.mxu0 0.0
    %3125 = vmatpush1.msra.mxu0 0.0
    %3126 = vmatprep.subr.mxu0 0.0
    %3127 = vmatpush1.msra.mxu0 0.0
    %3128 = vmatprep.subr.mxu0 0.0
    %3129 = vmatpush1.msra.mxu0 0.0
    %3130 = vmatprep.subr.mxu0 0.0
    %3131 = vmatpush1.msra.mxu0 0.0
    %3132 = vmatprep.subr.mxu0 0.0
    %3133 = vmatpush1.msra.mxu0 0.0
    %3134 = vmatprep.subr.mxu0 0.0
    %3135 = vmatpush1.msra.mxu0 0.0
    %3136 = vmatprep.subr.mxu0 0.0
    %3137 = vmatpush1.msra.mxu0 0.0
    %3138 = vmatprep.subr.mxu0 0.0
    %3139 = vmatpush1.msra.mxu0 %v3106
    %3140 = vmatprep.subr.mxu0 0.0
    %3141 = vmatpush2.msra.mxu0 0.0
    %3142 = vmatprep.subr.mxu0 0.0
    %3143 = vmatpush2.msra.mxu0 0.0
    %3144 = vmatprep.subr.mxu0 0.0
    %3145 = vmatpush2.msra.mxu0 0.0
    %3146 = vmatprep.subr.mxu0 0.0
    %3147 = vmatpush2.msra.mxu0 0.0
    %3148 = vmatprep.subr.mxu0 0.0
    %3149 = vmatpush2.msra.mxu0 0.0
    %3150 = vmatprep.subr.mxu0 0.0
    %3151 = vmatpush2.msra.mxu0 0.0
    %3152 = vmatprep.subr.mxu0 0.0
    %3153 = vmatpush2.msra.mxu0 0.0
    %3154 = vmatprep.subr.mxu0 0.0
    %3155 = vmatpush2.msra.mxu0 0.0
    %3156 = vmatprep.subr.mxu0 0.0
    %3157 = vmatpush2.msra.mxu0 0.0
    %3158 = vmatprep.subr.mxu0 0.0
    %3159 = vmatpush2.msra.mxu0 0.0
    %3160 = vmatprep.subr.mxu0 0.0
    %3161 = vmatpush2.msra.mxu0 0.0
    %3162 = vmatprep.subr.mxu0 0.0
    %3163 = vmatpush2.msra.mxu0 0.0
    %3164 = vmatprep.subr.mxu0 0.0
    %3165 = vmatpush2.msra.mxu0 0.0
    %3166 = vmatprep.subr.mxu0 0.0
    %3167 = vmatpush2.msra.mxu0 0.0
    %3168 = vmatprep.subr.mxu0 0.0
    %3169 = vmatpush2.msra.mxu0 0.0
    %3170 = vmatprep.subr.mxu0 0.0
    %3171 = vmatpush2.msra.mxu0 0.0
    %3172 = vmatprep.mubr.f32.mxu0 0.0
    %3173 = vmatmul.mubr.f32.gmra.mxu0 %v2513
    %v3174 = vpop.f32.mrf.mxu0
    %v3175 = vadd.f32 0.0, %v3174
    %v3176 = vpop.f32.mrf.mxu0
    %3177 = vdwg.mxu0
    %v3179 = vsel %vm48, %v3175, 0
    %3181 = vmatprep.subr.mxu0 0.0
    %3182 = vmatpush1.msra.mxu0 0.0
    %3183 = vmatprep.subr.mxu0 0.0
    %3184 = vmatpush1.msra.mxu0 0.0
    %3185 = vmatprep.subr.mxu0 0.0
    %3186 = vmatpush1.msra.mxu0 0.0
    %3187 = vmatprep.subr.mxu0 0.0
    %3188 = vmatpush1.msra.mxu0 0.0
    %3189 = vmatprep.subr.mxu0 0.0
    %3190 = vmatpush1.msra.mxu0 0.0
    %3191 = vmatprep.subr.mxu0 0.0
    %3192 = vmatpush1.msra.mxu0 0.0
    %3193 = vmatprep.subr.mxu0 0.0
    %3194 = vmatpush1.msra.mxu0 0.0
    %3195 = vmatprep.subr.mxu0 0.0
    %3196 = vmatpush1.msra.mxu0 0.0
    %3197 = vmatprep.subr.mxu0 0.0
    %3198 = vmatpush1.msra.mxu0 0.0
    %3199 = vmatprep.subr.mxu0 0.0
    %3200 = vmatpush1.msra.mxu0 0.0
    %3201 = vmatprep.subr.mxu0 0.0
    %3202 = vmatpush1.msra.mxu0 0.0
    %3203 = vmatprep.subr.mxu0 0.0
    %3204 = vmatpush1.msra.mxu0 0.0
    %3205 = vmatprep.subr.mxu0 0.0
    %3206 = vmatpush1.msra.mxu0 0.0
    %3207 = vmatprep.subr.mxu0 0.0
    %3208 = vmatpush1.msra.mxu0 0.0
    %3209 = vmatprep.subr.mxu0 0.0
    %3210 = vmatpush1.msra.mxu0 %v2590
    %3211 = vmatprep.subr.mxu0 0.0
    %3212 = vmatpush1.msra.mxu0 %v2589
    %3213 = vmatprep.subr.mxu0 0.0
    %3214 = vmatpush2.msra.mxu0 0.0
    %3215 = vmatprep.subr.mxu0 0.0
    %3216 = vmatpush2.msra.mxu0 0.0
    %3217 = vmatprep.subr.mxu0 0.0
    %3218 = vmatpush2.msra.mxu0 0.0
    %3219 = vmatprep.subr.mxu0 0.0
    %3220 = vmatpush2.msra.mxu0 0.0
    %3221 = vmatprep.subr.mxu0 0.0
    %3222 = vmatpush2.msra.mxu0 0.0
    %3223 = vmatprep.subr.mxu0 0.0
    %3224 = vmatpush2.msra.mxu0 0.0
    %3225 = vmatprep.subr.mxu0 0.0
    %3226 = vmatpush2.msra.mxu0 0.0
    %3227 = vmatprep.subr.mxu0 0.0
    %3228 = vmatpush2.msra.mxu0 0.0
    %3229 = vmatprep.subr.mxu0 0.0
    %3230 = vmatpush2.msra.mxu0 0.0
    %3231 = vmatprep.subr.mxu0 0.0
    %3232 = vmatpush2.msra.mxu0 0.0
    %3233 = vmatprep.subr.mxu0 0.0
    %3234 = vmatpush2.msra.mxu0 0.0
    %3235 = vmatprep.subr.mxu0 0.0
    %3236 = vmatpush2.msra.mxu0 0.0
    %3237 = vmatprep.subr.mxu0 0.0
    %3238 = vmatpush2.msra.mxu0 0.0
    %3239 = vmatprep.subr.mxu0 0.0
    %3240 = vmatpush2.msra.mxu0 0.0
    %3241 = vmatprep.subr.mxu0 0.0
    %3242 = vmatpush2.msra.mxu0 0.0
    %3243 = vmatprep.subr.mxu0 0.0
    %3244 = vmatpush2.msra.mxu0 0.0
    %3245 = vmatprep.mubr.f32.mxu0 0.0
    %3246 = vmatmul.mubr.f32.gmra.mxu0 %v3179
    %v3247 = vpop.f32.mrf.mxu0
    %v3248 = vadd.f32 0.0, %v3247
    %v3249 = vpop.f32.mrf.mxu0
    %3250 = vdwg.mxu0
    %v3251 = vmul.f32 %v2661, %v2807
    %v3252 = vmul.f32 %v2661, %v2661
    %v3253 = vmul.f32 %v2807, %v2807
    %v3254 = vmul.f32 %v3251, 2.0
    %v3255 = vadd.f32 %v3254, 0.0001
    %v3256 = vsub.f32 %v3248, %v3251
    %v3257 = vmul.f32 %v3256, 2.0
    %v3258 = vadd.f32 %v3257, 0.0009
    %v3259 = vmul.f32 %v3255, %v3258
    %v3260 = vadd.f32 %v3252, %v3253
    %v3261 = vadd.f32 %v3260, 0.0001
    %v3262 = vsub.f32 %v2954, %v3252
    %v3263 = vsub.f32 %v3101, %v3253
    %v3264 = vadd.f32 %v3262, %v3263
    %v3265 = vadd.f32 %v3264, 0.0009
    %v3266 = vmul.f32 %v3261, %v3265
    %v3267 = vrcp.pop %v3266
    %v3268 = vmul.f32 %v3266, %v3267
    %v3269 = vsub.f32 2.0, %v3268
    %v3270 = vmul.f32 %v3267, %v3269
    %v3271 = vmul.f32 %v3259, %v3270
    %vm3272 = vcmask 123904
    %v3273 = vsel %vm3272, %v3271, 0.0
    %3274 = vadd.xlane.f32.xlu0 %v3273
    %v3275 = vpop.xlane.xlu0 %3274
    %v3276 = vsel %vm2515, %v3275, 0.0
    %v3277 = vrot.slane %v3276, 4
    %v3278 = vadd.f32 %v3276, %v3277
    %v3279 = vrot.slane %v3278, 2
    %v3280 = vadd.f32 %v3278, %v3279
    %v3281 = vrot.slane %v3280, 1
    %v3282 = vadd.f32 %v3280, %v3281
    %v3283 = vmul.f32 %v3282, 0.03125
    %v3284 = vadd.f32 %v2506, %v3283
    %v3285 = vld [vmem:[%s12] sm:$0xff]
    %v3286 = vadd.f32 %v3285, %v3284
    %3287 = vst [vmem:[%s12] sm:$0xff] %v3286
  $region53: #{mssim_loss_pallas.1} parent=0 // pred_fallthru
    _
  // Predicated region
  $region54: #{mssim_loss_pallas.1} parent=0 // pred_check
    _
  $region55: #{mssim_loss_pallas.1} parent=0 // pred_check_branch
    %3289 = sbr.rel (0) target = $region57
  $region56: #{mssim_loss_pallas.1} parent=0 // pred_region
    _
  $region57: #{mssim_loss_pallas.1} parent=0 // pred_fallthru
    _
  // Predicated region
  $region58: #{mssim_loss_pallas.1} parent=0 // pred_check
    _
  $region59: #{mssim_loss_pallas.1} parent=0 // pred_check_branch
    %3291 = sbr.rel (0) target = $region61
  $region60: #{mssim_loss_pallas.1} parent=0 // pred_region
    _
  $region61: #{mssim_loss_pallas.1} parent=0 // pred_fallthru
    _

</llo_original>
